<compile_context>
chip_gen: v5e
topology: v5e:2x2
jax: 0.10.0
libtpu: 0.0.40
codegen_flags: <defaults>
</compile_context>

<pallas_src>
import functools
import math

import jax
import jax.numpy as jnp
from jax import lax
from jax.experimental import pallas as pl
from jax.experimental.pallas import tpu as pltpu

LANE = 128      # lane width
SUBLANE = 16    # sublane multiple (16 keeps bf16 (16,128) packing tile-aligned too)


def _round_up(x, m):
    return ((x + m - 1) // m) * m


# ----------------------------- Pallas kernel ---------------------------------
def rnn_kernel(x_ref, w0_ref, whh0_ref, b0_ref, wf_ref, bf_ref, fcw_ref, fcb_ref,
               out_ref, x0_ref, *state_refs, num_layers, chunk_t, t_total):
    # x_ref   : (CT*Bp, Fp) bf16   time-major rows (li*Bp + b) of the current chunk
    # w0_ref  : (Fp, Hp)    bf16   layer-0 W_ih^T (rows >= in_size are zero)
    # whh0_ref: (Hp, Hp)    bf16   layer-0 W_hh^T
    # b0_ref  : (1, Hp)     f32    layer-0 b_ih + b_hh
    # wf_ref  : (L-1, 2Hp, Hp) bf16  fused [W_ih^T ; W_hh^T] for layers 1..L-1
    # bf_ref  : (L-1, 1, Hp)   f32
    # fcw_ref : (Hp, Op)    bf16   fc weight^T
    # fcb_ref : (1, Op)     f32
    # out_ref : (Bp, Op)    f32    written only on the last chunk
    # x0_ref  : (CT*Bp, Hp) f32    scratch: per-chunk layer-0 input projection
    # state_refs: L hidden states + (L-1) wavefront pipeline registers, (Bp, Hp) f32
    L = num_layers
    h_refs = state_refs[:L]
    p_refs = state_refs[L:]
    c = pl.program_id(0)
    Bp, Hp = h_refs[0].shape

    @pl.when(c == 0)
    def _init():
        for r in state_refs:
            r[...] = jnp.zeros_like(r)

    # Layer-0 input projection hoisted off the recurrence: one batched MXU matmul per
    # streamed chunk (biases folded in, so layer 0 only does h @ W_hh inside the loop).
    x0_ref[...] = (jnp.dot(x_ref[...], w0_ref[...],
                           preferred_element_type=jnp.float32) + b0_ref[...])

    def run_chunk(masked):
        def step(li, carry):
            hs, ps = carry
            i = c * chunk_t + li            # global (skewed) iteration index
            row = pl.multiple_of(li * Bp, Bp)
            xt = x0_ref[pl.ds(row, Bp), :]  # (Bp, Hp) precomputed x@W_ih0 + b0

            # Wavefront skew: layer j consumes only previous-iteration carries (ps, hs),
            # so all L matmuls below are data-independent within this iteration.
            outs = [jnp.tanh(xt + jnp.dot(hs[0].astype(jnp.bfloat16), whh0_ref[...],
                                          preferred_element_type=jnp.float32))]
            for j in range(1, L):
                cat = jnp.concatenate([ps[j - 1].astype(jnp.bfloat16),
                                       hs[j].astype(jnp.bfloat16)], axis=-1)
                pre = jnp.dot(cat, wf_ref[j - 1],
                              preferred_element_type=jnp.float32) + bf_ref[j - 1]
                outs.append(jnp.tanh(pre))

            if masked:   # boundary chunks only: gate fill / drain / padded timesteps
                new_hs = []
                for j in range(L):
                    if j == 0:
                        valid = i < t_total
                    else:
                        valid = jnp.logical_and(i >= j, i < t_total + j)
                    new_hs.append(jnp.where(valid, outs[j], hs[j]))
                new_hs = tuple(new_hs)
            else:
                new_hs = tuple(outs)
            new_ps = tuple(outs[:L - 1])    # p[j] <- layer (j-1) output of this iter
            return (new_hs, new_ps)

        hs0 = tuple(h_refs[j][...] for j in range(L))
        ps0 = tuple(p_refs[j][...] for j in range(L - 1))
        hs, ps = lax.fori_loop(0, chunk_t, step, (hs0, ps0), unroll=True)
        for j in range(L):                  # persist carry across chunks
            h_refs[j][...] = hs[j]
        for j in range(L - 1):
            p_refs[j][...] = ps[j]

    # Only boundary chunks need the masked step variant.
    needs_mask = jnp.logical_or(c * chunk_t < L - 1,
                                (c + 1) * chunk_t > t_total)

    @pl.when(needs_mask)
    def _boundary():
        run_chunk(True)

    @pl.when(jnp.logical_not(needs_mask))
    def _steady():
        run_chunk(False)

    @pl.when(c == pl.num_programs(0) - 1)
    def _final():
        y = jnp.dot(h_refs[L - 1][...].astype(jnp.bfloat16), fcw_ref[...],
                    preferred_element_type=jnp.float32) + fcb_ref[...]
        out_ref[...] = y.astype(out_ref.dtype)


# ------------------------------ wrapper ---------------------------------------
def unidirectional_rnn_pallas(x, cells, fc_w, fc_b, *, chunk_t=16):
    """x: (B, T, in_size). cells: list of (w_ih, w_hh, b_ih, b_hh) in PyTorch layout."""
    B, T, in_size = x.shape
    L = len(cells)
    H = cells[0][1].shape[0]
    O = fc_w.shape[0]

    Bp = _round_up(B, SUBLANE)
    Hp = _round_up(H, LANE)
    Fp = _round_up(in_size, LANE)
    Op = _round_up(O, LANE)

    I_total = T + L - 1                     # wavefront-skewed iteration count
    CT = max(1, min(chunk_t, I_total))
    n_chunks = -(-I_total // CT)
    Ipad = n_chunks * CT

    # --- x: time-major, zero padded (batch / features / skew+drain steps), flattened
    #        to a lane/sublane-dense 2-D slab, bf16
    x_tm = jnp.transpose(x, (1, 0, 2)).astype(jnp.float32)          # (T, B, in)
    x_p = jnp.zeros((Ipad, Bp, Fp), jnp.float32).at[:T, :B, :in_size].set(x_tm)
    x_p = x_p.reshape(Ipad * Bp, Fp).astype(jnp.bfloat16)

    # --- layer 0 weights
    w_ih0, w_hh0, b_ih0, b_hh0 = cells[0]
    w0 = jnp.zeros((Fp, Hp), jnp.float32).at[:in_size, :H].set(w_ih0.T).astype(jnp.bfloat16)
    whh0 = jnp.zeros((Hp, Hp), jnp.float32).at[:H, :H].set(w_hh0.T).astype(jnp.bfloat16)
    b0 = jnp.zeros((1, Hp), jnp.float32).at[0, :H].set(b_ih0 + b_hh0)

    # --- layers 1..L-1: fused [W_ih^T ; W_hh^T] so each layer is one matmul per step
    Lm1 = max(L - 1, 1)
    wf = jnp.zeros((Lm1, 2 * Hp, Hp), jnp.float32)
    bf = jnp.zeros((Lm1, 1, Hp), jnp.float32)
    for j in range(1, L):
        w_ih, w_hh, b_ih, b_hh = cells[j]
        wf = wf.at[j - 1, :H, :H].set(w_ih.T)
        wf = wf.at[j - 1, Hp:Hp + H, :H].set(w_hh.T)
        bf = bf.at[j - 1, 0, :H].set(b_ih + b_hh)
    wf = wf.astype(jnp.bfloat16)

    # --- final Linear
    fcw = jnp.zeros((Hp, Op), jnp.float32).at[:H, :O].set(fc_w.T).astype(jnp.bfloat16)
    fcb = jnp.zeros((1, Op), jnp.float32).at[0, :O].set(fc_b)

    grid_spec = pltpu.PrefetchScalarGridSpec(
        num_scalar_prefetch=0,
        grid=(n_chunks,),
        in_specs=[
            pl.BlockSpec((CT * Bp, Fp), lambda c: (c, 0)),        # streamed x chunks
            pl.BlockSpec((Fp, Hp), lambda c: (0, 0)),
            pl.BlockSpec((Hp, Hp), lambda c: (0, 0)),
            pl.BlockSpec((1, Hp), lambda c: (0, 0)),
            pl.BlockSpec((Lm1, 2 * Hp, Hp), lambda c: (0, 0, 0)),
            pl.BlockSpec((Lm1, 1, Hp), lambda c: (0, 0, 0)),
            pl.BlockSpec((Hp, Op), lambda c: (0, 0)),
            pl.BlockSpec((1, Op), lambda c: (0, 0)),
        ],
        out_specs=pl.BlockSpec((Bp, Op), lambda c: (0, 0)),
        scratch_shapes=[pltpu.VMEM((CT * Bp, Hp), jnp.float32)]               # x0 proj
                      + [pltpu.VMEM((Bp, Hp), jnp.float32) for _ in range(L)]  # hidden
                      + [pltpu.VMEM((Bp, Hp), jnp.float32) for _ in range(L - 1)],  # pipe
    )

    # VMEM budget: double-buffered x chunk + resident weights + scratch, with headroom.
    working = (2 * CT * Bp * Fp * 2
               + 2 * (Fp * Hp + Hp * Hp + Lm1 * 2 * Hp * Hp + Hp * Op) * 2
               + (Hp + Lm1 * Hp + Op) * 4 + Bp * Op * 4
               + CT * Bp * Hp * 4 + (2 * L - 1) * Bp * Hp * 4)
    vmem_limit = int(min(max(4 * working, 4 * 1024 * 1024), 32 * 1024 * 1024))

    flops = (2 * Ipad * Bp * Fp * Hp
             + Ipad * (2 * Bp * Hp * Hp + (L - 1) * 2 * Bp * 2 * Hp * Hp)
             + 2 * Bp * Hp * Op)
    cost = pl.CostEstimate(
        flops=int(flops),
        transcendentals=int(Ipad * L * Bp * Hp),
        bytes_accessed=int(x_p.size * 2
                           + (w0.size + whh0.size + wf.size + fcw.size) * 2
                           + (b0.size + bf.size + fcb.size) * 4 + Bp * Op * 4),
    )

    out_p = pl.pallas_call(
        functools.partial(rnn_kernel, num_layers=L, chunk_t=CT, t_total=T),
        out_shape=jax.ShapeDtypeStruct((Bp, Op), jnp.float32),
        grid_spec=grid_spec,
        compiler_params=pltpu.CompilerParams(
            dimension_semantics=("arbitrary",),      # chunks carry state -> sequential
            vmem_limit_bytes=vmem_limit,
        ),
        cost_estimate=cost,
    )(x_p, w0, whh0, b0, wf, bf, fcw, fcb)

    return out_p[:B, :O]


# --------------------------- param init & reference ---------------------------
def init_params(key, in_size, hidden_size, num_layers, out_size):
    keys = jax.random.split(key, num_layers * 4 + 2)
    k = 1.0 / math.sqrt(hidden_size)
    cells, idx = [], 0
    for i in range(num_layers):
        in_features = in_size if i == 0 else hidden_size
        w_ih = jax.random.uniform(keys[idx], (hidden_size, in_features),
                                  minval=-k, maxval=k); idx += 1
        w_hh = jax.random.uniform(keys[idx], (hidden_size, hidden_size),
                                  minval=-k, maxval=k); idx += 1
        b_ih = jax.random.uniform(keys[idx], (hidden_size,),
                                  minval=-k, maxval=k); idx += 1
        b_hh = jax.random.uniform(keys[idx], (hidden_size,),
                                  minval=-k, maxval=k); idx += 1
        cells.append((w_ih, w_hh, b_ih, b_hh))
    fc_w = jax.random.uniform(keys[idx], (out_size, hidden_size),
                              minval=-k, maxval=k); idx += 1
    fc_b = jax.random.uniform(keys[idx], (out_size,), minval=-k, maxval=k)
    return cells, fc_w, fc_b


def reference_forward(x, cells, fc_w, fc_b):
    """Pure-JAX f32 mirror of UniDirectionalRNN.forward with vanilla tanh RNN cells."""
    B, T, _ = x.shape
    H = cells[0][1].shape[0]
    h = [jnp.zeros((B, H), jnp.float32) for _ in cells]
    for t in range(T):
        inp = x[:, t]
        for j, (w_ih, w_hh, b_ih, b_hh) in enumerate(cells):
            h[j] = jnp.tanh(inp @ w_ih.T + b_ih + h[j] @ w_hh.T + b_hh)
            inp = h[j]
    # .squeeze() is a no-op for batch > 1
    return h[-1] @ fc_w.T + fc_b


# ---------------------------------- main ---------------------------------------
if __name__ == "__main__":
    key = jax.random.PRNGKey(0)
    k1, k2, k3, k4 = jax.random.split(key, 4)

    # config 1: the nominal small shape (single chunk, boundary-masked path)
    B, T, IN, H, L, OUT = 2, 8, 16, 32, 2, 8
    x = jax.random.normal(k1, (B, T, IN), jnp.float32)
    cells, fc_w, fc_b = init_params(k2, IN, H, L, OUT)
    out = jax.block_until_ready(unidirectional_rnn_pallas(x, cells, fc_w, fc_b, chunk_t=16))
    ref = reference_forward(x, cells, fc_w, fc_b)
    assert out.shape == (B, OUT)
    assert jnp.allclose(out, ref, atol=2e-2, rtol=2e-2), "config1 mismatch vs reference"

    # config 2: batch/time/feature padding, 3 layers, multi-chunk streaming that
    # exercises masked fill chunk, unmasked steady chunks and masked drain chunk.
    B2, T2, IN2, H2, L2, OUT2 = 3, 13, 5, 20, 3, 4
    x2 = jax.random.normal(k3, (B2, T2, IN2), jnp.float32)
    cells2, fc_w2, fc_b2 = init_params(k4, IN2, H2, L2, OUT2)
    out2 = jax.block_until_ready(
        unidirectional_rnn_pallas(x2, cells2, fc_w2, fc_b2, chunk_t=4))
    ref2 = reference_forward(x2, cells2, fc_w2, fc_b2)
    assert out2.shape == (B2, OUT2)
    assert jnp.allclose(out2, ref2, atol=2e-2, rtol=2e-2), "config2 mismatch vs reference"

    print("KERNEL_OK")
</pallas_src>

<mosaic_0001>
module attributes {stable_mosaic.version = 11 : i64} {
  func.func @rnn_kernel(%arg0: i32, %arg1: memref<144x128xbf16, #tpu.memory_space<vmem>>, %arg2: memref<128x128xbf16, #tpu.memory_space<vmem>>, %arg3: memref<128x128xbf16, #tpu.memory_space<vmem>>, %arg4: memref<1x128xf32, #tpu.memory_space<vmem>>, %arg5: memref<1x256x128xbf16, #tpu.memory_space<vmem>>, %arg6: memref<1x1x128xf32, #tpu.memory_space<vmem>>, %arg7: memref<128x128xbf16, #tpu.memory_space<vmem>>, %arg8: memref<1x128xf32, #tpu.memory_space<vmem>>, %arg9: memref<16x128xf32, #tpu.memory_space<vmem>>, %arg10: memref<144x128xf32, #tpu.memory_space<vmem>>, %arg11: memref<16x128xf32, #tpu.memory_space<vmem>>, %arg12: memref<16x128xf32, #tpu.memory_space<vmem>>, %arg13: memref<16x128xf32, #tpu.memory_space<vmem>>) attributes {dimension_semantics = [#tpu.dimension_semantics<arbitrary>], iteration_bounds = array<i64: 1>, scalar_prefetch = 0 : i64, scratch_operands = 4 : i64, tpu.core_type = #tpu.core_type<tc>, window_params = [{transform_indices = @transform_0, window_bounds = array<i64: 144, 128>}, {pipeline_mode = #tpu.pipeline_mode<synchronous>, transform_indices = @transform_1, window_bounds = array<i64: 128, 128>}, {pipeline_mode = #tpu.pipeline_mode<synchronous>, transform_indices = @transform_2, window_bounds = array<i64: 128, 128>}, {pipeline_mode = #tpu.pipeline_mode<synchronous>, transform_indices = @transform_3, window_bounds = array<i64: 1, 128>}, {pipeline_mode = #tpu.pipeline_mode<synchronous>, transform_indices = @transform_4, window_bounds = array<i64: 1, 256, 128>}, {pipeline_mode = #tpu.pipeline_mode<synchronous>, transform_indices = @transform_5, window_bounds = array<i64: 1, 1, 128>}, {pipeline_mode = #tpu.pipeline_mode<synchronous>, transform_indices = @transform_6, window_bounds = array<i64: 128, 128>}, {pipeline_mode = #tpu.pipeline_mode<synchronous>, transform_indices = @transform_7, window_bounds = array<i64: 1, 128>}, {pipeline_mode = #tpu.pipeline_mode<synchronous>, transform_indices = @transform_8, window_bounds = array<i64: 16, 128>}]} {
    %c0_i32 = arith.constant 0 : i32
    %0 = arith.cmpi eq, %arg0, %c0_i32 : i32
    %1 = arith.extui %0 : i1 to i32
    %c0_i32_0 = arith.constant 0 : i32
    %2 = arith.cmpi ne, %1, %c0_i32_0 : i32
    scf.if %2 {
      %cst_14 = arith.constant 0.000000e+00 : f32
      %24 = vector.broadcast %cst_14 : f32 to vector<16x128xf32>
      %c0_15 = arith.constant 0 : index
      %c0_16 = arith.constant 0 : index
      %25 = vector.load %arg11[%c0_15, %c0_16] : memref<16x128xf32, #tpu.memory_space<vmem>>, vector<16x128xf32>
      tpu.vector_store %arg11[%c0_15, %c0_16], %24 {strides = array<i32>} : memref<16x128xf32, #tpu.memory_space<vmem>>, vector<16x128xf32>,
      %cst_17 = arith.constant 0.000000e+00 : f32
      %26 = vector.broadcast %cst_17 : f32 to vector<16x128xf32>
      %c0_18 = arith.constant 0 : index
      %c0_19 = arith.constant 0 : index
      %27 = vector.load %arg12[%c0_18, %c0_19] : memref<16x128xf32, #tpu.memory_space<vmem>>, vector<16x128xf32>
      tpu.vector_store %arg12[%c0_18, %c0_19], %26 {strides = array<i32>} : memref<16x128xf32, #tpu.memory_space<vmem>>, vector<16x128xf32>,
      %cst_20 = arith.constant 0.000000e+00 : f32
      %28 = vector.broadcast %cst_20 : f32 to vector<16x128xf32>
      %c0_21 = arith.constant 0 : index
      %c0_22 = arith.constant 0 : index
      %29 = vector.load %arg13[%c0_21, %c0_22] : memref<16x128xf32, #tpu.memory_space<vmem>>, vector<16x128xf32>
      tpu.vector_store %arg13[%c0_21, %c0_22], %28 {strides = array<i32>} : memref<16x128xf32, #tpu.memory_space<vmem>>, vector<16x128xf32>,
    } else {
    }
    %c0 = arith.constant 0 : index
    %c0_1 = arith.constant 0 : index
    %3 = vector.load %arg1[%c0, %c0_1] : memref<144x128xbf16, #tpu.memory_space<vmem>>, vector<144x128xbf16>
    %c0_2 = arith.constant 0 : index
    %c0_3 = arith.constant 0 : index
    %4 = vector.load %arg2[%c0_2, %c0_3] : memref<128x128xbf16, #tpu.memory_space<vmem>>, vector<128x128xbf16>
    %cst = arith.constant dense<0.000000e+00> : vector<144x128xf32>
    %5 = tpu.matmul %3, %4, %cst {dimension_numbers = #tpu.dot_dimension_numbers<[1], [0], [0], [1], [0, 0, 1, 1], [], []>} : vector<144x128xbf16>, vector<128x128xbf16>, vector<144x128xf32> -> vector<144x128xf32>
    %c0_4 = arith.constant 0 : index
    %c0_5 = arith.constant 0 : index
    %6 = vector.load %arg4[%c0_4, %c0_5] : memref<1x128xf32, #tpu.memory_space<vmem>>, vector<1x128xf32>
    %7 = vector.broadcast %6 : vector<1x128xf32> to vector<144x128xf32>
    %8 = arith.addf %5, %7 : vector<144x128xf32>
    %c0_6 = arith.constant 0 : index
    %c0_7 = arith.constant 0 : index
    %9 = vector.load %arg10[%c0_6, %c0_7] : memref<144x128xf32, #tpu.memory_space<vmem>>, vector<144x128xf32>
    tpu.vector_store %arg10[%c0_6, %c0_7], %8 {strides = array<i32>} : memref<144x128xf32, #tpu.memory_space<vmem>>, vector<144x128xf32>,
    %c9_i32 = arith.constant 9 : i32
    %10 = arith.muli %arg0, %c9_i32 : i32
    %c1_i32 = arith.constant 1 : i32
    %11 = arith.cmpi slt, %10, %c1_i32 : i32
    %c1_i32_8 = arith.constant 1 : i32
    %12 = arith.addi %arg0, %c1_i32_8 : i32
    %c9_i32_9 = arith.constant 9 : i32
    %13 = arith.muli %12, %c9_i32_9 : i32
    %c8_i32 = arith.constant 8 : i32
    %14 = arith.cmpi sgt, %13, %c8_i32 : i32
    %15 = arith.ori %11, %14 : i1
    %16 = arith.extui %15 : i1 to i32
    %c0_i32_10 = arith.constant 0 : i32
    %17 = arith.cmpi ne, %16, %c0_i32_10 : i32
    scf.if %17 {
      %c0_14 = arith.constant 0 : index
      %c0_15 = arith.constant 0 : index
      %24 = vector.load %arg11[%c0_14, %c0_15] : memref<16x128xf32, #tpu.memory_space<vmem>>, vector<16x128xf32>
      %c0_16 = arith.constant 0 : index
      %c0_17 = arith.constant 0 : index
      %25 = vector.load %arg12[%c0_16, %c0_17] : memref<16x128xf32, #tpu.memory_space<vmem>>, vector<16x128xf32>
      %c0_18 = arith.constant 0 : index
      %c0_19 = arith.constant 0 : index
      %26 = vector.load %arg13[%c0_18, %c0_19] : memref<16x128xf32, #tpu.memory_space<vmem>>, vector<16x128xf32>
      %c0_i32_20 = arith.constant 0 : i32
      %c9_i32_21 = arith.constant 9 : i32
      %27 = arith.muli %arg0, %c9_i32_21 : i32
      %28 = arith.addi %27, %c0_i32_20 : i32
      %c16_i32 = arith.constant 16 : i32
      %29 = arith.muli %c0_i32_20, %c16_i32 : i32
      %30 = tpu.assume_multiple %29, 16 : i32
      %31 = arith.index_cast %30 : i32 to index
      %c0_22 = arith.constant 0 : index
      %32 = vector.load %arg10[%31, %c0_22] : memref<144x128xf32, #tpu.memory_space<vmem>>, vector<16x128xf32>
      %33 = arith.truncf %24 : vector<16x128xf32> to vector<16x128xbf16>
      %c0_23 = arith.constant 0 : index
      %c0_24 = arith.constant 0 : index
      %34 = vector.load %arg3[%c0_23, %c0_24] : memref<128x128xbf16, #tpu.memory_space<vmem>>, vector<128x128xbf16>
      %cst_25 = arith.constant dense<0.000000e+00> : vector<16x128xf32>
      %35 = tpu.matmul %33, %34, %cst_25 {dimension_numbers = #tpu.dot_dimension_numbers<[1], [0], [0], [1], [0, 0, 1, 1], [], []>} : vector<16x128xbf16>, vector<128x128xbf16>, vector<16x128xf32> -> vector<16x128xf32>
      %36 = arith.addf %32, %35 : vector<16x128xf32>
      %37 = math.tanh %36 : vector<16x128xf32>
      %38 = arith.truncf %26 : vector<16x128xf32> to vector<16x128xbf16>
      %39 = arith.truncf %25 : vector<16x128xf32> to vector<16x128xbf16>
      %40 = tpu.concatenate %38, %39 in 1 : vector<16x128xbf16>, vector<16x128xbf16> -> vector<16x256xbf16>
      %c0_26 = arith.constant 0 : index
      %c0_27 = arith.constant 0 : index
      %c0_28 = arith.constant 0 : index
      %41 = vector.load %arg5[%c0_26, %c0_27, %c0_28] : memref<1x256x128xbf16, #tpu.memory_space<vmem>>, vector<1x256x128xbf16>
      %42 = vector.shape_cast %41 : vector<1x256x128xbf16> to vector<256x128xbf16>
      %cst_29 = arith.constant dense<0.000000e+00> : vector<16x128xf32>
      %43 = tpu.matmul %40, %42, %cst_29 {dimension_numbers = #tpu.dot_dimension_numbers<[1], [0], [0], [1], [0, 0, 1, 1], [], []>} : vector<16x256xbf16>, vector<256x128xbf16>, vector<16x128xf32> -> vector<16x128xf32>
      %c0_30 = arith.constant 0 : index
      %c0_31 = arith.constant 0 : index
      %c0_32 = arith.constant 0 : index
      %44 = vector.load %arg6[%c0_30, %c0_31, %c0_32] : memref<1x1x128xf32, #tpu.memory_space<vmem>>, vector<1x1x128xf32>
      %45 = vector.shape_cast %44 : vector<1x1x128xf32> to vector<1x128xf32>
      %46 = vector.broadcast %45 : vector<1x128xf32> to vector<16x128xf32>
      %47 = arith.addf %43, %46 : vector<16x128xf32>
      %48 = math.tanh %47 : vector<16x128xf32>
      %c8_i32_33 = arith.constant 8 : i32
      %49 = arith.cmpi slt, %28, %c8_i32_33 : i32
      %50 = arith.select %49, %37, %24 : vector<16x128xf32>
      %c1_i32_34 = arith.constant 1 : i32
      %51 = arith.cmpi sge, %28, %c1_i32_34 : i32
      %c9_i32_35 = arith.constant 9 : i32
      %52 = arith.cmpi slt, %28, %c9_i32_35 : i32
      %53 = arith.andi %51, %52 : i1
      %54 = arith.select %53, %48, %25 : vector<16x128xf32>
      %c1_i32_36 = arith.constant 1 : i32
      %c9_i32_37 = arith.constant 9 : i32
      %55 = arith.muli %arg0, %c9_i32_37 : i32
      %56 = arith.addi %55, %c1_i32_36 : i32
      %c16_i32_38 = arith.constant 16 : i32
      %57 = arith.muli %c1_i32_36, %c16_i32_38 : i32
      %58 = tpu.assume_multiple %57, 16 : i32
      %59 = arith.index_cast %58 : i32 to index
      %c0_39 = arith.constant 0 : index
      %60 = vector.load %arg10[%59, %c0_39] : memref<144x128xf32, #tpu.memory_space<vmem>>, vector<16x128xf32>
      %61 = arith.truncf %50 : vector<16x128xf32> to vector<16x128xbf16>
      %c0_40 = arith.constant 0 : index
      %c0_41 = arith.constant 0 : index
      %62 = vector.load %arg3[%c0_40, %c0_41] : memref<128x128xbf16, #tpu.memory_space<vmem>>, vector<128x128xbf16>
      %cst_42 = arith.constant dense<0.000000e+00> : vector<16x128xf32>
      %63 = tpu.matmul %61, %62, %cst_42 {dimension_numbers = #tpu.dot_dimension_numbers<[1], [0], [0], [1], [0, 0, 1, 1], [], []>} : vector<16x128xbf16>, vector<128x128xbf16>, vector<16x128xf32> -> vector<16x128xf32>
      %64 = arith.addf %60, %63 : vector<16x128xf32>
      %65 = math.tanh %64 : vector<16x128xf32>
      %66 = arith.truncf %37 : vector<16x128xf32> to vector<16x128xbf16>
      %67 = arith.truncf %54 : vector<16x128xf32> to vector<16x128xbf16>
      %68 = tpu.concatenate %66, %67 in 1 : vector<16x128xbf16>, vector<16x128xbf16> -> vector<16x256xbf16>
      %c0_43 = arith.constant 0 : index
      %c0_44 = arith.constant 0 : index
      %c0_45 = arith.constant 0 : index
      %69 = vector.load %arg5[%c0_43, %c0_44, %c0_45] : memref<1x256x128xbf16, #tpu.memory_space<vmem>>, vector<1x256x128xbf16>
      %70 = vector.shape_cast %69 : vector<1x256x128xbf16> to vector<256x128xbf16>
      %cst_46 = arith.constant dense<0.000000e+00> : vector<16x128xf32>
      %71 = tpu.matmul %68, %70, %cst_46 {dimension_numbers = #tpu.dot_dimension_numbers<[1], [0], [0], [1], [0, 0, 1, 1], [], []>} : vector<16x256xbf16>, vector<256x128xbf16>, vector<16x128xf32> -> vector<16x128xf32>
      %c0_47 = arith.constant 0 : index
      %c0_48 = arith.constant 0 : index
      %c0_49 = arith.constant 0 : index
      %72 = vector.load %arg6[%c0_47, %c0_48, %c0_49] : memref<1x1x128xf32, #tpu.memory_space<vmem>>, vector<1x1x128xf32>
      %73 = vector.shape_cast %72 : vector<1x1x128xf32> to vector<1x128xf32>
      %74 = vector.broadcast %73 : vector<1x128xf32> to vector<16x128xf32>
      %75 = arith.addf %71, %74 : vector<16x128xf32>
      %76 = math.tanh %75 : vector<16x128xf32>
      %c8_i32_50 = arith.constant 8 : i32
      %77 = arith.cmpi slt, %56, %c8_i32_50 : i32
      %78 = arith.select %77, %65, %50 : vector<16x128xf32>
      %c1_i32_51 = arith.constant 1 : i32
      %79 = arith.cmpi sge, %56, %c1_i32_51 : i32
      %c9_i32_52 = arith.constant 9 : i32
      %80 = arith.cmpi slt, %56, %c9_i32_52 : i32
      %81 = arith.andi %79, %80 : i1
      %82 = arith.select %81, %76, %54 : vector<16x128xf32>
      %c2_i32 = arith.constant 2 : i32
      %c9_i32_53 = arith.constant 9 : i32
      %83 = arith.muli %arg0, %c9_i32_53 : i32
      %84 = arith.addi %83, %c2_i32 : i32
      %c16_i32_54 = arith.constant 16 : i32
      %85 = arith.muli %c2_i32, %c16_i32_54 : i32
      %86 = tpu.assume_multiple %85, 16 : i32
      %87 = arith.index_cast %86 : i32 to index
      %c0_55 = arith.constant 0 : index
      %88 = vector.load %arg10[%87, %c0_55] : memref<144x128xf32, #tpu.memory_space<vmem>>, vector<16x128xf32>
      %89 = arith.truncf %78 : vector<16x128xf32> to vector<16x128xbf16>
      %c0_56 = arith.constant 0 : index
      %c0_57 = arith.constant 0 : index
      %90 = vector.load %arg3[%c0_56, %c0_57] : memref<128x128xbf16, #tpu.memory_space<vmem>>, vector<128x128xbf16>
      %cst_58 = arith.constant dense<0.000000e+00> : vector<16x128xf32>
      %91 = tpu.matmul %89, %90, %cst_58 {dimension_numbers = #tpu.dot_dimension_numbers<[1], [0], [0], [1], [0, 0, 1, 1], [], []>} : vector<16x128xbf16>, vector<128x128xbf16>, vector<16x128xf32> -> vector<16x128xf32>
      %92 = arith.addf %88, %91 : vector<16x128xf32>
      %93 = math.tanh %92 : vector<16x128xf32>
      %94 = arith.truncf %65 : vector<16x128xf32> to vector<16x128xbf16>
      %95 = arith.truncf %82 : vector<16x128xf32> to vector<16x128xbf16>
      %96 = tpu.concatenate %94, %95 in 1 : vector<16x128xbf16>, vector<16x128xbf16> -> vector<16x256xbf16>
      %c0_59 = arith.constant 0 : index
      %c0_60 = arith.constant 0 : index
      %c0_61 = arith.constant 0 : index
      %97 = vector.load %arg5[%c0_59, %c0_60, %c0_61] : memref<1x256x128xbf16, #tpu.memory_space<vmem>>, vector<1x256x128xbf16>
      %98 = vector.shape_cast %97 : vector<1x256x128xbf16> to vector<256x128xbf16>
      %cst_62 = arith.constant dense<0.000000e+00> : vector<16x128xf32>
      %99 = tpu.matmul %96, %98, %cst_62 {dimension_numbers = #tpu.dot_dimension_numbers<[1], [0], [0], [1], [0, 0, 1, 1], [], []>} : vector<16x256xbf16>, vector<256x128xbf16>, vector<16x128xf32> -> vector<16x128xf32>
      %c0_63 = arith.constant 0 : index
      %c0_64 = arith.constant 0 : index
      %c0_65 = arith.constant 0 : index
      %100 = vector.load %arg6[%c0_63, %c0_64, %c0_65] : memref<1x1x128xf32, #tpu.memory_space<vmem>>, vector<1x1x128xf32>
      %101 = vector.shape_cast %100 : vector<1x1x128xf32> to vector<1x128xf32>
      %102 = vector.broadcast %101 : vector<1x128xf32> to vector<16x128xf32>
      %103 = arith.addf %99, %102 : vector<16x128xf32>
      %104 = math.tanh %103 : vector<16x128xf32>
      %c8_i32_66 = arith.constant 8 : i32
      %105 = arith.cmpi slt, %84, %c8_i32_66 : i32
      %106 = arith.select %105, %93, %78 : vector<16x128xf32>
      %c1_i32_67 = arith.constant 1 : i32
      %107 = arith.cmpi sge, %84, %c1_i32_67 : i32
      %c9_i32_68 = arith.constant 9 : i32
      %108 = arith.cmpi slt, %84, %c9_i32_68 : i32
      %109 = arith.andi %107, %108 : i1
      %110 = arith.select %109, %104, %82 : vector<16x128xf32>
      %c3_i32 = arith.constant 3 : i32
      %c9_i32_69 = arith.constant 9 : i32
      %111 = arith.muli %arg0, %c9_i32_69 : i32
      %112 = arith.addi %111, %c3_i32 : i32
      %c16_i32_70 = arith.constant 16 : i32
      %113 = arith.muli %c3_i32, %c16_i32_70 : i32
      %114 = tpu.assume_multiple %113, 16 : i32
      %115 = arith.index_cast %114 : i32 to index
      %c0_71 = arith.constant 0 : index
      %116 = vector.load %arg10[%115, %c0_71] : memref<144x128xf32, #tpu.memory_space<vmem>>, vector<16x128xf32>
      %117 = arith.truncf %106 : vector<16x128xf32> to vector<16x128xbf16>
      %c0_72 = arith.constant 0 : index
      %c0_73 = arith.constant 0 : index
      %118 = vector.load %arg3[%c0_72, %c0_73] : memref<128x128xbf16, #tpu.memory_space<vmem>>, vector<128x128xbf16>
      %cst_74 = arith.constant dense<0.000000e+00> : vector<16x128xf32>
      %119 = tpu.matmul %117, %118, %cst_74 {dimension_numbers = #tpu.dot_dimension_numbers<[1], [0], [0], [1], [0, 0, 1, 1], [], []>} : vector<16x128xbf16>, vector<128x128xbf16>, vector<16x128xf32> -> vector<16x128xf32>
      %120 = arith.addf %116, %119 : vector<16x128xf32>
      %121 = math.tanh %120 : vector<16x128xf32>
      %122 = arith.truncf %93 : vector<16x128xf32> to vector<16x128xbf16>
      %123 = arith.truncf %110 : vector<16x128xf32> to vector<16x128xbf16>
      %124 = tpu.concatenate %122, %123 in 1 : vector<16x128xbf16>, vector<16x128xbf16> -> vector<16x256xbf16>
      %c0_75 = arith.constant 0 : index
      %c0_76 = arith.constant 0 : index
      %c0_77 = arith.constant 0 : index
      %125 = vector.load %arg5[%c0_75, %c0_76, %c0_77] : memref<1x256x128xbf16, #tpu.memory_space<vmem>>, vector<1x256x128xbf16>
      %126 = vector.shape_cast %125 : vector<1x256x128xbf16> to vector<256x128xbf16>
      %cst_78 = arith.constant dense<0.000000e+00> : vector<16x128xf32>
      %127 = tpu.matmul %124, %126, %cst_78 {dimension_numbers = #tpu.dot_dimension_numbers<[1], [0], [0], [1], [0, 0, 1, 1], [], []>} : vector<16x256xbf16>, vector<256x128xbf16>, vector<16x128xf32> -> vector<16x128xf32>
      %c0_79 = arith.constant 0 : index
      %c0_80 = arith.constant 0 : index
      %c0_81 = arith.constant 0 : index
      %128 = vector.load %arg6[%c0_79, %c0_80, %c0_81] : memref<1x1x128xf32, #tpu.memory_space<vmem>>, vector<1x1x128xf32>
      %129 = vector.shape_cast %128 : vector<1x1x128xf32> to vector<1x128xf32>
      %130 = vector.broadcast %129 : vector<1x128xf32> to vector<16x128xf32>
      %131 = arith.addf %127, %130 : vector<16x128xf32>
      %132 = math.tanh %131 : vector<16x128xf32>
      %c8_i32_82 = arith.constant 8 : i32
      %133 = arith.cmpi slt, %112, %c8_i32_82 : i32
      %134 = arith.select %133, %121, %106 : vector<16x128xf32>
      %c1_i32_83 = arith.constant 1 : i32
      %135 = arith.cmpi sge, %112, %c1_i32_83 : i32
      %c9_i32_84 = arith.constant 9 : i32
      %136 = arith.cmpi slt, %112, %c9_i32_84 : i32
      %137 = arith.andi %135, %136 : i1
      %138 = arith.select %137, %132, %110 : vector<16x128xf32>
      %c4_i32 = arith.constant 4 : i32
      %c9_i32_85 = arith.constant 9 : i32
      %139 = arith.muli %arg0, %c9_i32_85 : i32
      %140 = arith.addi %139, %c4_i32 : i32
      %c16_i32_86 = arith.constant 16 : i32
      %141 = arith.muli %c4_i32, %c16_i32_86 : i32
      %142 = tpu.assume_multiple %141, 16 : i32
      %143 = arith.index_cast %142 : i32 to index
      %c0_87 = arith.constant 0 : index
      %144 = vector.load %arg10[%143, %c0_87] : memref<144x128xf32, #tpu.memory_space<vmem>>, vector<16x128xf32>
      %145 = arith.truncf %134 : vector<16x128xf32> to vector<16x128xbf16>
      %c0_88 = arith.constant 0 : index
      %c0_89 = arith.constant 0 : index
      %146 = vector.load %arg3[%c0_88, %c0_89] : memref<128x128xbf16, #tpu.memory_space<vmem>>, vector<128x128xbf16>
      %cst_90 = arith.constant dense<0.000000e+00> : vector<16x128xf32>
      %147 = tpu.matmul %145, %146, %cst_90 {dimension_numbers = #tpu.dot_dimension_numbers<[1], [0], [0], [1], [0, 0, 1, 1], [], []>} : vector<16x128xbf16>, vector<128x128xbf16>, vector<16x128xf32> -> vector<16x128xf32>
      %148 = arith.addf %144, %147 : vector<16x128xf32>
      %149 = math.tanh %148 : vector<16x128xf32>
      %150 = arith.truncf %121 : vector<16x128xf32> to vector<16x128xbf16>
      %151 = arith.truncf %138 : vector<16x128xf32> to vector<16x128xbf16>
      %152 = tpu.concatenate %150, %151 in 1 : vector<16x128xbf16>, vector<16x128xbf16> -> vector<16x256xbf16>
      %c0_91 = arith.constant 0 : index
      %c0_92 = arith.constant 0 : index
      %c0_93 = arith.constant 0 : index
      %153 = vector.load %arg5[%c0_91, %c0_92, %c0_93] : memref<1x256x128xbf16, #tpu.memory_space<vmem>>, vector<1x256x128xbf16>
      %154 = vector.shape_cast %153 : vector<1x256x128xbf16> to vector<256x128xbf16>
      %cst_94 = arith.constant dense<0.000000e+00> : vector<16x128xf32>
      %155 = tpu.matmul %152, %154, %cst_94 {dimension_numbers = #tpu.dot_dimension_numbers<[1], [0], [0], [1], [0, 0, 1, 1], [], []>} : vector<16x256xbf16>, vector<256x128xbf16>, vector<16x128xf32> -> vector<16x128xf32>
      %c0_95 = arith.constant 0 : index
      %c0_96 = arith.constant 0 : index
      %c0_97 = arith.constant 0 : index
      %156 = vector.load %arg6[%c0_95, %c0_96, %c0_97] : memref<1x1x128xf32, #tpu.memory_space<vmem>>, vector<1x1x128xf32>
      %157 = vector.shape_cast %156 : vector<1x1x128xf32> to vector<1x128xf32>
      %158 = vector.broadcast %157 : vector<1x128xf32> to vector<16x128xf32>
      %159 = arith.addf %155, %158 : vector<16x128xf32>
      %160 = math.tanh %159 : vector<16x128xf32>
      %c8_i32_98 = arith.constant 8 : i32
      %161 = arith.cmpi slt, %140, %c8_i32_98 : i32
      %162 = arith.select %161, %149, %134 : vector<16x128xf32>
      %c1_i32_99 = arith.constant 1 : i32
      %163 = arith.cmpi sge, %140, %c1_i32_99 : i32
      %c9_i32_100 = arith.constant 9 : i32
      %164 = arith.cmpi slt, %140, %c9_i32_100 : i32
      %165 = arith.andi %163, %164 : i1
      %166 = arith.select %165, %160, %138 : vector<16x128xf32>
      %c5_i32 = arith.constant 5 : i32
      %c9_i32_101 = arith.constant 9 : i32
      %167 = arith.muli %arg0, %c9_i32_101 : i32
      %168 = arith.addi %167, %c5_i32 : i32
      %c16_i32_102 = arith.constant 16 : i32
      %169 = arith.muli %c5_i32, %c16_i32_102 : i32
      %170 = tpu.assume_multiple %169, 16 : i32
      %171 = arith.index_cast %170 : i32 to index
      %c0_103 = arith.constant 0 : index
      %172 = vector.load %arg10[%171, %c0_103] : memref<144x128xf32, #tpu.memory_space<vmem>>, vector<16x128xf32>
      %173 = arith.truncf %162 : vector<16x128xf32> to vector<16x128xbf16>
      %c0_104 = arith.constant 0 : index
      %c0_105 = arith.constant 0 : index
      %174 = vector.load %arg3[%c0_104, %c0_105] : memref<128x128xbf16, #tpu.memory_space<vmem>>, vector<128x128xbf16>
      %cst_106 = arith.constant dense<0.000000e+00> : vector<16x128xf32>
      %175 = tpu.matmul %173, %174, %cst_106 {dimension_numbers = #tpu.dot_dimension_numbers<[1], [0], [0], [1], [0, 0, 1, 1], [], []>} : vector<16x128xbf16>, vector<128x128xbf16>, vector<16x128xf32> -> vector<16x128xf32>
      %176 = arith.addf %172, %175 : vector<16x128xf32>
      %177 = math.tanh %176 : vector<16x128xf32>
      %178 = arith.truncf %149 : vector<16x128xf32> to vector<16x128xbf16>
      %179 = arith.truncf %166 : vector<16x128xf32> to vector<16x128xbf16>
      %180 = tpu.concatenate %178, %179 in 1 : vector<16x128xbf16>, vector<16x128xbf16> -> vector<16x256xbf16>
      %c0_107 = arith.constant 0 : index
      %c0_108 = arith.constant 0 : index
      %c0_109 = arith.constant 0 : index
      %181 = vector.load %arg5[%c0_107, %c0_108, %c0_109] : memref<1x256x128xbf16, #tpu.memory_space<vmem>>, vector<1x256x128xbf16>
      %182 = vector.shape_cast %181 : vector<1x256x128xbf16> to vector<256x128xbf16>
      %cst_110 = arith.constant dense<0.000000e+00> : vector<16x128xf32>
      %183 = tpu.matmul %180, %182, %cst_110 {dimension_numbers = #tpu.dot_dimension_numbers<[1], [0], [0], [1], [0, 0, 1, 1], [], []>} : vector<16x256xbf16>, vector<256x128xbf16>, vector<16x128xf32> -> vector<16x128xf32>
      %c0_111 = arith.constant 0 : index
      %c0_112 = arith.constant 0 : index
      %c0_113 = arith.constant 0 : index
      %184 = vector.load %arg6[%c0_111, %c0_112, %c0_113] : memref<1x1x128xf32, #tpu.memory_space<vmem>>, vector<1x1x128xf32>
      %185 = vector.shape_cast %184 : vector<1x1x128xf32> to vector<1x128xf32>
      %186 = vector.broadcast %185 : vector<1x128xf32> to vector<16x128xf32>
      %187 = arith.addf %183, %186 : vector<16x128xf32>
      %188 = math.tanh %187 : vector<16x128xf32>
      %c8_i32_114 = arith.constant 8 : i32
      %189 = arith.cmpi slt, %168, %c8_i32_114 : i32
      %190 = arith.select %189, %177, %162 : vector<16x128xf32>
      %c1_i32_115 = arith.constant 1 : i32
      %191 = arith.cmpi sge, %168, %c1_i32_115 : i32
      %c9_i32_116 = arith.constant 9 : i32
      %192 = arith.cmpi slt, %168, %c9_i32_116 : i32
      %193 = arith.andi %191, %192 : i1
      %194 = arith.select %193, %188, %166 : vector<16x128xf32>
      %c6_i32 = arith.constant 6 : i32
      %c9_i32_117 = arith.constant 9 : i32
      %195 = arith.muli %arg0, %c9_i32_117 : i32
      %196 = arith.addi %195, %c6_i32 : i32
      %c16_i32_118 = arith.constant 16 : i32
      %197 = arith.muli %c6_i32, %c16_i32_118 : i32
      %198 = tpu.assume_multiple %197, 16 : i32
      %199 = arith.index_cast %198 : i32 to index
      %c0_119 = arith.constant 0 : index
      %200 = vector.load %arg10[%199, %c0_119] : memref<144x128xf32, #tpu.memory_space<vmem>>, vector<16x128xf32>
      %201 = arith.truncf %190 : vector<16x128xf32> to vector<16x128xbf16>
      %c0_120 = arith.constant 0 : index
      %c0_121 = arith.constant 0 : index
      %202 = vector.load %arg3[%c0_120, %c0_121] : memref<128x128xbf16, #tpu.memory_space<vmem>>, vector<128x128xbf16>
      %cst_122 = arith.constant dense<0.000000e+00> : vector<16x128xf32>
      %203 = tpu.matmul %201, %202, %cst_122 {dimension_numbers = #tpu.dot_dimension_numbers<[1], [0], [0], [1], [0, 0, 1, 1], [], []>} : vector<16x128xbf16>, vector<128x128xbf16>, vector<16x128xf32> -> vector<16x128xf32>
      %204 = arith.addf %200, %203 : vector<16x128xf32>
      %205 = math.tanh %204 : vector<16x128xf32>
      %206 = arith.truncf %177 : vector<16x128xf32> to vector<16x128xbf16>
      %207 = arith.truncf %194 : vector<16x128xf32> to vector<16x128xbf16>
      %208 = tpu.concatenate %206, %207 in 1 : vector<16x128xbf16>, vector<16x128xbf16> -> vector<16x256xbf16>
      %c0_123 = arith.constant 0 : index
      %c0_124 = arith.constant 0 : index
      %c0_125 = arith.constant 0 : index
      %209 = vector.load %arg5[%c0_123, %c0_124, %c0_125] : memref<1x256x128xbf16, #tpu.memory_space<vmem>>, vector<1x256x128xbf16>
      %210 = vector.shape_cast %209 : vector<1x256x128xbf16> to vector<256x128xbf16>
      %cst_126 = arith.constant dense<0.000000e+00> : vector<16x128xf32>
      %211 = tpu.matmul %208, %210, %cst_126 {dimension_numbers = #tpu.dot_dimension_numbers<[1], [0], [0], [1], [0, 0, 1, 1], [], []>} : vector<16x256xbf16>, vector<256x128xbf16>, vector<16x128xf32> -> vector<16x128xf32>
      %c0_127 = arith.constant 0 : index
      %c0_128 = arith.constant 0 : index
      %c0_129 = arith.constant 0 : index
      %212 = vector.load %arg6[%c0_127, %c0_128, %c0_129] : memref<1x1x128xf32, #tpu.memory_space<vmem>>, vector<1x1x128xf32>
      %213 = vector.shape_cast %212 : vector<1x1x128xf32> to vector<1x128xf32>
      %214 = vector.broadcast %213 : vector<1x128xf32> to vector<16x128xf32>
      %215 = arith.addf %211, %214 : vector<16x128xf32>
      %216 = math.tanh %215 : vector<16x128xf32>
      %c8_i32_130 = arith.constant 8 : i32
      %217 = arith.cmpi slt, %196, %c8_i32_130 : i32
      %218 = arith.select %217, %205, %190 : vector<16x128xf32>
      %c1_i32_131 = arith.constant 1 : i32
      %219 = arith.cmpi sge, %196, %c1_i32_131 : i32
      %c9_i32_132 = arith.constant 9 : i32
      %220 = arith.cmpi slt, %196, %c9_i32_132 : i32
      %221 = arith.andi %219, %220 : i1
      %222 = arith.select %221, %216, %194 : vector<16x128xf32>
      %c7_i32 = arith.constant 7 : i32
      %c9_i32_133 = arith.constant 9 : i32
      %223 = arith.muli %arg0, %c9_i32_133 : i32
      %224 = arith.addi %223, %c7_i32 : i32
      %c16_i32_134 = arith.constant 16 : i32
      %225 = arith.muli %c7_i32, %c16_i32_134 : i32
      %226 = tpu.assume_multiple %225, 16 : i32
      %227 = arith.index_cast %226 : i32 to index
      %c0_135 = arith.constant 0 : index
      %228 = vector.load %arg10[%227, %c0_135] : memref<144x128xf32, #tpu.memory_space<vmem>>, vector<16x128xf32>
      %229 = arith.truncf %218 : vector<16x128xf32> to vector<16x128xbf16>
      %c0_136 = arith.constant 0 : index
      %c0_137 = arith.constant 0 : index
      %230 = vector.load %arg3[%c0_136, %c0_137] : memref<128x128xbf16, #tpu.memory_space<vmem>>, vector<128x128xbf16>
      %cst_138 = arith.constant dense<0.000000e+00> : vector<16x128xf32>
      %231 = tpu.matmul %229, %230, %cst_138 {dimension_numbers = #tpu.dot_dimension_numbers<[1], [0], [0], [1], [0, 0, 1, 1], [], []>} : vector<16x128xbf16>, vector<128x128xbf16>, vector<16x128xf32> -> vector<16x128xf32>
      %232 = arith.addf %228, %231 : vector<16x128xf32>
      %233 = math.tanh %232 : vector<16x128xf32>
      %234 = arith.truncf %205 : vector<16x128xf32> to vector<16x128xbf16>
      %235 = arith.truncf %222 : vector<16x128xf32> to vector<16x128xbf16>
      %236 = tpu.concatenate %234, %235 in 1 : vector<16x128xbf16>, vector<16x128xbf16> -> vector<16x256xbf16>
      %c0_139 = arith.constant 0 : index
      %c0_140 = arith.constant 0 : index
      %c0_141 = arith.constant 0 : index
      %237 = vector.load %arg5[%c0_139, %c0_140, %c0_141] : memref<1x256x128xbf16, #tpu.memory_space<vmem>>, vector<1x256x128xbf16>
      %238 = vector.shape_cast %237 : vector<1x256x128xbf16> to vector<256x128xbf16>
      %cst_142 = arith.constant dense<0.000000e+00> : vector<16x128xf32>
      %239 = tpu.matmul %236, %238, %cst_142 {dimension_numbers = #tpu.dot_dimension_numbers<[1], [0], [0], [1], [0, 0, 1, 1], [], []>} : vector<16x256xbf16>, vector<256x128xbf16>, vector<16x128xf32> -> vector<16x128xf32>
      %c0_143 = arith.constant 0 : index
      %c0_144 = arith.constant 0 : index
      %c0_145 = arith.constant 0 : index
      %240 = vector.load %arg6[%c0_143, %c0_144, %c0_145] : memref<1x1x128xf32, #tpu.memory_space<vmem>>, vector<1x1x128xf32>
      %241 = vector.shape_cast %240 : vector<1x1x128xf32> to vector<1x128xf32>
      %242 = vector.broadcast %241 : vector<1x128xf32> to vector<16x128xf32>
      %243 = arith.addf %239, %242 : vector<16x128xf32>
      %244 = math.tanh %243 : vector<16x128xf32>
      %c8_i32_146 = arith.constant 8 : i32
      %245 = arith.cmpi slt, %224, %c8_i32_146 : i32
      %246 = arith.select %245, %233, %218 : vector<16x128xf32>
      %c1_i32_147 = arith.constant 1 : i32
      %247 = arith.cmpi sge, %224, %c1_i32_147 : i32
      %c9_i32_148 = arith.constant 9 : i32
      %248 = arith.cmpi slt, %224, %c9_i32_148 : i32
      %249 = arith.andi %247, %248 : i1
      %250 = arith.select %249, %244, %222 : vector<16x128xf32>
      %c8_i32_149 = arith.constant 8 : i32
      %c9_i32_150 = arith.constant 9 : i32
      %251 = arith.muli %arg0, %c9_i32_150 : i32
      %252 = arith.addi %251, %c8_i32_149 : i32
      %c16_i32_151 = arith.constant 16 : i32
      %253 = arith.muli %c8_i32_149, %c16_i32_151 : i32
      %254 = tpu.assume_multiple %253, 16 : i32
      %255 = arith.index_cast %254 : i32 to index
      %c0_152 = arith.constant 0 : index
      %256 = vector.load %arg10[%255, %c0_152] : memref<144x128xf32, #tpu.memory_space<vmem>>, vector<16x128xf32>
      %257 = arith.truncf %246 : vector<16x128xf32> to vector<16x128xbf16>
      %c0_153 = arith.constant 0 : index
      %c0_154 = arith.constant 0 : index
      %258 = vector.load %arg3[%c0_153, %c0_154] : memref<128x128xbf16, #tpu.memory_space<vmem>>, vector<128x128xbf16>
      %cst_155 = arith.constant dense<0.000000e+00> : vector<16x128xf32>
      %259 = tpu.matmul %257, %258, %cst_155 {dimension_numbers = #tpu.dot_dimension_numbers<[1], [0], [0], [1], [0, 0, 1, 1], [], []>} : vector<16x128xbf16>, vector<128x128xbf16>, vector<16x128xf32> -> vector<16x128xf32>
      %260 = arith.addf %256, %259 : vector<16x128xf32>
      %261 = math.tanh %260 : vector<16x128xf32>
      %262 = arith.truncf %233 : vector<16x128xf32> to vector<16x128xbf16>
      %263 = arith.truncf %250 : vector<16x128xf32> to vector<16x128xbf16>
      %264 = tpu.concatenate %262, %263 in 1 : vector<16x128xbf16>, vector<16x128xbf16> -> vector<16x256xbf16>
      %c0_156 = arith.constant 0 : index
      %c0_157 = arith.constant 0 : index
      %c0_158 = arith.constant 0 : index
      %265 = vector.load %arg5[%c0_156, %c0_157, %c0_158] : memref<1x256x128xbf16, #tpu.memory_space<vmem>>, vector<1x256x128xbf16>
      %266 = vector.shape_cast %265 : vector<1x256x128xbf16> to vector<256x128xbf16>
      %cst_159 = arith.constant dense<0.000000e+00> : vector<16x128xf32>
      %267 = tpu.matmul %264, %266, %cst_159 {dimension_numbers = #tpu.dot_dimension_numbers<[1], [0], [0], [1], [0, 0, 1, 1], [], []>} : vector<16x256xbf16>, vector<256x128xbf16>, vector<16x128xf32> -> vector<16x128xf32>
      %c0_160 = arith.constant 0 : index
      %c0_161 = arith.constant 0 : index
      %c0_162 = arith.constant 0 : index
      %268 = vector.load %arg6[%c0_160, %c0_161, %c0_162] : memref<1x1x128xf32, #tpu.memory_space<vmem>>, vector<1x1x128xf32>
      %269 = vector.shape_cast %268 : vector<1x1x128xf32> to vector<1x128xf32>
      %270 = vector.broadcast %269 : vector<1x128xf32> to vector<16x128xf32>
      %271 = arith.addf %267, %270 : vector<16x128xf32>
      %272 = math.tanh %271 : vector<16x128xf32>
      %c8_i32_163 = arith.constant 8 : i32
      %273 = arith.cmpi slt, %252, %c8_i32_163 : i32
      %274 = arith.select %273, %261, %246 : vector<16x128xf32>
      %c1_i32_164 = arith.constant 1 : i32
      %275 = arith.cmpi sge, %252, %c1_i32_164 : i32
      %c9_i32_165 = arith.constant 9 : i32
      %276 = arith.cmpi slt, %252, %c9_i32_165 : i32
      %277 = arith.andi %275, %276 : i1
      %278 = arith.select %277, %272, %250 : vector<16x128xf32>
      %c9_i32_166 = arith.constant 9 : i32
      %c0_167 = arith.constant 0 : index
      %c0_168 = arith.constant 0 : index
      %279 = vector.load %arg11[%c0_167, %c0_168] : memref<16x128xf32, #tpu.memory_space<vmem>>, vector<16x128xf32>
      tpu.vector_store %arg11[%c0_167, %c0_168], %274 {strides = array<i32>} : memref<16x128xf32, #tpu.memory_space<vmem>>, vector<16x128xf32>,
      %c0_169 = arith.constant 0 : index
      %c0_170 = arith.constant 0 : index
      %280 = vector.load %arg12[%c0_169, %c0_170] : memref<16x128xf32, #tpu.memory_space<vmem>>, vector<16x128xf32>
      tpu.vector_store %arg12[%c0_169, %c0_170], %278 {strides = array<i32>} : memref<16x128xf32, #tpu.memory_space<vmem>>, vector<16x128xf32>,
      %c0_171 = arith.constant 0 : index
      %c0_172 = arith.constant 0 : index
      %281 = vector.load %arg13[%c0_171, %c0_172] : memref<16x128xf32, #tpu.memory_space<vmem>>, vector<16x128xf32>
      tpu.vector_store %arg13[%c0_171, %c0_172], %261 {strides = array<i32>} : memref<16x128xf32, #tpu.memory_space<vmem>>, vector<16x128xf32>,
    } else {
    }
    %true = arith.constant true
    %18 = arith.xori %15, %true : i1
    %19 = arith.extui %18 : i1 to i32
    %c0_i32_11 = arith.constant 0 : i32
    %20 = arith.cmpi ne, %19, %c0_i32_11 : i32
    scf.if %20 {
      %c0_14 = arith.constant 0 : index
      %c0_15 = arith.constant 0 : index
      %24 = vector.load %arg11[%c0_14, %c0_15] : memref<16x128xf32, #tpu.memory_space<vmem>>, vector<16x128xf32>
      %c0_16 = arith.constant 0 : index
      %c0_17 = arith.constant 0 : index
      %25 = vector.load %arg12[%c0_16, %c0_17] : memref<16x128xf32, #tpu.memory_space<vmem>>, vector<16x128xf32>
      %c0_18 = arith.constant 0 : index
      %c0_19 = arith.constant 0 : index
      %26 = vector.load %arg13[%c0_18, %c0_19] : memref<16x128xf32, #tpu.memory_space<vmem>>, vector<16x128xf32>
      %c0_i32_20 = arith.constant 0 : i32
      %c16_i32 = arith.constant 16 : i32
      %27 = arith.muli %c0_i32_20, %c16_i32 : i32
      %28 = tpu.assume_multiple %27, 16 : i32
      %29 = arith.index_cast %28 : i32 to index
      %c0_21 = arith.constant 0 : index
      %30 = vector.load %arg10[%29, %c0_21] : memref<144x128xf32, #tpu.memory_space<vmem>>, vector<16x128xf32>
      %31 = arith.truncf %24 : vector<16x128xf32> to vector<16x128xbf16>
      %c0_22 = arith.constant 0 : index
      %c0_23 = arith.constant 0 : index
      %32 = vector.load %arg3[%c0_22, %c0_23] : memref<128x128xbf16, #tpu.memory_space<vmem>>, vector<128x128xbf16>
      %cst_24 = arith.constant dense<0.000000e+00> : vector<16x128xf32>
      %33 = tpu.matmul %31, %32, %cst_24 {dimension_numbers = #tpu.dot_dimension_numbers<[1], [0], [0], [1], [0, 0, 1, 1], [], []>} : vector<16x128xbf16>, vector<128x128xbf16>, vector<16x128xf32> -> vector<16x128xf32>
      %34 = arith.addf %30, %33 : vector<16x128xf32>
      %35 = math.tanh %34 : vector<16x128xf32>
      %36 = arith.truncf %26 : vector<16x128xf32> to vector<16x128xbf16>
      %37 = arith.truncf %25 : vector<16x128xf32> to vector<16x128xbf16>
      %38 = tpu.concatenate %36, %37 in 1 : vector<16x128xbf16>, vector<16x128xbf16> -> vector<16x256xbf16>
      %c0_25 = arith.constant 0 : index
      %c0_26 = arith.constant 0 : index
      %c0_27 = arith.constant 0 : index
      %39 = vector.load %arg5[%c0_25, %c0_26, %c0_27] : memref<1x256x128xbf16, #tpu.memory_space<vmem>>, vector<1x256x128xbf16>
      %40 = vector.shape_cast %39 : vector<1x256x128xbf16> to vector<256x128xbf16>
      %cst_28 = arith.constant dense<0.000000e+00> : vector<16x128xf32>
      %41 = tpu.matmul %38, %40, %cst_28 {dimension_numbers = #tpu.dot_dimension_numbers<[1], [0], [0], [1], [0, 0, 1, 1], [], []>} : vector<16x256xbf16>, vector<256x128xbf16>, vector<16x128xf32> -> vector<16x128xf32>
      %c0_29 = arith.constant 0 : index
      %c0_30 = arith.constant 0 : index
      %c0_31 = arith.constant 0 : index
      %42 = vector.load %arg6[%c0_29, %c0_30, %c0_31] : memref<1x1x128xf32, #tpu.memory_space<vmem>>, vector<1x1x128xf32>
      %43 = vector.shape_cast %42 : vector<1x1x128xf32> to vector<1x128xf32>
      %44 = vector.broadcast %43 : vector<1x128xf32> to vector<16x128xf32>
      %45 = arith.addf %41, %44 : vector<16x128xf32>
      %46 = math.tanh %45 : vector<16x128xf32>
      %c1_i32_32 = arith.constant 1 : i32
      %c16_i32_33 = arith.constant 16 : i32
      %47 = arith.muli %c1_i32_32, %c16_i32_33 : i32
      %48 = tpu.assume_multiple %47, 16 : i32
      %49 = arith.index_cast %48 : i32 to index
      %c0_34 = arith.constant 0 : index
      %50 = vector.load %arg10[%49, %c0_34] : memref<144x128xf32, #tpu.memory_space<vmem>>, vector<16x128xf32>
      %51 = arith.truncf %35 : vector<16x128xf32> to vector<16x128xbf16>
      %c0_35 = arith.constant 0 : index
      %c0_36 = arith.constant 0 : index
      %52 = vector.load %arg3[%c0_35, %c0_36] : memref<128x128xbf16, #tpu.memory_space<vmem>>, vector<128x128xbf16>
      %cst_37 = arith.constant dense<0.000000e+00> : vector<16x128xf32>
      %53 = tpu.matmul %51, %52, %cst_37 {dimension_numbers = #tpu.dot_dimension_numbers<[1], [0], [0], [1], [0, 0, 1, 1], [], []>} : vector<16x128xbf16>, vector<128x128xbf16>, vector<16x128xf32> -> vector<16x128xf32>
      %54 = arith.addf %50, %53 : vector<16x128xf32>
      %55 = math.tanh %54 : vector<16x128xf32>
      %56 = arith.truncf %35 : vector<16x128xf32> to vector<16x128xbf16>
      %57 = arith.truncf %46 : vector<16x128xf32> to vector<16x128xbf16>
      %58 = tpu.concatenate %56, %57 in 1 : vector<16x128xbf16>, vector<16x128xbf16> -> vector<16x256xbf16>
      %c0_38 = arith.constant 0 : index
      %c0_39 = arith.constant 0 : index
      %c0_40 = arith.constant 0 : index
      %59 = vector.load %arg5[%c0_38, %c0_39, %c0_40] : memref<1x256x128xbf16, #tpu.memory_space<vmem>>, vector<1x256x128xbf16>
      %60 = vector.shape_cast %59 : vector<1x256x128xbf16> to vector<256x128xbf16>
      %cst_41 = arith.constant dense<0.000000e+00> : vector<16x128xf32>
      %61 = tpu.matmul %58, %60, %cst_41 {dimension_numbers = #tpu.dot_dimension_numbers<[1], [0], [0], [1], [0, 0, 1, 1], [], []>} : vector<16x256xbf16>, vector<256x128xbf16>, vector<16x128xf32> -> vector<16x128xf32>
      %c0_42 = arith.constant 0 : index
      %c0_43 = arith.constant 0 : index
      %c0_44 = arith.constant 0 : index
      %62 = vector.load %arg6[%c0_42, %c0_43, %c0_44] : memref<1x1x128xf32, #tpu.memory_space<vmem>>, vector<1x1x128xf32>
      %63 = vector.shape_cast %62 : vector<1x1x128xf32> to vector<1x128xf32>
      %64 = vector.broadcast %63 : vector<1x128xf32> to vector<16x128xf32>
      %65 = arith.addf %61, %64 : vector<16x128xf32>
      %66 = math.tanh %65 : vector<16x128xf32>
      %c2_i32 = arith.constant 2 : i32
      %c16_i32_45 = arith.constant 16 : i32
      %67 = arith.muli %c2_i32, %c16_i32_45 : i32
      %68 = tpu.assume_multiple %67, 16 : i32
      %69 = arith.index_cast %68 : i32 to index
      %c0_46 = arith.constant 0 : index
      %70 = vector.load %arg10[%69, %c0_46] : memref<144x128xf32, #tpu.memory_space<vmem>>, vector<16x128xf32>
      %71 = arith.truncf %55 : vector<16x128xf32> to vector<16x128xbf16>
      %c0_47 = arith.constant 0 : index
      %c0_48 = arith.constant 0 : index
      %72 = vector.load %arg3[%c0_47, %c0_48] : memref<128x128xbf16, #tpu.memory_space<vmem>>, vector<128x128xbf16>
      %cst_49 = arith.constant dense<0.000000e+00> : vector<16x128xf32>
      %73 = tpu.matmul %71, %72, %cst_49 {dimension_numbers = #tpu.dot_dimension_numbers<[1], [0], [0], [1], [0, 0, 1, 1], [], []>} : vector<16x128xbf16>, vector<128x128xbf16>, vector<16x128xf32> -> vector<16x128xf32>
      %74 = arith.addf %70, %73 : vector<16x128xf32>
      %75 = math.tanh %74 : vector<16x128xf32>
      %76 = arith.truncf %55 : vector<16x128xf32> to vector<16x128xbf16>
      %77 = arith.truncf %66 : vector<16x128xf32> to vector<16x128xbf16>
      %78 = tpu.concatenate %76, %77 in 1 : vector<16x128xbf16>, vector<16x128xbf16> -> vector<16x256xbf16>
      %c0_50 = arith.constant 0 : index
      %c0_51 = arith.constant 0 : index
      %c0_52 = arith.constant 0 : index
      %79 = vector.load %arg5[%c0_50, %c0_51, %c0_52] : memref<1x256x128xbf16, #tpu.memory_space<vmem>>, vector<1x256x128xbf16>
      %80 = vector.shape_cast %79 : vector<1x256x128xbf16> to vector<256x128xbf16>
      %cst_53 = arith.constant dense<0.000000e+00> : vector<16x128xf32>
      %81 = tpu.matmul %78, %80, %cst_53 {dimension_numbers = #tpu.dot_dimension_numbers<[1], [0], [0], [1], [0, 0, 1, 1], [], []>} : vector<16x256xbf16>, vector<256x128xbf16>, vector<16x128xf32> -> vector<16x128xf32>
      %c0_54 = arith.constant 0 : index
      %c0_55 = arith.constant 0 : index
      %c0_56 = arith.constant 0 : index
      %82 = vector.load %arg6[%c0_54, %c0_55, %c0_56] : memref<1x1x128xf32, #tpu.memory_space<vmem>>, vector<1x1x128xf32>
      %83 = vector.shape_cast %82 : vector<1x1x128xf32> to vector<1x128xf32>
      %84 = vector.broadcast %83 : vector<1x128xf32> to vector<16x128xf32>
      %85 = arith.addf %81, %84 : vector<16x128xf32>
      %86 = math.tanh %85 : vector<16x128xf32>
      %c3_i32 = arith.constant 3 : i32
      %c16_i32_57 = arith.constant 16 : i32
      %87 = arith.muli %c3_i32, %c16_i32_57 : i32
      %88 = tpu.assume_multiple %87, 16 : i32
      %89 = arith.index_cast %88 : i32 to index
      %c0_58 = arith.constant 0 : index
      %90 = vector.load %arg10[%89, %c0_58] : memref<144x128xf32, #tpu.memory_space<vmem>>, vector<16x128xf32>
      %91 = arith.truncf %75 : vector<16x128xf32> to vector<16x128xbf16>
      %c0_59 = arith.constant 0 : index
      %c0_60 = arith.constant 0 : index
      %92 = vector.load %arg3[%c0_59, %c0_60] : memref<128x128xbf16, #tpu.memory_space<vmem>>, vector<128x128xbf16>
      %cst_61 = arith.constant dense<0.000000e+00> : vector<16x128xf32>
      %93 = tpu.matmul %91, %92, %cst_61 {dimension_numbers = #tpu.dot_dimension_numbers<[1], [0], [0], [1], [0, 0, 1, 1], [], []>} : vector<16x128xbf16>, vector<128x128xbf16>, vector<16x128xf32> -> vector<16x128xf32>
      %94 = arith.addf %90, %93 : vector<16x128xf32>
      %95 = math.tanh %94 : vector<16x128xf32>
      %96 = arith.truncf %75 : vector<16x128xf32> to vector<16x128xbf16>
      %97 = arith.truncf %86 : vector<16x128xf32> to vector<16x128xbf16>
      %98 = tpu.concatenate %96, %97 in 1 : vector<16x128xbf16>, vector<16x128xbf16> -> vector<16x256xbf16>
      %c0_62 = arith.constant 0 : index
      %c0_63 = arith.constant 0 : index
      %c0_64 = arith.constant 0 : index
      %99 = vector.load %arg5[%c0_62, %c0_63, %c0_64] : memref<1x256x128xbf16, #tpu.memory_space<vmem>>, vector<1x256x128xbf16>
      %100 = vector.shape_cast %99 : vector<1x256x128xbf16> to vector<256x128xbf16>
      %cst_65 = arith.constant dense<0.000000e+00> : vector<16x128xf32>
      %101 = tpu.matmul %98, %100, %cst_65 {dimension_numbers = #tpu.dot_dimension_numbers<[1], [0], [0], [1], [0, 0, 1, 1], [], []>} : vector<16x256xbf16>, vector<256x128xbf16>, vector<16x128xf32> -> vector<16x128xf32>
      %c0_66 = arith.constant 0 : index
      %c0_67 = arith.constant 0 : index
      %c0_68 = arith.constant 0 : index
      %102 = vector.load %arg6[%c0_66, %c0_67, %c0_68] : memref<1x1x128xf32, #tpu.memory_space<vmem>>, vector<1x1x128xf32>
      %103 = vector.shape_cast %102 : vector<1x1x128xf32> to vector<1x128xf32>
      %104 = vector.broadcast %103 : vector<1x128xf32> to vector<16x128xf32>
      %105 = arith.addf %101, %104 : vector<16x128xf32>
      %106 = math.tanh %105 : vector<16x128xf32>
      %c4_i32 = arith.constant 4 : i32
      %c16_i32_69 = arith.constant 16 : i32
      %107 = arith.muli %c4_i32, %c16_i32_69 : i32
      %108 = tpu.assume_multiple %107, 16 : i32
      %109 = arith.index_cast %108 : i32 to index
      %c0_70 = arith.constant 0 : index
      %110 = vector.load %arg10[%109, %c0_70] : memref<144x128xf32, #tpu.memory_space<vmem>>, vector<16x128xf32>
      %111 = arith.truncf %95 : vector<16x128xf32> to vector<16x128xbf16>
      %c0_71 = arith.constant 0 : index
      %c0_72 = arith.constant 0 : index
      %112 = vector.load %arg3[%c0_71, %c0_72] : memref<128x128xbf16, #tpu.memory_space<vmem>>, vector<128x128xbf16>
      %cst_73 = arith.constant dense<0.000000e+00> : vector<16x128xf32>
      %113 = tpu.matmul %111, %112, %cst_73 {dimension_numbers = #tpu.dot_dimension_numbers<[1], [0], [0], [1], [0, 0, 1, 1], [], []>} : vector<16x128xbf16>, vector<128x128xbf16>, vector<16x128xf32> -> vector<16x128xf32>
      %114 = arith.addf %110, %113 : vector<16x128xf32>
      %115 = math.tanh %114 : vector<16x128xf32>
      %116 = arith.truncf %95 : vector<16x128xf32> to vector<16x128xbf16>
      %117 = arith.truncf %106 : vector<16x128xf32> to vector<16x128xbf16>
      %118 = tpu.concatenate %116, %117 in 1 : vector<16x128xbf16>, vector<16x128xbf16> -> vector<16x256xbf16>
      %c0_74 = arith.constant 0 : index
      %c0_75 = arith.constant 0 : index
      %c0_76 = arith.constant 0 : index
      %119 = vector.load %arg5[%c0_74, %c0_75, %c0_76] : memref<1x256x128xbf16, #tpu.memory_space<vmem>>, vector<1x256x128xbf16>
      %120 = vector.shape_cast %119 : vector<1x256x128xbf16> to vector<256x128xbf16>
      %cst_77 = arith.constant dense<0.000000e+00> : vector<16x128xf32>
      %121 = tpu.matmul %118, %120, %cst_77 {dimension_numbers = #tpu.dot_dimension_numbers<[1], [0], [0], [1], [0, 0, 1, 1], [], []>} : vector<16x256xbf16>, vector<256x128xbf16>, vector<16x128xf32> -> vector<16x128xf32>
      %c0_78 = arith.constant 0 : index
      %c0_79 = arith.constant 0 : index
      %c0_80 = arith.constant 0 : index
      %122 = vector.load %arg6[%c0_78, %c0_79, %c0_80] : memref<1x1x128xf32, #tpu.memory_space<vmem>>, vector<1x1x128xf32>
      %123 = vector.shape_cast %122 : vector<1x1x128xf32> to vector<1x128xf32>
      %124 = vector.broadcast %123 : vector<1x128xf32> to vector<16x128xf32>
      %125 = arith.addf %121, %124 : vector<16x128xf32>
      %126 = math.tanh %125 : vector<16x128xf32>
      %c5_i32 = arith.constant 5 : i32
      %c16_i32_81 = arith.constant 16 : i32
      %127 = arith.muli %c5_i32, %c16_i32_81 : i32
      %128 = tpu.assume_multiple %127, 16 : i32
      %129 = arith.index_cast %128 : i32 to index
      %c0_82 = arith.constant 0 : index
      %130 = vector.load %arg10[%129, %c0_82] : memref<144x128xf32, #tpu.memory_space<vmem>>, vector<16x128xf32>
      %131 = arith.truncf %115 : vector<16x128xf32> to vector<16x128xbf16>
      %c0_83 = arith.constant 0 : index
      %c0_84 = arith.constant 0 : index
      %132 = vector.load %arg3[%c0_83, %c0_84] : memref<128x128xbf16, #tpu.memory_space<vmem>>, vector<128x128xbf16>
      %cst_85 = arith.constant dense<0.000000e+00> : vector<16x128xf32>
      %133 = tpu.matmul %131, %132, %cst_85 {dimension_numbers = #tpu.dot_dimension_numbers<[1], [0], [0], [1], [0, 0, 1, 1], [], []>} : vector<16x128xbf16>, vector<128x128xbf16>, vector<16x128xf32> -> vector<16x128xf32>
      %134 = arith.addf %130, %133 : vector<16x128xf32>
      %135 = math.tanh %134 : vector<16x128xf32>
      %136 = arith.truncf %115 : vector<16x128xf32> to vector<16x128xbf16>
      %137 = arith.truncf %126 : vector<16x128xf32> to vector<16x128xbf16>
      %138 = tpu.concatenate %136, %137 in 1 : vector<16x128xbf16>, vector<16x128xbf16> -> vector<16x256xbf16>
      %c0_86 = arith.constant 0 : index
      %c0_87 = arith.constant 0 : index
      %c0_88 = arith.constant 0 : index
      %139 = vector.load %arg5[%c0_86, %c0_87, %c0_88] : memref<1x256x128xbf16, #tpu.memory_space<vmem>>, vector<1x256x128xbf16>
      %140 = vector.shape_cast %139 : vector<1x256x128xbf16> to vector<256x128xbf16>
      %cst_89 = arith.constant dense<0.000000e+00> : vector<16x128xf32>
      %141 = tpu.matmul %138, %140, %cst_89 {dimension_numbers = #tpu.dot_dimension_numbers<[1], [0], [0], [1], [0, 0, 1, 1], [], []>} : vector<16x256xbf16>, vector<256x128xbf16>, vector<16x128xf32> -> vector<16x128xf32>
      %c0_90 = arith.constant 0 : index
      %c0_91 = arith.constant 0 : index
      %c0_92 = arith.constant 0 : index
      %142 = vector.load %arg6[%c0_90, %c0_91, %c0_92] : memref<1x1x128xf32, #tpu.memory_space<vmem>>, vector<1x1x128xf32>
      %143 = vector.shape_cast %142 : vector<1x1x128xf32> to vector<1x128xf32>
      %144 = vector.broadcast %143 : vector<1x128xf32> to vector<16x128xf32>
      %145 = arith.addf %141, %144 : vector<16x128xf32>
      %146 = math.tanh %145 : vector<16x128xf32>
      %c6_i32 = arith.constant 6 : i32
      %c16_i32_93 = arith.constant 16 : i32
      %147 = arith.muli %c6_i32, %c16_i32_93 : i32
      %148 = tpu.assume_multiple %147, 16 : i32
      %149 = arith.index_cast %148 : i32 to index
      %c0_94 = arith.constant 0 : index
      %150 = vector.load %arg10[%149, %c0_94] : memref<144x128xf32, #tpu.memory_space<vmem>>, vector<16x128xf32>
      %151 = arith.truncf %135 : vector<16x128xf32> to vector<16x128xbf16>
      %c0_95 = arith.constant 0 : index
      %c0_96 = arith.constant 0 : index
      %152 = vector.load %arg3[%c0_95, %c0_96] : memref<128x128xbf16, #tpu.memory_space<vmem>>, vector<128x128xbf16>
      %cst_97 = arith.constant dense<0.000000e+00> : vector<16x128xf32>
      %153 = tpu.matmul %151, %152, %cst_97 {dimension_numbers = #tpu.dot_dimension_numbers<[1], [0], [0], [1], [0, 0, 1, 1], [], []>} : vector<16x128xbf16>, vector<128x128xbf16>, vector<16x128xf32> -> vector<16x128xf32>
      %154 = arith.addf %150, %153 : vector<16x128xf32>
      %155 = math.tanh %154 : vector<16x128xf32>
      %156 = arith.truncf %135 : vector<16x128xf32> to vector<16x128xbf16>
      %157 = arith.truncf %146 : vector<16x128xf32> to vector<16x128xbf16>
      %158 = tpu.concatenate %156, %157 in 1 : vector<16x128xbf16>, vector<16x128xbf16> -> vector<16x256xbf16>
      %c0_98 = arith.constant 0 : index
      %c0_99 = arith.constant 0 : index
      %c0_100 = arith.constant 0 : index
      %159 = vector.load %arg5[%c0_98, %c0_99, %c0_100] : memref<1x256x128xbf16, #tpu.memory_space<vmem>>, vector<1x256x128xbf16>
      %160 = vector.shape_cast %159 : vector<1x256x128xbf16> to vector<256x128xbf16>
      %cst_101 = arith.constant dense<0.000000e+00> : vector<16x128xf32>
      %161 = tpu.matmul %158, %160, %cst_101 {dimension_numbers = #tpu.dot_dimension_numbers<[1], [0], [0], [1], [0, 0, 1, 1], [], []>} : vector<16x256xbf16>, vector<256x128xbf16>, vector<16x128xf32> -> vector<16x128xf32>
      %c0_102 = arith.constant 0 : index
      %c0_103 = arith.constant 0 : index
      %c0_104 = arith.constant 0 : index
      %162 = vector.load %arg6[%c0_102, %c0_103, %c0_104] : memref<1x1x128xf32, #tpu.memory_space<vmem>>, vector<1x1x128xf32>
      %163 = vector.shape_cast %162 : vector<1x1x128xf32> to vector<1x128xf32>
      %164 = vector.broadcast %163 : vector<1x128xf32> to vector<16x128xf32>
      %165 = arith.addf %161, %164 : vector<16x128xf32>
      %166 = math.tanh %165 : vector<16x128xf32>
      %c7_i32 = arith.constant 7 : i32
      %c16_i32_105 = arith.constant 16 : i32
      %167 = arith.muli %c7_i32, %c16_i32_105 : i32
      %168 = tpu.assume_multiple %167, 16 : i32
      %169 = arith.index_cast %168 : i32 to index
      %c0_106 = arith.constant 0 : index
      %170 = vector.load %arg10[%169, %c0_106] : memref<144x128xf32, #tpu.memory_space<vmem>>, vector<16x128xf32>
      %171 = arith.truncf %155 : vector<16x128xf32> to vector<16x128xbf16>
      %c0_107 = arith.constant 0 : index
      %c0_108 = arith.constant 0 : index
      %172 = vector.load %arg3[%c0_107, %c0_108] : memref<128x128xbf16, #tpu.memory_space<vmem>>, vector<128x128xbf16>
      %cst_109 = arith.constant dense<0.000000e+00> : vector<16x128xf32>
      %173 = tpu.matmul %171, %172, %cst_109 {dimension_numbers = #tpu.dot_dimension_numbers<[1], [0], [0], [1], [0, 0, 1, 1], [], []>} : vector<16x128xbf16>, vector<128x128xbf16>, vector<16x128xf32> -> vector<16x128xf32>
      %174 = arith.addf %170, %173 : vector<16x128xf32>
      %175 = math.tanh %174 : vector<16x128xf32>
      %176 = arith.truncf %155 : vector<16x128xf32> to vector<16x128xbf16>
      %177 = arith.truncf %166 : vector<16x128xf32> to vector<16x128xbf16>
      %178 = tpu.concatenate %176, %177 in 1 : vector<16x128xbf16>, vector<16x128xbf16> -> vector<16x256xbf16>
      %c0_110 = arith.constant 0 : index
      %c0_111 = arith.constant 0 : index
      %c0_112 = arith.constant 0 : index
      %179 = vector.load %arg5[%c0_110, %c0_111, %c0_112] : memref<1x256x128xbf16, #tpu.memory_space<vmem>>, vector<1x256x128xbf16>
      %180 = vector.shape_cast %179 : vector<1x256x128xbf16> to vector<256x128xbf16>
      %cst_113 = arith.constant dense<0.000000e+00> : vector<16x128xf32>
      %181 = tpu.matmul %178, %180, %cst_113 {dimension_numbers = #tpu.dot_dimension_numbers<[1], [0], [0], [1], [0, 0, 1, 1], [], []>} : vector<16x256xbf16>, vector<256x128xbf16>, vector<16x128xf32> -> vector<16x128xf32>
      %c0_114 = arith.constant 0 : index
      %c0_115 = arith.constant 0 : index
      %c0_116 = arith.constant 0 : index
      %182 = vector.load %arg6[%c0_114, %c0_115, %c0_116] : memref<1x1x128xf32, #tpu.memory_space<vmem>>, vector<1x1x128xf32>
      %183 = vector.shape_cast %182 : vector<1x1x128xf32> to vector<1x128xf32>
      %184 = vector.broadcast %183 : vector<1x128xf32> to vector<16x128xf32>
      %185 = arith.addf %181, %184 : vector<16x128xf32>
      %186 = math.tanh %185 : vector<16x128xf32>
      %c8_i32_117 = arith.constant 8 : i32
      %c16_i32_118 = arith.constant 16 : i32
      %187 = arith.muli %c8_i32_117, %c16_i32_118 : i32
      %188 = tpu.assume_multiple %187, 16 : i32
      %189 = arith.index_cast %188 : i32 to index
      %c0_119 = arith.constant 0 : index
      %190 = vector.load %arg10[%189, %c0_119] : memref<144x128xf32, #tpu.memory_space<vmem>>, vector<16x128xf32>
      %191 = arith.truncf %175 : vector<16x128xf32> to vector<16x128xbf16>
      %c0_120 = arith.constant 0 : index
      %c0_121 = arith.constant 0 : index
      %192 = vector.load %arg3[%c0_120, %c0_121] : memref<128x128xbf16, #tpu.memory_space<vmem>>, vector<128x128xbf16>
      %cst_122 = arith.constant dense<0.000000e+00> : vector<16x128xf32>
      %193 = tpu.matmul %191, %192, %cst_122 {dimension_numbers = #tpu.dot_dimension_numbers<[1], [0], [0], [1], [0, 0, 1, 1], [], []>} : vector<16x128xbf16>, vector<128x128xbf16>, vector<16x128xf32> -> vector<16x128xf32>
      %194 = arith.addf %190, %193 : vector<16x128xf32>
      %195 = math.tanh %194 : vector<16x128xf32>
      %196 = arith.truncf %175 : vector<16x128xf32> to vector<16x128xbf16>
      %197 = arith.truncf %186 : vector<16x128xf32> to vector<16x128xbf16>
      %198 = tpu.concatenate %196, %197 in 1 : vector<16x128xbf16>, vector<16x128xbf16> -> vector<16x256xbf16>
      %c0_123 = arith.constant 0 : index
      %c0_124 = arith.constant 0 : index
      %c0_125 = arith.constant 0 : index
      %199 = vector.load %arg5[%c0_123, %c0_124, %c0_125] : memref<1x256x128xbf16, #tpu.memory_space<vmem>>, vector<1x256x128xbf16>
      %200 = vector.shape_cast %199 : vector<1x256x128xbf16> to vector<256x128xbf16>
      %cst_126 = arith.constant dense<0.000000e+00> : vector<16x128xf32>
      %201 = tpu.matmul %198, %200, %cst_126 {dimension_numbers = #tpu.dot_dimension_numbers<[1], [0], [0], [1], [0, 0, 1, 1], [], []>} : vector<16x256xbf16>, vector<256x128xbf16>, vector<16x128xf32> -> vector<16x128xf32>
      %c0_127 = arith.constant 0 : index
      %c0_128 = arith.constant 0 : index
      %c0_129 = arith.constant 0 : index
      %202 = vector.load %arg6[%c0_127, %c0_128, %c0_129] : memref<1x1x128xf32, #tpu.memory_space<vmem>>, vector<1x1x128xf32>
      %203 = vector.shape_cast %202 : vector<1x1x128xf32> to vector<1x128xf32>
      %204 = vector.broadcast %203 : vector<1x128xf32> to vector<16x128xf32>
      %205 = arith.addf %201, %204 : vector<16x128xf32>
      %206 = math.tanh %205 : vector<16x128xf32>
      %c9_i32_130 = arith.constant 9 : i32
      %c0_131 = arith.constant 0 : index
      %c0_132 = arith.constant 0 : index
      %207 = vector.load %arg11[%c0_131, %c0_132] : memref<16x128xf32, #tpu.memory_space<vmem>>, vector<16x128xf32>
      tpu.vector_store %arg11[%c0_131, %c0_132], %195 {strides = array<i32>} : memref<16x128xf32, #tpu.memory_space<vmem>>, vector<16x128xf32>,
      %c0_133 = arith.constant 0 : index
      %c0_134 = arith.constant 0 : index
      %208 = vector.load %arg12[%c0_133, %c0_134] : memref<16x128xf32, #tpu.memory_space<vmem>>, vector<16x128xf32>
      tpu.vector_store %arg12[%c0_133, %c0_134], %206 {strides = array<i32>} : memref<16x128xf32, #tpu.memory_space<vmem>>, vector<16x128xf32>,
      %c0_135 = arith.constant 0 : index
      %c0_136 = arith.constant 0 : index
      %209 = vector.load %arg13[%c0_135, %c0_136] : memref<16x128xf32, #tpu.memory_space<vmem>>, vector<16x128xf32>
      tpu.vector_store %arg13[%c0_135, %c0_136], %195 {strides = array<i32>} : memref<16x128xf32, #tpu.memory_space<vmem>>, vector<16x128xf32>,
    } else {
    }
    %c0_i32_12 = arith.constant 0 : i32
    %21 = arith.cmpi eq, %arg0, %c0_i32_12 : i32
    %22 = arith.extui %21 : i1 to i32
    %c0_i32_13 = arith.constant 0 : i32
    %23 = arith.cmpi ne, %22, %c0_i32_13 : i32
    scf.if %23 {
      %c0_14 = arith.constant 0 : index
      %c0_15 = arith.constant 0 : index
      %24 = vector.load %arg12[%c0_14, %c0_15] : memref<16x128xf32, #tpu.memory_space<vmem>>, vector<16x128xf32>
      %25 = arith.truncf %24 : vector<16x128xf32> to vector<16x128xbf16>
      %c0_16 = arith.constant 0 : index
      %c0_17 = arith.constant 0 : index
      %26 = vector.load %arg7[%c0_16, %c0_17] : memref<128x128xbf16, #tpu.memory_space<vmem>>, vector<128x128xbf16>
      %cst_18 = arith.constant dense<0.000000e+00> : vector<16x128xf32>
      %27 = tpu.matmul %25, %26, %cst_18 {dimension_numbers = #tpu.dot_dimension_numbers<[1], [0], [0], [1], [0, 0, 1, 1], [], []>} : vector<16x128xbf16>, vector<128x128xbf16>, vector<16x128xf32> -> vector<16x128xf32>
      %c0_19 = arith.constant 0 : index
      %c0_20 = arith.constant 0 : index
      %28 = vector.load %arg8[%c0_19, %c0_20] : memref<1x128xf32, #tpu.memory_space<vmem>>, vector<1x128xf32>
      %29 = vector.broadcast %28 : vector<1x128xf32> to vector<16x128xf32>
      %30 = arith.addf %27, %29 : vector<16x128xf32>
      %c0_21 = arith.constant 0 : index
      %c0_22 = arith.constant 0 : index
      %31 = vector.load %arg9[%c0_21, %c0_22] : memref<16x128xf32, #tpu.memory_space<vmem>>, vector<16x128xf32>
      tpu.vector_store %arg9[%c0_21, %c0_22], %30 {strides = array<i32>} : memref<16x128xf32, #tpu.memory_space<vmem>>, vector<16x128xf32>,
    } else {
    }
    return
  }
  func.func @transform_0(%arg0: i32) -> (i32, i32) {
    %c0_i32 = arith.constant 0 : i32
    %c0_i32_0 = arith.constant 0 : i32
    return %arg0, %c0_i32 : i32, i32
  }
  func.func @transform_1(%arg0: i32) -> (i32, i32) {
    %c0_i32 = arith.constant 0 : i32
    %c0_i32_0 = arith.constant 0 : i32
    %c0_i32_1 = arith.constant 0 : i32
    return %c0_i32, %c0_i32_0 : i32, i32
  }
  func.func @transform_2(%arg0: i32) -> (i32, i32) {
    %c0_i32 = arith.constant 0 : i32
    %c0_i32_0 = arith.constant 0 : i32
    %c0_i32_1 = arith.constant 0 : i32
    return %c0_i32, %c0_i32_0 : i32, i32
  }
  func.func @transform_3(%arg0: i32) -> (i32, i32) {
    %c0_i32 = arith.constant 0 : i32
    %c0_i32_0 = arith.constant 0 : i32
    %c0_i32_1 = arith.constant 0 : i32
    return %c0_i32, %c0_i32_0 : i32, i32
  }
  func.func @transform_4(%arg0: i32) -> (i32, i32, i32) {
    %c0_i32 = arith.constant 0 : i32
    %c0_i32_0 = arith.constant 0 : i32
    %c0_i32_1 = arith.constant 0 : i32
    %c0_i32_2 = arith.constant 0 : i32
    return %c0_i32, %c0_i32_0, %c0_i32_1 : i32, i32, i32
  }
  func.func @transform_5(%arg0: i32) -> (i32, i32, i32) {
    %c0_i32 = arith.constant 0 : i32
    %c0_i32_0 = arith.constant 0 : i32
    %c0_i32_1 = arith.constant 0 : i32
    %c0_i32_2 = arith.constant 0 : i32
    return %c0_i32, %c0_i32_0, %c0_i32_1 : i32, i32, i32
  }
  func.func @transform_6(%arg0: i32) -> (i32, i32) {
    %c0_i32 = arith.constant 0 : i32
    %c0_i32_0 = arith.constant 0 : i32
    %c0_i32_1 = arith.constant 0 : i32
    return %c0_i32, %c0_i32_0 : i32, i32
  }
  func.func @transform_7(%arg0: i32) -> (i32, i32) {
    %c0_i32 = arith.constant 0 : i32
    %c0_i32_0 = arith.constant 0 : i32
    %c0_i32_1 = arith.constant 0 : i32
    return %c0_i32, %c0_i32_0 : i32, i32
  }
  func.func @transform_8(%arg0: i32) -> (i32, i32) {
    %c0_i32 = arith.constant 0 : i32
    %c0_i32_0 = arith.constant 0 : i32
    %c0_i32_1 = arith.constant 0 : i32
    return %c0_i32, %c0_i32_0 : i32, i32
  }
}

</mosaic_0001>

<llo_original>
// kernel: tpu_custom_call.1
$region0: #{tpu_custom_call.1}
  #allocation0 [shape = 'u32[]', space=smem, size = 0x4, offset = 0x4, fixed_abs, tag = 'smem constant byte address 0x4 - core index']
  #allocation1 [shape = 'u32[72,128]{1,0:T(1,128)}', space=vmem, size = 0x9000, scoped, tag = 'internal scratch']
  #allocation2 [shape = 'f32[144,128]{1,0:T(8,128)}', space=vmem, size = 0x12000, scoped, tag = 'scratch operand']
  #allocation3 [shape = 'f32[16,128]{1,0:T(8,128)}', space=vmem, size = 0x2000, scoped, tag = 'scratch operand']
  #allocation4 [shape = 'f32[16,128]{1,0:T(8,128)}', space=vmem, size = 0x2000, scoped, tag = 'scratch operand']
  #allocation5 [shape = 'f32[16,128]{1,0:T(8,128)}', space=vmem, size = 0x2000, scoped, tag = 'scratch operand']
  %s0 = inlined_call_operand.hbm [shape: bf16[144,128], index: 0, kind: input, shape index: {}]
  %s1 = inlined_call_operand.hbm [shape: bf16[128,128], index: 1, kind: input, shape index: {}]
  %s2 = inlined_call_operand.hbm [shape: bf16[128,128], index: 2, kind: input, shape index: {}]
  %s3 = inlined_call_operand.vmem [shape: f32[1,128], index: 3, kind: input, shape index: {}]
  %s4 = inlined_call_operand.hbm [shape: bf16[1,256,128], index: 4, kind: input, shape index: {}]
  %s5 = inlined_call_operand.vmem [shape: f32[1,1,128], index: 5, kind: input, shape index: {}]
  %s6 = inlined_call_operand.hbm [shape: bf16[128,128], index: 6, kind: input, shape index: {}]
  %s7 = inlined_call_operand.vmem [shape: f32[1,128], index: 7, kind: input, shape index: {}]
  %s8 = inlined_call_operand.hbm [shape: f32[16,128], index: 8, kind: output, shape index: {}]
  %s9 = sld [smem:[#allocation0]]
  $region78: #{tpu_custom_call.1} parent=0
    _
  %s11 = ssub.s32 1, %s9
  %s12 = scalar_select 0, %s11, %s9
  $region1: #{tpu_custom_call.1} parent=0
    #allocation6 [shape = 'u8[36864]{0}', space=vmem, size = 0x9000, scoped, tag = 'input window, operand 0, single buffered']
    #allocation7 [shape = 's32[1]{0}', space=sflag, size = 0x4, scoped, tag = 'scoped memory for tpu_custom_call.1']
    #allocation8 [shape = 's32[1]{0}', space=sflag, size = 0x4, scoped, tag = 'scoped memory for tpu_custom_call.1']
    #allocation9 [shape = 'u8[32768]{0}', space=vmem, size = 0x8000, scoped, tag = 'input window, operand 1, single buffered']
    #allocation10 [shape = 's32[1]{0}', space=sflag, size = 0x4, scoped, tag = 'scoped memory for tpu_custom_call.1']
    #allocation11 [shape = 'u8[32768]{0}', space=vmem, size = 0x8000, scoped, tag = 'input window, operand 2, single buffered']
    #allocation12 [shape = 'u8[65536]{0}', space=vmem, size = 0x10000, scoped, tag = 'input window, operand 4, single buffered']
    #allocation13 [shape = 's32[1]{0}', space=sflag, size = 0x4, scoped, tag = 'scoped memory for tpu_custom_call.1']
    #allocation14 [shape = 'u8[32768]{0}', space=vmem, size = 0x8000, scoped, tag = 'input window, operand 6, single buffered']
    #allocation15 [shape = 'u8[8192]{0}', space=vmem, size = 0x2000, scoped, tag = 'output window, operand 0, single buffered']
    %13 = vsyncpa [#allocation7], 0
    %14 = vsyncpa [#allocation10], 0
    %15 = vsyncpa [#allocation13], 0
    %16 = vsyncpa [#allocation8], 0
    // Predicated region
    $region2: #{tpu_custom_call.1} parent=1 // pred_check
      _
    $region3: #{tpu_custom_call.1} parent=1 // pred_check_branch
      %18 = sbr.rel (0) target = $region5
    $region4: #{tpu_custom_call.1} parent=1 // pred_region
      %20 = vsyncadd [#allocation7], 0
      %s21 = sshll.u32 %s0, 4
      %s22 = int_to_ptr.hbm [resolvable:$true] %s21
      %s23 = sshll.u32 [#allocation6], 4
      %s24 = int_to_ptr.vmem [resolvable:$true] %s23
      %29 = dma.hbm_to_vmem [thread:$0]  %s22, 1152, %s24, [#allocation7], 64, 64, 4
    $region5: #{tpu_custom_call.1} parent=1 // pred_fallthru
      _
    // Predicated region
    $region6: #{tpu_custom_call.1} parent=1 // pred_check
      _
    $region7: #{tpu_custom_call.1} parent=1 // pred_check_branch
      %31 = sbr.rel (0) target = $region9
    $region8: #{tpu_custom_call.1} parent=1 // pred_region
      %33 = vsyncadd [#allocation10], 0
      %s34 = sshll.u32 %s1, 4
      %s35 = int_to_ptr.hbm [resolvable:$true] %s34
      %s36 = sshll.u32 [#allocation9], 4
      %s37 = int_to_ptr.vmem [resolvable:$true] %s36
      %42 = dma.hbm_to_vmem [thread:$0]  %s35, 1024, %s37, [#allocation10], 64, 64, 4
    $region9: #{tpu_custom_call.1} parent=1 // pred_fallthru
      _
    // Predicated region
    $region10: #{tpu_custom_call.1} parent=1 // pred_check
      _
    $region11: #{tpu_custom_call.1} parent=1 // pred_check_branch
      %44 = sbr.rel (0) target = $region13
    $region12: #{tpu_custom_call.1} parent=1 // pred_region
      %46 = vsyncadd [#allocation10], 0
      %s47 = sshll.u32 %s2, 4
      %s48 = int_to_ptr.hbm [resolvable:$true] %s47
      %s49 = sshll.u32 [#allocation11], 4
      %s50 = int_to_ptr.vmem [resolvable:$true] %s49
      %55 = dma.hbm_to_vmem [thread:$0]  %s48, 1024, %s50, [#allocation10], 64, 64, 4
    $region13: #{tpu_custom_call.1} parent=1 // pred_fallthru
      _
    // Predicated region
    $region14: #{tpu_custom_call.1} parent=1 // pred_check
      _
    $region15: #{tpu_custom_call.1} parent=1 // pred_check_branch
      %57 = sbr.rel (0) target = $region17
    $region16: #{tpu_custom_call.1} parent=1 // pred_region
      _
    $region17: #{tpu_custom_call.1} parent=1 // pred_fallthru
      _
    // Predicated region
    $region18: #{tpu_custom_call.1} parent=1 // pred_check
      _
    $region19: #{tpu_custom_call.1} parent=1 // pred_check_branch
      %59 = sbr.rel (0) target = $region21
    $region20: #{tpu_custom_call.1} parent=1 // pred_region
      %61 = vsyncadd [#allocation13], 0
      %s62 = sshll.u32 %s4, 4
      %s63 = int_to_ptr.hbm [resolvable:$true] %s62
      %s64 = sshll.u32 [#allocation12], 4
      %s65 = int_to_ptr.vmem [resolvable:$true] %s64
      %70 = dma.hbm_to_vmem [thread:$0]  %s63, 2048, %s65, [#allocation13], 64, 64, 4
    $region21: #{tpu_custom_call.1} parent=1 // pred_fallthru
      _
    // Predicated region
    $region22: #{tpu_custom_call.1} parent=1 // pred_check
      _
    $region23: #{tpu_custom_call.1} parent=1 // pred_check_branch
      %72 = sbr.rel (0) target = $region25
    $region24: #{tpu_custom_call.1} parent=1 // pred_region
      _
    $region25: #{tpu_custom_call.1} parent=1 // pred_fallthru
      _
    // Predicated region
    $region26: #{tpu_custom_call.1} parent=1 // pred_check
      _
    $region27: #{tpu_custom_call.1} parent=1 // pred_check_branch
      %74 = sbr.rel (0) target = $region29
    $region28: #{tpu_custom_call.1} parent=1 // pred_region
      %76 = vsyncadd [#allocation13], 0
      %s77 = sshll.u32 %s6, 4
      %s78 = int_to_ptr.hbm [resolvable:$true] %s77
      %s79 = sshll.u32 [#allocation14], 4
      %s80 = int_to_ptr.vmem [resolvable:$true] %s79
      %85 = dma.hbm_to_vmem [thread:$0]  %s78, 1024, %s80, [#allocation13], 64, 64, 4
    $region29: #{tpu_custom_call.1} parent=1 // pred_fallthru
      _
    // Predicated region
    $region30: #{tpu_custom_call.1} parent=1 // pred_check
      _
    $region31: #{tpu_custom_call.1} parent=1 // pred_check_branch
      %87 = sbr.rel (0) target = $region33
    $region32: #{tpu_custom_call.1} parent=1 // pred_region
      _
    $region33: #{tpu_custom_call.1} parent=1 // pred_fallthru
      _
    // Predicated region
    $region34: #{tpu_custom_call.1} parent=1 // pred_check
      _
    $region35: #{tpu_custom_call.1} parent=1 // pred_check_branch
      %89 = sbr.rel (0) target = $region37
    $region36: #{tpu_custom_call.1} parent=1 // pred_region
      %91 = dma.done [#allocation7], 1152
    $region37: #{tpu_custom_call.1} parent=1 // pred_fallthru
      _
    // Predicated region
    $region38: #{tpu_custom_call.1} parent=1 // pred_check
      _
    $region39: #{tpu_custom_call.1} parent=1 // pred_check_branch
      %93 = sbr.rel (0) target = $region41
    $region40: #{tpu_custom_call.1} parent=1 // pred_region
      %95 = dma.done [#allocation10], 1024
    $region41: #{tpu_custom_call.1} parent=1 // pred_fallthru
      _
    // Predicated region
    $region42: #{tpu_custom_call.1} parent=1 // pred_check
      _
    $region43: #{tpu_custom_call.1} parent=1 // pred_check_branch
      %97 = sbr.rel (0) target = $region45
    $region44: #{tpu_custom_call.1} parent=1 // pred_region
      %99 = dma.done [#allocation10], 1024
    $region45: #{tpu_custom_call.1} parent=1 // pred_fallthru
      _
    // Predicated region
    $region46: #{tpu_custom_call.1} parent=1 // pred_check
      _
    $region47: #{tpu_custom_call.1} parent=1 // pred_check_branch
      %101 = sbr.rel (0) target = $region49
    $region48: #{tpu_custom_call.1} parent=1 // pred_region
      %103 = dma.done [#allocation13], 2048
    $region49: #{tpu_custom_call.1} parent=1 // pred_fallthru
      _
    // Predicated region
    $region50: #{tpu_custom_call.1} parent=1 // pred_check
      _
    $region51: #{tpu_custom_call.1} parent=1 // pred_check_branch
      %105 = sbr.rel (0) target = $region53
    $region52: #{tpu_custom_call.1} parent=1 // pred_region
      %107 = dma.done [#allocation13], 1024
    $region53: #{tpu_custom_call.1} parent=1 // pred_fallthru
      _
    %p108 = scmp.eq.s32.totalorder 0, 0
    // Predicated region
    $region54: #{tpu_custom_call.1} parent=1 // pred_check
      %p109 = pneg %p108
    $region55: #{tpu_custom_call.1} parent=1 // pred_check_branch
      %111 = sbr.rel (%p109) target = $region57
    $region56: #{tpu_custom_call.1} parent=1 // pred_region
      %112 = vst [vmem:[#allocation3] sm:$0xff] 0.0
      %113 = vst [vmem:[#allocation3 + $0x8] sm:$0xff] 0.0
      %114 = vst [vmem:[#allocation4] sm:$0xff] 0.0
      %115 = vst [vmem:[#allocation4 + $0x8] sm:$0xff] 0.0
      %116 = vst [vmem:[#allocation5] sm:$0xff] 0.0
      %117 = vst [vmem:[#allocation5 + $0x8] sm:$0xff] 0.0
    $region57: #{tpu_custom_call.1} parent=1 // pred_fallthru
      _
    %v118 = vld [vmem:[#allocation6] sm:$0xf]
    %v119 = vld [vmem:[#allocation6 + $0x4] sm:$0xf]
    %v120 = vld [vmem:[#allocation6 + $0x8] sm:$0xf]
    %v121 = vld [vmem:[#allocation6 + $0xc] sm:$0xf]
    %v122 = vld [vmem:[#allocation6 + $0x10] sm:$0xf]
    %v123 = vld [vmem:[#allocation6 + $0x14] sm:$0xf]
    %v124 = vld [vmem:[#allocation6 + $0x18] sm:$0xf]
    %v125 = vld [vmem:[#allocation6 + $0x1c] sm:$0xf]
    %v126 = vld [vmem:[#allocation6 + $0x20] sm:$0xf]
    %v127 = vld [vmem:[#allocation6 + $0x24] sm:$0xf]
    %v128 = vld [vmem:[#allocation6 + $0x28] sm:$0xf]
    %v129 = vld [vmem:[#allocation6 + $0x2c] sm:$0xf]
    %v130 = vld [vmem:[#allocation6 + $0x30] sm:$0xf]
    %v131 = vld [vmem:[#allocation6 + $0x34] sm:$0xf]
    %v132 = vld [vmem:[#allocation6 + $0x38] sm:$0xf]
    %v133 = vld [vmem:[#allocation6 + $0x3c] sm:$0xf]
    %v134 = vld [vmem:[#allocation6 + $0x40] sm:$0xf]
    %v135 = vld [vmem:[#allocation6 + $0x44] sm:$0xf]
    %v136 = vld [vmem:[#allocation9] sm:$0xf]
    %v137 = vld [vmem:[#allocation9 + $0x4] sm:$0xf]
    %v138 = vld [vmem:[#allocation9 + $0x8] sm:$0xf]
    %v139 = vld [vmem:[#allocation9 + $0xc] sm:$0xf]
    %v140 = vld [vmem:[#allocation9 + $0x10] sm:$0xf]
    %v141 = vld [vmem:[#allocation9 + $0x14] sm:$0xf]
    %v142 = vld [vmem:[#allocation9 + $0x18] sm:$0xf]
    %v143 = vld [vmem:[#allocation9 + $0x1c] sm:$0xf]
    %v144 = vld [vmem:[#allocation9 + $0x20] sm:$0xf]
    %v145 = vld [vmem:[#allocation9 + $0x24] sm:$0xf]
    %v146 = vld [vmem:[#allocation9 + $0x28] sm:$0xf]
    %v147 = vld [vmem:[#allocation9 + $0x2c] sm:$0xf]
    %v148 = vld [vmem:[#allocation9 + $0x30] sm:$0xf]
    %v149 = vld [vmem:[#allocation9 + $0x34] sm:$0xf]
    %v150 = vld [vmem:[#allocation9 + $0x38] sm:$0xf]
    %v151 = vld [vmem:[#allocation9 + $0x3c] sm:$0xf]
    %v152 = vld [vmem:[%s3] sm:$0x1]
    %v154 = vperm.slane %v152, 0
    %v174 = vunpack.c.l.b16 %v118
    %v175 = vunpack.c.l.b16 %v119
    %v176 = vunpack.c.l.b16 %v120
    %v177 = vunpack.c.l.b16 %v121
    %v178 = vunpack.c.l.b16 %v122
    %v179 = vunpack.c.l.b16 %v123
    %v180 = vunpack.c.l.b16 %v124
    %v181 = vunpack.c.l.b16 %v125
    %v182 = vunpack.c.l.b16 %v126
    %v183 = vunpack.c.l.b16 %v127
    %v184 = vunpack.c.l.b16 %v128
    %v185 = vunpack.c.l.b16 %v129
    %v186 = vunpack.c.l.b16 %v130
    %v187 = vunpack.c.l.b16 %v131
    %v188 = vunpack.c.l.b16 %v132
    %v189 = vunpack.c.l.b16 %v133
    %v190 = vunpack.c.l.b16 %v134
    %v191 = vunpack.c.l.b16 %v135
    %v192 = vpack.c.b16 %v175, %v174
    %v193 = vpack.c.b16 %v177, %v176
    %v194 = vpack.c.b16 %v179, %v178
    %v195 = vpack.c.b16 %v181, %v180
    %v196 = vpack.c.b16 %v183, %v182
    %v197 = vpack.c.b16 %v185, %v184
    %v198 = vpack.c.b16 %v187, %v186
    %v199 = vpack.c.b16 %v189, %v188
    %v200 = vpack.c.b16 %v191, %v190
    %v226 = vunpack.c.l.b16 %v136
    %v227 = vunpack.c.l.b16 %v137
    %v228 = vunpack.c.l.b16 %v138
    %v229 = vunpack.c.l.b16 %v139
    %v230 = vunpack.c.l.b16 %v140
    %v231 = vunpack.c.l.b16 %v141
    %v232 = vunpack.c.l.b16 %v142
    %v233 = vunpack.c.l.b16 %v143
    %v234 = vunpack.c.l.b16 %v144
    %v235 = vunpack.c.l.b16 %v145
    %v236 = vunpack.c.l.b16 %v146
    %v237 = vunpack.c.l.b16 %v147
    %v238 = vunpack.c.l.b16 %v148
    %v239 = vunpack.c.l.b16 %v149
    %v240 = vunpack.c.l.b16 %v150
    %v241 = vunpack.c.l.b16 %v151
    %v242 = vpack.c.b16 %v227, %v226
    %v243 = vpack.c.b16 %v229, %v228
    %v244 = vpack.c.b16 %v231, %v230
    %v245 = vpack.c.b16 %v233, %v232
    %v246 = vpack.c.b16 %v235, %v234
    %v247 = vpack.c.b16 %v237, %v236
    %v248 = vpack.c.b16 %v239, %v238
    %v249 = vpack.c.b16 %v241, %v240
    %258 = vmatpush.bf16.msra.mxu0 %v249
    %259 = vmatpush.bf16.msra.mxu0 %v248
    %260 = vmatpush.bf16.msra.mxu0 %v247
    %261 = vmatpush.bf16.msra.mxu0 %v246
    %262 = vmatpush.bf16.msra.mxu0 %v245
    %263 = vmatpush.bf16.msra.mxu0 %v244
    %264 = vmatpush.bf16.msra.mxu0 %v243
    %265 = vmatpush.bf16.msra.mxu0 %v242
    %266 = vmatmul.bf16.gmra.mxu0 %v192
    %v267 = vpop.f32.mrf.mxu0
    %v268 = vadd.f32 %v154, %v267
    %v269 = vpop.f32.mrf.mxu0
    %v270 = vadd.f32 %v154, %v269
    %271 = vmatmul.bf16.gmra.mxu0 %v193
    %v272 = vpop.f32.mrf.mxu0
    %v273 = vadd.f32 %v154, %v272
    %v274 = vpop.f32.mrf.mxu0
    %v275 = vadd.f32 %v154, %v274
    %276 = vmatmul.bf16.gmra.mxu0 %v194
    %v277 = vpop.f32.mrf.mxu0
    %v278 = vadd.f32 %v154, %v277
    %v279 = vpop.f32.mrf.mxu0
    %v280 = vadd.f32 %v154, %v279
    %281 = vmatmul.bf16.gmra.mxu0 %v195
    %v282 = vpop.f32.mrf.mxu0
    %v283 = vadd.f32 %v154, %v282
    %v284 = vpop.f32.mrf.mxu0
    %v285 = vadd.f32 %v154, %v284
    %286 = vmatmul.bf16.gmra.mxu0 %v196
    %v287 = vpop.f32.mrf.mxu0
    %v288 = vadd.f32 %v154, %v287
    %v289 = vpop.f32.mrf.mxu0
    %v290 = vadd.f32 %v154, %v289
    %291 = vmatmul.bf16.gmra.mxu0 %v197
    %v292 = vpop.f32.mrf.mxu0
    %v293 = vadd.f32 %v154, %v292
    %v294 = vpop.f32.mrf.mxu0
    %v295 = vadd.f32 %v154, %v294
    %296 = vmatmul.bf16.gmra.mxu0 %v198
    %v297 = vpop.f32.mrf.mxu0
    %v298 = vadd.f32 %v154, %v297
    %v299 = vpop.f32.mrf.mxu0
    %v300 = vadd.f32 %v154, %v299
    %301 = vmatmul.bf16.gmra.mxu0 %v199
    %v302 = vpop.f32.mrf.mxu0
    %v303 = vadd.f32 %v154, %v302
    %v304 = vpop.f32.mrf.mxu0
    %v305 = vadd.f32 %v154, %v304
    %306 = vmatmul.bf16.gmra.mxu0 %v200
    %v307 = vpop.f32.mrf.mxu0
    %v308 = vadd.f32 %v154, %v307
    %v309 = vpop.f32.mrf.mxu0
    %v310 = vadd.f32 %v154, %v309
    %311 = vdwg.mxu0
    %312 = vst [vmem:[#allocation2] sm:$0xff] %v268
    %313 = vst [vmem:[#allocation2 + $0x8] sm:$0xff] %v270
    %314 = vst [vmem:[#allocation2 + $0x10] sm:$0xff] %v273
    %315 = vst [vmem:[#allocation2 + $0x18] sm:$0xff] %v275
    %316 = vst [vmem:[#allocation2 + $0x20] sm:$0xff] %v278
    %317 = vst [vmem:[#allocation2 + $0x28] sm:$0xff] %v280
    %318 = vst [vmem:[#allocation2 + $0x30] sm:$0xff] %v283
    %319 = vst [vmem:[#allocation2 + $0x38] sm:$0xff] %v285
    %320 = vst [vmem:[#allocation2 + $0x40] sm:$0xff] %v288
    %321 = vst [vmem:[#allocation2 + $0x48] sm:$0xff] %v290
    %322 = vst [vmem:[#allocation2 + $0x50] sm:$0xff] %v293
    %323 = vst [vmem:[#allocation2 + $0x58] sm:$0xff] %v295
    %324 = vst [vmem:[#allocation2 + $0x60] sm:$0xff] %v298
    %325 = vst [vmem:[#allocation2 + $0x68] sm:$0xff] %v300
    %326 = vst [vmem:[#allocation2 + $0x70] sm:$0xff] %v303
    %327 = vst [vmem:[#allocation2 + $0x78] sm:$0xff] %v305
    %328 = vst [vmem:[#allocation2 + $0x80] sm:$0xff] %v308
    %329 = vst [vmem:[#allocation2 + $0x88] sm:$0xff] %v310
    %s330 = smul.u32 0, 9
    %p331 = scmp.lt.s32.totalorder %s330, 1
    %s332 = sadd.s32 0, 1
    %s333 = smul.u32 %s332, 9
    %p334 = scmp.gt.s32.totalorder %s333, 8
    %p335 = por %p331, %p334
    // Predicated region
    $region58: #{tpu_custom_call.1} parent=1 // pred_check
      %p336 = pneg %p335
    $region59: #{tpu_custom_call.1} parent=1 // pred_check_branch
      %338 = sbr.rel (%p336) target = $region61
    $region60: #{tpu_custom_call.1} parent=1 // pred_region
      %v339 = vld [vmem:[#allocation3] sm:$0xff]
      %v340 = vld [vmem:[#allocation3 + $0x8] sm:$0xff]
      %v341 = vld [vmem:[#allocation4] sm:$0xff]
      %v342 = vld [vmem:[#allocation4 + $0x8] sm:$0xff]
      %v343 = vld [vmem:[#allocation5] sm:$0xff]
      %v344 = vld [vmem:[#allocation5 + $0x8] sm:$0xff]
      %v345 = vld [vmem:[#allocation2] sm:$0xff]
      %v346 = vld [vmem:[#allocation2 + $0x8] sm:$0xff]
      %v347 = vpack.c.bf16 %v340, %v339
      %v348 = vld [vmem:[#allocation11] sm:$0xf]
      %v349 = vld [vmem:[#allocation11 + $0x4] sm:$0xf]
      %v350 = vld [vmem:[#allocation11 + $0x8] sm:$0xf]
      %v351 = vld [vmem:[#allocation11 + $0xc] sm:$0xf]
      %v352 = vld [vmem:[#allocation11 + $0x10] sm:$0xf]
      %v353 = vld [vmem:[#allocation11 + $0x14] sm:$0xf]
      %v354 = vld [vmem:[#allocation11 + $0x18] sm:$0xf]
      %v355 = vld [vmem:[#allocation11 + $0x1c] sm:$0xf]
      %v356 = vld [vmem:[#allocation11 + $0x20] sm:$0xf]
      %v357 = vld [vmem:[#allocation11 + $0x24] sm:$0xf]
      %v358 = vld [vmem:[#allocation11 + $0x28] sm:$0xf]
      %v359 = vld [vmem:[#allocation11 + $0x2c] sm:$0xf]
      %v360 = vld [vmem:[#allocation11 + $0x30] sm:$0xf]
      %v361 = vld [vmem:[#allocation11 + $0x34] sm:$0xf]
      %v362 = vld [vmem:[#allocation11 + $0x38] sm:$0xf]
      %v363 = vld [vmem:[#allocation11 + $0x3c] sm:$0xf]
      %v380 = vunpack.c.l.b16 %v348
      %v381 = vunpack.c.l.b16 %v349
      %v382 = vunpack.c.l.b16 %v350
      %v383 = vunpack.c.l.b16 %v351
      %v384 = vunpack.c.l.b16 %v352
      %v385 = vunpack.c.l.b16 %v353
      %v386 = vunpack.c.l.b16 %v354
      %v387 = vunpack.c.l.b16 %v355
      %v388 = vunpack.c.l.b16 %v356
      %v389 = vunpack.c.l.b16 %v357
      %v390 = vunpack.c.l.b16 %v358
      %v391 = vunpack.c.l.b16 %v359
      %v392 = vunpack.c.l.b16 %v360
      %v393 = vunpack.c.l.b16 %v361
      %v394 = vunpack.c.l.b16 %v362
      %v395 = vunpack.c.l.b16 %v363
      %v396 = vpack.c.b16 %v381, %v380
      %v397 = vpack.c.b16 %v383, %v382
      %v398 = vpack.c.b16 %v385, %v384
      %v399 = vpack.c.b16 %v387, %v386
      %v400 = vpack.c.b16 %v389, %v388
      %v401 = vpack.c.b16 %v391, %v390
      %v402 = vpack.c.b16 %v393, %v392
      %v403 = vpack.c.b16 %v395, %v394
      %412 = vmatpush.bf16.msra.mxu0 %v403
      %413 = vmatpush.bf16.msra.mxu0 %v402
      %414 = vmatpush.bf16.msra.mxu0 %v401
      %415 = vmatpush.bf16.msra.mxu0 %v400
      %416 = vmatpush.bf16.msra.mxu0 %v399
      %417 = vmatpush.bf16.msra.mxu0 %v398
      %418 = vmatpush.bf16.msra.mxu0 %v397
      %419 = vmatpush.bf16.msra.mxu0 %v396
      %420 = vmatmul.bf16.gmra.mxu0 %v347
      %v421 = vpop.f32.mrf.mxu0
      %v422 = vadd.f32 0.0, %v421
      %v423 = vpop.f32.mrf.mxu0
      %v424 = vadd.f32 0.0, %v423
      %425 = vdwg.mxu0
      %v426 = vadd.f32 %v345, %v422
      %v427 = vadd.f32 %v346, %v424
      %v428 = vtanh.pop %v426
      %v429 = vtanh.pop %v427
      %v430 = vpack.c.bf16 %v343, %v343
      %v431 = vpack.c.bf16 %v344, %v344
      %v432 = vpack.c.bf16 %v341, %v341
      %v433 = vpack.c.bf16 %v342, %v342
      %v436 = vunpack.c.l.b16 %v430
      %v437 = vunpack.c.l.b16 %v431
      %v438 = vpack.c.b16 %v437, %v436
      %v442 = vunpack.c.l.b16 %v432
      %v443 = vunpack.c.l.b16 %v433
      %v444 = vpack.c.b16 %v443, %v442
      %v446 = vld [vmem:[#allocation12] sm:$0xf]
      %v447 = vld [vmem:[#allocation12 + $0x4] sm:$0xf]
      %v448 = vld [vmem:[#allocation12 + $0x8] sm:$0xf]
      %v449 = vld [vmem:[#allocation12 + $0xc] sm:$0xf]
      %v450 = vld [vmem:[#allocation12 + $0x10] sm:$0xf]
      %v451 = vld [vmem:[#allocation12 + $0x14] sm:$0xf]
      %v452 = vld [vmem:[#allocation12 + $0x18] sm:$0xf]
      %v453 = vld [vmem:[#allocation12 + $0x1c] sm:$0xf]
      %v454 = vld [vmem:[#allocation12 + $0x20] sm:$0xf]
      %v455 = vld [vmem:[#allocation12 + $0x24] sm:$0xf]
      %v456 = vld [vmem:[#allocation12 + $0x28] sm:$0xf]
      %v457 = vld [vmem:[#allocation12 + $0x2c] sm:$0xf]
      %v458 = vld [vmem:[#allocation12 + $0x30] sm:$0xf]
      %v459 = vld [vmem:[#allocation12 + $0x34] sm:$0xf]
      %v460 = vld [vmem:[#allocation12 + $0x38] sm:$0xf]
      %v461 = vld [vmem:[#allocation12 + $0x3c] sm:$0xf]
      %v462 = vld [vmem:[#allocation12 + $0x40] sm:$0xf]
      %v463 = vld [vmem:[#allocation12 + $0x44] sm:$0xf]
      %v464 = vld [vmem:[#allocation12 + $0x48] sm:$0xf]
      %v465 = vld [vmem:[#allocation12 + $0x4c] sm:$0xf]
      %v466 = vld [vmem:[#allocation12 + $0x50] sm:$0xf]
      %v467 = vld [vmem:[#allocation12 + $0x54] sm:$0xf]
      %v468 = vld [vmem:[#allocation12 + $0x58] sm:$0xf]
      %v469 = vld [vmem:[#allocation12 + $0x5c] sm:$0xf]
      %v470 = vld [vmem:[#allocation12 + $0x60] sm:$0xf]
      %v471 = vld [vmem:[#allocation12 + $0x64] sm:$0xf]
      %v472 = vld [vmem:[#allocation12 + $0x68] sm:$0xf]
      %v473 = vld [vmem:[#allocation12 + $0x6c] sm:$0xf]
      %v474 = vld [vmem:[#allocation12 + $0x70] sm:$0xf]
      %v475 = vld [vmem:[#allocation12 + $0x74] sm:$0xf]
      %v476 = vld [vmem:[#allocation12 + $0x78] sm:$0xf]
      %v477 = vld [vmem:[#allocation12 + $0x7c] sm:$0xf]
      %v478 = vld [vmem:[%s5] sm:$0x1]
      %v480 = vperm.slane %v478, 0
      %v514 = vunpack.c.l.b16 %v446
      %v515 = vunpack.c.l.b16 %v447
      %v516 = vunpack.c.l.b16 %v448
      %v517 = vunpack.c.l.b16 %v449
      %v518 = vunpack.c.l.b16 %v450
      %v519 = vunpack.c.l.b16 %v451
      %v520 = vunpack.c.l.b16 %v452
      %v521 = vunpack.c.l.b16 %v453
      %v522 = vunpack.c.l.b16 %v454
      %v523 = vunpack.c.l.b16 %v455
      %v524 = vunpack.c.l.b16 %v456
      %v525 = vunpack.c.l.b16 %v457
      %v526 = vunpack.c.l.b16 %v458
      %v527 = vunpack.c.l.b16 %v459
      %v528 = vunpack.c.l.b16 %v460
      %v529 = vunpack.c.l.b16 %v461
      %v530 = vunpack.c.l.b16 %v462
      %v531 = vunpack.c.l.b16 %v463
      %v532 = vunpack.c.l.b16 %v464
      %v533 = vunpack.c.l.b16 %v465
      %v534 = vunpack.c.l.b16 %v466
      %v535 = vunpack.c.l.b16 %v467
      %v536 = vunpack.c.l.b16 %v468
      %v537 = vunpack.c.l.b16 %v469
      %v538 = vunpack.c.l.b16 %v470
      %v539 = vunpack.c.l.b16 %v471
      %v540 = vunpack.c.l.b16 %v472
      %v541 = vunpack.c.l.b16 %v473
      %v542 = vunpack.c.l.b16 %v474
      %v543 = vunpack.c.l.b16 %v475
      %v544 = vunpack.c.l.b16 %v476
      %v545 = vunpack.c.l.b16 %v477
      %v546 = vpack.c.b16 %v515, %v514
      %v547 = vpack.c.b16 %v517, %v516
      %v548 = vpack.c.b16 %v519, %v518
      %v549 = vpack.c.b16 %v521, %v520
      %v550 = vpack.c.b16 %v523, %v522
      %v551 = vpack.c.b16 %v525, %v524
      %v552 = vpack.c.b16 %v527, %v526
      %v553 = vpack.c.b16 %v529, %v528
      %v554 = vpack.c.b16 %v531, %v530
      %v555 = vpack.c.b16 %v533, %v532
      %v556 = vpack.c.b16 %v535, %v534
      %v557 = vpack.c.b16 %v537, %v536
      %v558 = vpack.c.b16 %v539, %v538
      %v559 = vpack.c.b16 %v541, %v540
      %v560 = vpack.c.b16 %v543, %v542
      %v561 = vpack.c.b16 %v545, %v544
      %578 = vmatpush.bf16.msra.mxu0 %v553
      %579 = vmatpush.bf16.msra.mxu0 %v552
      %580 = vmatpush.bf16.msra.mxu0 %v551
      %581 = vmatpush.bf16.msra.mxu0 %v550
      %582 = vmatpush.bf16.msra.mxu0 %v549
      %583 = vmatpush.bf16.msra.mxu0 %v548
      %584 = vmatpush.bf16.msra.mxu0 %v547
      %585 = vmatpush.bf16.msra.mxu0 %v546
      %586 = vmatmul.bf16.gmra.mxu0 %v438
      %v587 = vpop.f32.mrf.mxu0
      %v588 = vadd.f32 %v480, %v587
      %v589 = vpop.f32.mrf.mxu0
      %v590 = vadd.f32 %v480, %v589
      %591 = vdwg.mxu0
      %592 = vmatpush.bf16.msra.mxu0 %v561
      %593 = vmatpush.bf16.msra.mxu0 %v560
      %594 = vmatpush.bf16.msra.mxu0 %v559
      %595 = vmatpush.bf16.msra.mxu0 %v558
      %596 = vmatpush.bf16.msra.mxu0 %v557
      %597 = vmatpush.bf16.msra.mxu0 %v556
      %598 = vmatpush.bf16.msra.mxu0 %v555
      %599 = vmatpush.bf16.msra.mxu0 %v554
      %600 = vmatmul.bf16.gmra.mxu0 %v444
      %v601 = vpop.f32.mrf.mxu0
      %v602 = vadd.f32 %v588, %v601
      %v603 = vpop.f32.mrf.mxu0
      %v604 = vadd.f32 %v590, %v603
      %605 = vdwg.mxu0
      %v606 = vtanh.pop %v602
      %v607 = vtanh.pop %v604
      %p608 = scmp.lt.s32.totalorder %s330, 8
      %s609 = scalar_select %p608, 1, 0
      %v610 = vstv %s609
      %vm611 = vcmp.eq.s32.totalorder %v610, 1
      %v612 = vsel %vm611, %v428, %v339
      %v613 = vsel %vm611, %v429, %v340
      %p614 = scmp.ge.s32.totalorder %s330, 1
      %p615 = scmp.lt.s32.totalorder %s330, 9
      %p616 = pnand %p614, %p615
      %p617 = pneg %p616
      %s618 = scalar_select %p617, 1, 0
      %v619 = vstv %s618
      %vm620 = vcmp.eq.s32.totalorder %v619, 1
      %v621 = vsel %vm620, %v606, %v341
      %v622 = vsel %vm620, %v607, %v342
      %s623 = sadd.s32 %s330, 1
      %s624 = scalar_lea.vmem [#allocation2], 16
      %v625 = vld [vmem:[%s624] sm:$0xff]
      %v626 = vld [vmem:[%s624 + $0x8] sm:$0xff]
      %v627 = vpack.c.bf16 %v613, %v612
      %628 = vmatpush.bf16.msra.mxu0 %v403
      %629 = vmatpush.bf16.msra.mxu0 %v402
      %630 = vmatpush.bf16.msra.mxu0 %v401
      %631 = vmatpush.bf16.msra.mxu0 %v400
      %632 = vmatpush.bf16.msra.mxu0 %v399
      %633 = vmatpush.bf16.msra.mxu0 %v398
      %634 = vmatpush.bf16.msra.mxu0 %v397
      %635 = vmatpush.bf16.msra.mxu0 %v396
      %636 = vmatmul.bf16.gmra.mxu0 %v627
      %v637 = vpop.f32.mrf.mxu0
      %v638 = vadd.f32 0.0, %v637
      %v639 = vpop.f32.mrf.mxu0
      %v640 = vadd.f32 0.0, %v639
      %641 = vdwg.mxu0
      %v642 = vadd.f32 %v625, %v638
      %v643 = vadd.f32 %v626, %v640
      %v644 = vtanh.pop %v642
      %v645 = vtanh.pop %v643
      %v646 = vpack.c.bf16 %v428, %v428
      %v647 = vpack.c.bf16 %v429, %v429
      %v648 = vpack.c.bf16 %v621, %v621
      %v649 = vpack.c.bf16 %v622, %v622
      %v652 = vunpack.c.l.b16 %v646
      %v653 = vunpack.c.l.b16 %v647
      %v654 = vpack.c.b16 %v653, %v652
      %v658 = vunpack.c.l.b16 %v648
      %v659 = vunpack.c.l.b16 %v649
      %v660 = vpack.c.b16 %v659, %v658
      %662 = vmatpush.bf16.msra.mxu0 %v553
      %663 = vmatpush.bf16.msra.mxu0 %v552
      %664 = vmatpush.bf16.msra.mxu0 %v551
      %665 = vmatpush.bf16.msra.mxu0 %v550
      %666 = vmatpush.bf16.msra.mxu0 %v549
      %667 = vmatpush.bf16.msra.mxu0 %v548
      %668 = vmatpush.bf16.msra.mxu0 %v547
      %669 = vmatpush.bf16.msra.mxu0 %v546
      %670 = vmatmul.bf16.gmra.mxu0 %v654
      %v671 = vpop.f32.mrf.mxu0
      %v672 = vadd.f32 %v480, %v671
      %v673 = vpop.f32.mrf.mxu0
      %v674 = vadd.f32 %v480, %v673
      %675 = vdwg.mxu0
      %676 = vmatpush.bf16.msra.mxu0 %v561
      %677 = vmatpush.bf16.msra.mxu0 %v560
      %678 = vmatpush.bf16.msra.mxu0 %v559
      %679 = vmatpush.bf16.msra.mxu0 %v558
      %680 = vmatpush.bf16.msra.mxu0 %v557
      %681 = vmatpush.bf16.msra.mxu0 %v556
      %682 = vmatpush.bf16.msra.mxu0 %v555
      %683 = vmatpush.bf16.msra.mxu0 %v554
      %684 = vmatmul.bf16.gmra.mxu0 %v660
      %v685 = vpop.f32.mrf.mxu0
      %v686 = vadd.f32 %v672, %v685
      %v687 = vpop.f32.mrf.mxu0
      %v688 = vadd.f32 %v674, %v687
      %689 = vdwg.mxu0
      %v690 = vtanh.pop %v686
      %v691 = vtanh.pop %v688
      %p692 = scmp.lt.s32.totalorder %s623, 8
      %s693 = scalar_select %p692, 1, 0
      %v694 = vstv %s693
      %vm695 = vcmp.eq.s32.totalorder %v694, 1
      %v696 = vsel %vm695, %v644, %v612
      %v697 = vsel %vm695, %v645, %v613
      %p698 = scmp.ge.s32.totalorder %s623, 1
      %p699 = scmp.lt.s32.totalorder %s623, 9
      %p700 = pnand %p698, %p699
      %p701 = pneg %p700
      %s702 = scalar_select %p701, 1, 0
      %v703 = vstv %s702
      %vm704 = vcmp.eq.s32.totalorder %v703, 1
      %v705 = vsel %vm704, %v690, %v621
      %v706 = vsel %vm704, %v691, %v622
      %s707 = sadd.s32 %s330, 2
      %s708 = scalar_lea.vmem [#allocation2], 32
      %v709 = vld [vmem:[%s708] sm:$0xff]
      %v710 = vld [vmem:[%s708 + $0x8] sm:$0xff]
      %v711 = vpack.c.bf16 %v697, %v696
      %712 = vmatpush.bf16.msra.mxu0 %v403
      %713 = vmatpush.bf16.msra.mxu0 %v402
      %714 = vmatpush.bf16.msra.mxu0 %v401
      %715 = vmatpush.bf16.msra.mxu0 %v400
      %716 = vmatpush.bf16.msra.mxu0 %v399
      %717 = vmatpush.bf16.msra.mxu0 %v398
      %718 = vmatpush.bf16.msra.mxu0 %v397
      %719 = vmatpush.bf16.msra.mxu0 %v396
      %720 = vmatmul.bf16.gmra.mxu0 %v711
      %v721 = vpop.f32.mrf.mxu0
      %v722 = vadd.f32 0.0, %v721
      %v723 = vpop.f32.mrf.mxu0
      %v724 = vadd.f32 0.0, %v723
      %725 = vdwg.mxu0
      %v726 = vadd.f32 %v709, %v722
      %v727 = vadd.f32 %v710, %v724
      %v728 = vtanh.pop %v726
      %v729 = vtanh.pop %v727
      %v730 = vpack.c.bf16 %v644, %v644
      %v731 = vpack.c.bf16 %v645, %v645
      %v732 = vpack.c.bf16 %v705, %v705
      %v733 = vpack.c.bf16 %v706, %v706
      %v736 = vunpack.c.l.b16 %v730
      %v737 = vunpack.c.l.b16 %v731
      %v738 = vpack.c.b16 %v737, %v736
      %v742 = vunpack.c.l.b16 %v732
      %v743 = vunpack.c.l.b16 %v733
      %v744 = vpack.c.b16 %v743, %v742
      %746 = vmatpush.bf16.msra.mxu0 %v553
      %747 = vmatpush.bf16.msra.mxu0 %v552
      %748 = vmatpush.bf16.msra.mxu0 %v551
      %749 = vmatpush.bf16.msra.mxu0 %v550
      %750 = vmatpush.bf16.msra.mxu0 %v549
      %751 = vmatpush.bf16.msra.mxu0 %v548
      %752 = vmatpush.bf16.msra.mxu0 %v547
      %753 = vmatpush.bf16.msra.mxu0 %v546
      %754 = vmatmul.bf16.gmra.mxu0 %v738
      %v755 = vpop.f32.mrf.mxu0
      %v756 = vadd.f32 %v480, %v755
      %v757 = vpop.f32.mrf.mxu0
      %v758 = vadd.f32 %v480, %v757
      %759 = vdwg.mxu0
      %760 = vmatpush.bf16.msra.mxu0 %v561
      %761 = vmatpush.bf16.msra.mxu0 %v560
      %762 = vmatpush.bf16.msra.mxu0 %v559
      %763 = vmatpush.bf16.msra.mxu0 %v558
      %764 = vmatpush.bf16.msra.mxu0 %v557
      %765 = vmatpush.bf16.msra.mxu0 %v556
      %766 = vmatpush.bf16.msra.mxu0 %v555
      %767 = vmatpush.bf16.msra.mxu0 %v554
      %768 = vmatmul.bf16.gmra.mxu0 %v744
      %v769 = vpop.f32.mrf.mxu0
      %v770 = vadd.f32 %v756, %v769
      %v771 = vpop.f32.mrf.mxu0
      %v772 = vadd.f32 %v758, %v771
      %773 = vdwg.mxu0
      %v774 = vtanh.pop %v770
      %v775 = vtanh.pop %v772
      %p776 = scmp.lt.s32.totalorder %s707, 8
      %s777 = scalar_select %p776, 1, 0
      %v778 = vstv %s777
      %vm779 = vcmp.eq.s32.totalorder %v778, 1
      %v780 = vsel %vm779, %v728, %v696
      %v781 = vsel %vm779, %v729, %v697
      %p782 = scmp.ge.s32.totalorder %s707, 1
      %p783 = scmp.lt.s32.totalorder %s707, 9
      %p784 = pnand %p782, %p783
      %p785 = pneg %p784
      %s786 = scalar_select %p785, 1, 0
      %v787 = vstv %s786
      %vm788 = vcmp.eq.s32.totalorder %v787, 1
      %v789 = vsel %vm788, %v774, %v705
      %v790 = vsel %vm788, %v775, %v706
      %s791 = sadd.s32 %s330, 3
      %s792 = scalar_lea.vmem [#allocation2], 48
      %v793 = vld [vmem:[%s792] sm:$0xff]
      %v794 = vld [vmem:[%s792 + $0x8] sm:$0xff]
      %v795 = vpack.c.bf16 %v781, %v780
      %796 = vmatpush.bf16.msra.mxu0 %v403
      %797 = vmatpush.bf16.msra.mxu0 %v402
      %798 = vmatpush.bf16.msra.mxu0 %v401
      %799 = vmatpush.bf16.msra.mxu0 %v400
      %800 = vmatpush.bf16.msra.mxu0 %v399
      %801 = vmatpush.bf16.msra.mxu0 %v398
      %802 = vmatpush.bf16.msra.mxu0 %v397
      %803 = vmatpush.bf16.msra.mxu0 %v396
      %804 = vmatmul.bf16.gmra.mxu0 %v795
      %v805 = vpop.f32.mrf.mxu0
      %v806 = vadd.f32 0.0, %v805
      %v807 = vpop.f32.mrf.mxu0
      %v808 = vadd.f32 0.0, %v807
      %809 = vdwg.mxu0
      %v810 = vadd.f32 %v793, %v806
      %v811 = vadd.f32 %v794, %v808
      %v812 = vtanh.pop %v810
      %v813 = vtanh.pop %v811
      %v814 = vpack.c.bf16 %v728, %v728
      %v815 = vpack.c.bf16 %v729, %v729
      %v816 = vpack.c.bf16 %v789, %v789
      %v817 = vpack.c.bf16 %v790, %v790
      %v820 = vunpack.c.l.b16 %v814
      %v821 = vunpack.c.l.b16 %v815
      %v822 = vpack.c.b16 %v821, %v820
      %v826 = vunpack.c.l.b16 %v816
      %v827 = vunpack.c.l.b16 %v817
      %v828 = vpack.c.b16 %v827, %v826
      %830 = vmatpush.bf16.msra.mxu0 %v553
      %831 = vmatpush.bf16.msra.mxu0 %v552
      %832 = vmatpush.bf16.msra.mxu0 %v551
      %833 = vmatpush.bf16.msra.mxu0 %v550
      %834 = vmatpush.bf16.msra.mxu0 %v549
      %835 = vmatpush.bf16.msra.mxu0 %v548
      %836 = vmatpush.bf16.msra.mxu0 %v547
      %837 = vmatpush.bf16.msra.mxu0 %v546
      %838 = vmatmul.bf16.gmra.mxu0 %v822
      %v839 = vpop.f32.mrf.mxu0
      %v840 = vadd.f32 %v480, %v839
      %v841 = vpop.f32.mrf.mxu0
      %v842 = vadd.f32 %v480, %v841
      %843 = vdwg.mxu0
      %844 = vmatpush.bf16.msra.mxu0 %v561
      %845 = vmatpush.bf16.msra.mxu0 %v560
      %846 = vmatpush.bf16.msra.mxu0 %v559
      %847 = vmatpush.bf16.msra.mxu0 %v558
      %848 = vmatpush.bf16.msra.mxu0 %v557
      %849 = vmatpush.bf16.msra.mxu0 %v556
      %850 = vmatpush.bf16.msra.mxu0 %v555
      %851 = vmatpush.bf16.msra.mxu0 %v554
      %852 = vmatmul.bf16.gmra.mxu0 %v828
      %v853 = vpop.f32.mrf.mxu0
      %v854 = vadd.f32 %v840, %v853
      %v855 = vpop.f32.mrf.mxu0
      %v856 = vadd.f32 %v842, %v855
      %857 = vdwg.mxu0
      %v858 = vtanh.pop %v854
      %v859 = vtanh.pop %v856
      %p860 = scmp.lt.s32.totalorder %s791, 8
      %s861 = scalar_select %p860, 1, 0
      %v862 = vstv %s861
      %vm863 = vcmp.eq.s32.totalorder %v862, 1
      %v864 = vsel %vm863, %v812, %v780
      %v865 = vsel %vm863, %v813, %v781
      %p866 = scmp.ge.s32.totalorder %s791, 1
      %p867 = scmp.lt.s32.totalorder %s791, 9
      %p868 = pnand %p866, %p867
      %p869 = pneg %p868
      %s870 = scalar_select %p869, 1, 0
      %v871 = vstv %s870
      %vm872 = vcmp.eq.s32.totalorder %v871, 1
      %v873 = vsel %vm872, %v858, %v789
      %v874 = vsel %vm872, %v859, %v790
      %s875 = sadd.s32 %s330, 4
      %s876 = scalar_lea.vmem [#allocation2], 64
      %v877 = vld [vmem:[%s876] sm:$0xff]
      %v878 = vld [vmem:[%s876 + $0x8] sm:$0xff]
      %v879 = vpack.c.bf16 %v865, %v864
      %880 = vmatpush.bf16.msra.mxu0 %v403
      %881 = vmatpush.bf16.msra.mxu0 %v402
      %882 = vmatpush.bf16.msra.mxu0 %v401
      %883 = vmatpush.bf16.msra.mxu0 %v400
      %884 = vmatpush.bf16.msra.mxu0 %v399
      %885 = vmatpush.bf16.msra.mxu0 %v398
      %886 = vmatpush.bf16.msra.mxu0 %v397
      %887 = vmatpush.bf16.msra.mxu0 %v396
      %888 = vmatmul.bf16.gmra.mxu0 %v879
      %v889 = vpop.f32.mrf.mxu0
      %v890 = vadd.f32 0.0, %v889
      %v891 = vpop.f32.mrf.mxu0
      %v892 = vadd.f32 0.0, %v891
      %893 = vdwg.mxu0
      %v894 = vadd.f32 %v877, %v890
      %v895 = vadd.f32 %v878, %v892
      %v896 = vtanh.pop %v894
      %v897 = vtanh.pop %v895
      %v898 = vpack.c.bf16 %v812, %v812
      %v899 = vpack.c.bf16 %v813, %v813
      %v900 = vpack.c.bf16 %v873, %v873
      %v901 = vpack.c.bf16 %v874, %v874
      %v904 = vunpack.c.l.b16 %v898
      %v905 = vunpack.c.l.b16 %v899
      %v906 = vpack.c.b16 %v905, %v904
      %v910 = vunpack.c.l.b16 %v900
      %v911 = vunpack.c.l.b16 %v901
      %v912 = vpack.c.b16 %v911, %v910
      %914 = vmatpush.bf16.msra.mxu0 %v553
      %915 = vmatpush.bf16.msra.mxu0 %v552
      %916 = vmatpush.bf16.msra.mxu0 %v551
      %917 = vmatpush.bf16.msra.mxu0 %v550
      %918 = vmatpush.bf16.msra.mxu0 %v549
      %919 = vmatpush.bf16.msra.mxu0 %v548
      %920 = vmatpush.bf16.msra.mxu0 %v547
      %921 = vmatpush.bf16.msra.mxu0 %v546
      %922 = vmatmul.bf16.gmra.mxu0 %v906
      %v923 = vpop.f32.mrf.mxu0
      %v924 = vadd.f32 %v480, %v923
      %v925 = vpop.f32.mrf.mxu0
      %v926 = vadd.f32 %v480, %v925
      %927 = vdwg.mxu0
      %928 = vmatpush.bf16.msra.mxu0 %v561
      %929 = vmatpush.bf16.msra.mxu0 %v560
      %930 = vmatpush.bf16.msra.mxu0 %v559
      %931 = vmatpush.bf16.msra.mxu0 %v558
      %932 = vmatpush.bf16.msra.mxu0 %v557
      %933 = vmatpush.bf16.msra.mxu0 %v556
      %934 = vmatpush.bf16.msra.mxu0 %v555
      %935 = vmatpush.bf16.msra.mxu0 %v554
      %936 = vmatmul.bf16.gmra.mxu0 %v912
      %v937 = vpop.f32.mrf.mxu0
      %v938 = vadd.f32 %v924, %v937
      %v939 = vpop.f32.mrf.mxu0
      %v940 = vadd.f32 %v926, %v939
      %941 = vdwg.mxu0
      %v942 = vtanh.pop %v938
      %v943 = vtanh.pop %v940
      %p944 = scmp.lt.s32.totalorder %s875, 8
      %s945 = scalar_select %p944, 1, 0
      %v946 = vstv %s945
      %vm947 = vcmp.eq.s32.totalorder %v946, 1
      %v948 = vsel %vm947, %v896, %v864
      %v949 = vsel %vm947, %v897, %v865
      %p950 = scmp.ge.s32.totalorder %s875, 1
      %p951 = scmp.lt.s32.totalorder %s875, 9
      %p952 = pnand %p950, %p951
      %p953 = pneg %p952
      %s954 = scalar_select %p953, 1, 0
      %v955 = vstv %s954
      %vm956 = vcmp.eq.s32.totalorder %v955, 1
      %v957 = vsel %vm956, %v942, %v873
      %v958 = vsel %vm956, %v943, %v874
      %s959 = sadd.s32 %s330, 5
      %s960 = scalar_lea.vmem [#allocation2], 80
      %v961 = vld [vmem:[%s960] sm:$0xff]
      %v962 = vld [vmem:[%s960 + $0x8] sm:$0xff]
      %v963 = vpack.c.bf16 %v949, %v948
      %964 = vmatpush.bf16.msra.mxu0 %v403
      %965 = vmatpush.bf16.msra.mxu0 %v402
      %966 = vmatpush.bf16.msra.mxu0 %v401
      %967 = vmatpush.bf16.msra.mxu0 %v400
      %968 = vmatpush.bf16.msra.mxu0 %v399
      %969 = vmatpush.bf16.msra.mxu0 %v398
      %970 = vmatpush.bf16.msra.mxu0 %v397
      %971 = vmatpush.bf16.msra.mxu0 %v396
      %972 = vmatmul.bf16.gmra.mxu0 %v963
      %v973 = vpop.f32.mrf.mxu0
      %v974 = vadd.f32 0.0, %v973
      %v975 = vpop.f32.mrf.mxu0
      %v976 = vadd.f32 0.0, %v975
      %977 = vdwg.mxu0
      %v978 = vadd.f32 %v961, %v974
      %v979 = vadd.f32 %v962, %v976
      %v980 = vtanh.pop %v978
      %v981 = vtanh.pop %v979
      %v982 = vpack.c.bf16 %v896, %v896
      %v983 = vpack.c.bf16 %v897, %v897
      %v984 = vpack.c.bf16 %v957, %v957
      %v985 = vpack.c.bf16 %v958, %v958
      %v988 = vunpack.c.l.b16 %v982
      %v989 = vunpack.c.l.b16 %v983
      %v990 = vpack.c.b16 %v989, %v988
      %v994 = vunpack.c.l.b16 %v984
      %v995 = vunpack.c.l.b16 %v985
      %v996 = vpack.c.b16 %v995, %v994
      %998 = vmatpush.bf16.msra.mxu0 %v553
      %999 = vmatpush.bf16.msra.mxu0 %v552
      %1000 = vmatpush.bf16.msra.mxu0 %v551
      %1001 = vmatpush.bf16.msra.mxu0 %v550
      %1002 = vmatpush.bf16.msra.mxu0 %v549
      %1003 = vmatpush.bf16.msra.mxu0 %v548
      %1004 = vmatpush.bf16.msra.mxu0 %v547
      %1005 = vmatpush.bf16.msra.mxu0 %v546
      %1006 = vmatmul.bf16.gmra.mxu0 %v990
      %v1007 = vpop.f32.mrf.mxu0
      %v1008 = vadd.f32 %v480, %v1007
      %v1009 = vpop.f32.mrf.mxu0
      %v1010 = vadd.f32 %v480, %v1009
      %1011 = vdwg.mxu0
      %1012 = vmatpush.bf16.msra.mxu0 %v561
      %1013 = vmatpush.bf16.msra.mxu0 %v560
      %1014 = vmatpush.bf16.msra.mxu0 %v559
      %1015 = vmatpush.bf16.msra.mxu0 %v558
      %1016 = vmatpush.bf16.msra.mxu0 %v557
      %1017 = vmatpush.bf16.msra.mxu0 %v556
      %1018 = vmatpush.bf16.msra.mxu0 %v555
      %1019 = vmatpush.bf16.msra.mxu0 %v554
      %1020 = vmatmul.bf16.gmra.mxu0 %v996
      %v1021 = vpop.f32.mrf.mxu0
      %v1022 = vadd.f32 %v1008, %v1021
      %v1023 = vpop.f32.mrf.mxu0
      %v1024 = vadd.f32 %v1010, %v1023
      %1025 = vdwg.mxu0
      %v1026 = vtanh.pop %v1022
      %v1027 = vtanh.pop %v1024
      %p1028 = scmp.lt.s32.totalorder %s959, 8
      %s1029 = scalar_select %p1028, 1, 0
      %v1030 = vstv %s1029
      %vm1031 = vcmp.eq.s32.totalorder %v1030, 1
      %v1032 = vsel %vm1031, %v980, %v948
      %v1033 = vsel %vm1031, %v981, %v949
      %p1034 = scmp.ge.s32.totalorder %s959, 1
      %p1035 = scmp.lt.s32.totalorder %s959, 9
      %p1036 = pnand %p1034, %p1035
      %p1037 = pneg %p1036
      %s1038 = scalar_select %p1037, 1, 0
      %v1039 = vstv %s1038
      %vm1040 = vcmp.eq.s32.totalorder %v1039, 1
      %v1041 = vsel %vm1040, %v1026, %v957
      %v1042 = vsel %vm1040, %v1027, %v958
      %s1043 = sadd.s32 %s330, 6
      %s1044 = scalar_lea.vmem [#allocation2], 96
      %v1045 = vld [vmem:[%s1044] sm:$0xff]
      %v1046 = vld [vmem:[%s1044 + $0x8] sm:$0xff]
      %v1047 = vpack.c.bf16 %v1033, %v1032
      %1048 = vmatpush.bf16.msra.mxu0 %v403
      %1049 = vmatpush.bf16.msra.mxu0 %v402
      %1050 = vmatpush.bf16.msra.mxu0 %v401
      %1051 = vmatpush.bf16.msra.mxu0 %v400
      %1052 = vmatpush.bf16.msra.mxu0 %v399
      %1053 = vmatpush.bf16.msra.mxu0 %v398
      %1054 = vmatpush.bf16.msra.mxu0 %v397
      %1055 = vmatpush.bf16.msra.mxu0 %v396
      %1056 = vmatmul.bf16.gmra.mxu0 %v1047
      %v1057 = vpop.f32.mrf.mxu0
      %v1058 = vadd.f32 0.0, %v1057
      %v1059 = vpop.f32.mrf.mxu0
      %v1060 = vadd.f32 0.0, %v1059
      %1061 = vdwg.mxu0
      %v1062 = vadd.f32 %v1045, %v1058
      %v1063 = vadd.f32 %v1046, %v1060
      %v1064 = vtanh.pop %v1062
      %v1065 = vtanh.pop %v1063
      %v1066 = vpack.c.bf16 %v980, %v980
      %v1067 = vpack.c.bf16 %v981, %v981
      %v1068 = vpack.c.bf16 %v1041, %v1041
      %v1069 = vpack.c.bf16 %v1042, %v1042
      %v1072 = vunpack.c.l.b16 %v1066
      %v1073 = vunpack.c.l.b16 %v1067
      %v1074 = vpack.c.b16 %v1073, %v1072
      %v1078 = vunpack.c.l.b16 %v1068
      %v1079 = vunpack.c.l.b16 %v1069
      %v1080 = vpack.c.b16 %v1079, %v1078
      %1082 = vmatpush.bf16.msra.mxu0 %v553
      %1083 = vmatpush.bf16.msra.mxu0 %v552
      %1084 = vmatpush.bf16.msra.mxu0 %v551
      %1085 = vmatpush.bf16.msra.mxu0 %v550
      %1086 = vmatpush.bf16.msra.mxu0 %v549
      %1087 = vmatpush.bf16.msra.mxu0 %v548
      %1088 = vmatpush.bf16.msra.mxu0 %v547
      %1089 = vmatpush.bf16.msra.mxu0 %v546
      %1090 = vmatmul.bf16.gmra.mxu0 %v1074
      %v1091 = vpop.f32.mrf.mxu0
      %v1092 = vadd.f32 %v480, %v1091
      %v1093 = vpop.f32.mrf.mxu0
      %v1094 = vadd.f32 %v480, %v1093
      %1095 = vdwg.mxu0
      %1096 = vmatpush.bf16.msra.mxu0 %v561
      %1097 = vmatpush.bf16.msra.mxu0 %v560
      %1098 = vmatpush.bf16.msra.mxu0 %v559
      %1099 = vmatpush.bf16.msra.mxu0 %v558
      %1100 = vmatpush.bf16.msra.mxu0 %v557
      %1101 = vmatpush.bf16.msra.mxu0 %v556
      %1102 = vmatpush.bf16.msra.mxu0 %v555
      %1103 = vmatpush.bf16.msra.mxu0 %v554
      %1104 = vmatmul.bf16.gmra.mxu0 %v1080
      %v1105 = vpop.f32.mrf.mxu0
      %v1106 = vadd.f32 %v1092, %v1105
      %v1107 = vpop.f32.mrf.mxu0
      %v1108 = vadd.f32 %v1094, %v1107
      %1109 = vdwg.mxu0
      %v1110 = vtanh.pop %v1106
      %v1111 = vtanh.pop %v1108
      %p1112 = scmp.lt.s32.totalorder %s1043, 8
      %s1113 = scalar_select %p1112, 1, 0
      %v1114 = vstv %s1113
      %vm1115 = vcmp.eq.s32.totalorder %v1114, 1
      %v1116 = vsel %vm1115, %v1064, %v1032
      %v1117 = vsel %vm1115, %v1065, %v1033
      %p1118 = scmp.ge.s32.totalorder %s1043, 1
      %p1119 = scmp.lt.s32.totalorder %s1043, 9
      %p1120 = pnand %p1118, %p1119
      %p1121 = pneg %p1120
      %s1122 = scalar_select %p1121, 1, 0
      %v1123 = vstv %s1122
      %vm1124 = vcmp.eq.s32.totalorder %v1123, 1
      %v1125 = vsel %vm1124, %v1110, %v1041
      %v1126 = vsel %vm1124, %v1111, %v1042
      %s1127 = sadd.s32 %s330, 7
      %s1128 = scalar_lea.vmem [#allocation2], 112
      %v1129 = vld [vmem:[%s1128] sm:$0xff]
      %v1130 = vld [vmem:[%s1128 + $0x8] sm:$0xff]
      %v1131 = vpack.c.bf16 %v1117, %v1116
      %1132 = vmatpush.bf16.msra.mxu0 %v403
      %1133 = vmatpush.bf16.msra.mxu0 %v402
      %1134 = vmatpush.bf16.msra.mxu0 %v401
      %1135 = vmatpush.bf16.msra.mxu0 %v400
      %1136 = vmatpush.bf16.msra.mxu0 %v399
      %1137 = vmatpush.bf16.msra.mxu0 %v398
      %1138 = vmatpush.bf16.msra.mxu0 %v397
      %1139 = vmatpush.bf16.msra.mxu0 %v396
      %1140 = vmatmul.bf16.gmra.mxu0 %v1131
      %v1141 = vpop.f32.mrf.mxu0
      %v1142 = vadd.f32 0.0, %v1141
      %v1143 = vpop.f32.mrf.mxu0
      %v1144 = vadd.f32 0.0, %v1143
      %1145 = vdwg.mxu0
      %v1146 = vadd.f32 %v1129, %v1142
      %v1147 = vadd.f32 %v1130, %v1144
      %v1148 = vtanh.pop %v1146
      %v1149 = vtanh.pop %v1147
      %v1150 = vpack.c.bf16 %v1064, %v1064
      %v1151 = vpack.c.bf16 %v1065, %v1065
      %v1152 = vpack.c.bf16 %v1125, %v1125
      %v1153 = vpack.c.bf16 %v1126, %v1126
      %v1156 = vunpack.c.l.b16 %v1150
      %v1157 = vunpack.c.l.b16 %v1151
      %v1158 = vpack.c.b16 %v1157, %v1156
      %v1162 = vunpack.c.l.b16 %v1152
      %v1163 = vunpack.c.l.b16 %v1153
      %v1164 = vpack.c.b16 %v1163, %v1162
      %1166 = vmatpush.bf16.msra.mxu0 %v553
      %1167 = vmatpush.bf16.msra.mxu0 %v552
      %1168 = vmatpush.bf16.msra.mxu0 %v551
      %1169 = vmatpush.bf16.msra.mxu0 %v550
      %1170 = vmatpush.bf16.msra.mxu0 %v549
      %1171 = vmatpush.bf16.msra.mxu0 %v548
      %1172 = vmatpush.bf16.msra.mxu0 %v547
      %1173 = vmatpush.bf16.msra.mxu0 %v546
      %1174 = vmatmul.bf16.gmra.mxu0 %v1158
      %v1175 = vpop.f32.mrf.mxu0
      %v1176 = vadd.f32 %v480, %v1175
      %v1177 = vpop.f32.mrf.mxu0
      %v1178 = vadd.f32 %v480, %v1177
      %1179 = vdwg.mxu0
      %1180 = vmatpush.bf16.msra.mxu0 %v561
      %1181 = vmatpush.bf16.msra.mxu0 %v560
      %1182 = vmatpush.bf16.msra.mxu0 %v559
      %1183 = vmatpush.bf16.msra.mxu0 %v558
      %1184 = vmatpush.bf16.msra.mxu0 %v557
      %1185 = vmatpush.bf16.msra.mxu0 %v556
      %1186 = vmatpush.bf16.msra.mxu0 %v555
      %1187 = vmatpush.bf16.msra.mxu0 %v554
      %1188 = vmatmul.bf16.gmra.mxu0 %v1164
      %v1189 = vpop.f32.mrf.mxu0
      %v1190 = vadd.f32 %v1176, %v1189
      %v1191 = vpop.f32.mrf.mxu0
      %v1192 = vadd.f32 %v1178, %v1191
      %1193 = vdwg.mxu0
      %v1194 = vtanh.pop %v1190
      %v1195 = vtanh.pop %v1192
      %p1196 = scmp.lt.s32.totalorder %s1127, 8
      %s1197 = scalar_select %p1196, 1, 0
      %v1198 = vstv %s1197
      %vm1199 = vcmp.eq.s32.totalorder %v1198, 1
      %v1200 = vsel %vm1199, %v1148, %v1116
      %v1201 = vsel %vm1199, %v1149, %v1117
      %p1202 = scmp.ge.s32.totalorder %s1127, 1
      %p1203 = scmp.lt.s32.totalorder %s1127, 9
      %p1204 = pnand %p1202, %p1203
      %p1205 = pneg %p1204
      %s1206 = scalar_select %p1205, 1, 0
      %v1207 = vstv %s1206
      %vm1208 = vcmp.eq.s32.totalorder %v1207, 1
      %v1209 = vsel %vm1208, %v1194, %v1125
      %v1210 = vsel %vm1208, %v1195, %v1126
      %s1211 = sadd.s32 %s330, 8
      %s1212 = scalar_lea.vmem [#allocation2], 128
      %v1213 = vld [vmem:[%s1212] sm:$0xff]
      %v1214 = vld [vmem:[%s1212 + $0x8] sm:$0xff]
      %v1215 = vpack.c.bf16 %v1201, %v1200
      %1216 = vmatpush.bf16.msra.mxu0 %v403
      %1217 = vmatpush.bf16.msra.mxu0 %v402
      %1218 = vmatpush.bf16.msra.mxu0 %v401
      %1219 = vmatpush.bf16.msra.mxu0 %v400
      %1220 = vmatpush.bf16.msra.mxu0 %v399
      %1221 = vmatpush.bf16.msra.mxu0 %v398
      %1222 = vmatpush.bf16.msra.mxu0 %v397
      %1223 = vmatpush.bf16.msra.mxu0 %v396
      %1224 = vmatmul.bf16.gmra.mxu0 %v1215
      %v1225 = vpop.f32.mrf.mxu0
      %v1226 = vadd.f32 0.0, %v1225
      %v1227 = vpop.f32.mrf.mxu0
      %v1228 = vadd.f32 0.0, %v1227
      %1229 = vdwg.mxu0
      %v1230 = vadd.f32 %v1213, %v1226
      %v1231 = vadd.f32 %v1214, %v1228
      %v1232 = vtanh.pop %v1230
      %v1233 = vtanh.pop %v1231
      %v1234 = vpack.c.bf16 %v1148, %v1148
      %v1235 = vpack.c.bf16 %v1149, %v1149
      %v1236 = vpack.c.bf16 %v1209, %v1209
      %v1237 = vpack.c.bf16 %v1210, %v1210
      %v1240 = vunpack.c.l.b16 %v1234
      %v1241 = vunpack.c.l.b16 %v1235
      %v1242 = vpack.c.b16 %v1241, %v1240
      %v1246 = vunpack.c.l.b16 %v1236
      %v1247 = vunpack.c.l.b16 %v1237
      %v1248 = vpack.c.b16 %v1247, %v1246
      %1250 = vmatpush.bf16.msra.mxu0 %v553
      %1251 = vmatpush.bf16.msra.mxu0 %v552
      %1252 = vmatpush.bf16.msra.mxu0 %v551
      %1253 = vmatpush.bf16.msra.mxu0 %v550
      %1254 = vmatpush.bf16.msra.mxu0 %v549
      %1255 = vmatpush.bf16.msra.mxu0 %v548
      %1256 = vmatpush.bf16.msra.mxu0 %v547
      %1257 = vmatpush.bf16.msra.mxu0 %v546
      %1258 = vmatmul.bf16.gmra.mxu0 %v1242
      %v1259 = vpop.f32.mrf.mxu0
      %v1260 = vadd.f32 %v480, %v1259
      %v1261 = vpop.f32.mrf.mxu0
      %v1262 = vadd.f32 %v480, %v1261
      %1263 = vdwg.mxu0
      %1264 = vmatpush.bf16.msra.mxu0 %v561
      %1265 = vmatpush.bf16.msra.mxu0 %v560
      %1266 = vmatpush.bf16.msra.mxu0 %v559
      %1267 = vmatpush.bf16.msra.mxu0 %v558
      %1268 = vmatpush.bf16.msra.mxu0 %v557
      %1269 = vmatpush.bf16.msra.mxu0 %v556
      %1270 = vmatpush.bf16.msra.mxu0 %v555
      %1271 = vmatpush.bf16.msra.mxu0 %v554
      %1272 = vmatmul.bf16.gmra.mxu0 %v1248
      %v1273 = vpop.f32.mrf.mxu0
      %v1274 = vadd.f32 %v1260, %v1273
      %v1275 = vpop.f32.mrf.mxu0
      %v1276 = vadd.f32 %v1262, %v1275
      %1277 = vdwg.mxu0
      %v1278 = vtanh.pop %v1274
      %v1279 = vtanh.pop %v1276
      %p1280 = scmp.lt.s32.totalorder %s1211, 8
      %s1281 = scalar_select %p1280, 1, 0
      %v1282 = vstv %s1281
      %vm1283 = vcmp.eq.s32.totalorder %v1282, 1
      %v1284 = vsel %vm1283, %v1232, %v1200
      %v1285 = vsel %vm1283, %v1233, %v1201
      %p1286 = scmp.ge.s32.totalorder %s1211, 1
      %p1287 = scmp.lt.s32.totalorder %s1211, 9
      %p1288 = pnand %p1286, %p1287
      %p1289 = pneg %p1288
      %s1290 = scalar_select %p1289, 1, 0
      %v1291 = vstv %s1290
      %vm1292 = vcmp.eq.s32.totalorder %v1291, 1
      %v1293 = vsel %vm1292, %v1278, %v1209
      %v1294 = vsel %vm1292, %v1279, %v1210
      %1295 = vst [vmem:[#allocation3] sm:$0xff] %v1284
      %1296 = vst [vmem:[#allocation3 + $0x8] sm:$0xff] %v1285
      %1297 = vst [vmem:[#allocation4] sm:$0xff] %v1293
      %1298 = vst [vmem:[#allocation4 + $0x8] sm:$0xff] %v1294
      %1299 = vst [vmem:[#allocation5] sm:$0xff] %v1232
      %1300 = vst [vmem:[#allocation5 + $0x8] sm:$0xff] %v1233
    $region61: #{tpu_custom_call.1} parent=1 // pred_fallthru
      _
    %p1301 = pneg %p335
    // Predicated region
    $region62: #{tpu_custom_call.1} parent=1 // pred_check
      _
    $region63: #{tpu_custom_call.1} parent=1 // pred_check_branch
      %1303 = sbr.rel (%p335) target = $region65
    $region64: #{tpu_custom_call.1} parent=1 // pred_region
      %v1304 = vld [vmem:[#allocation3] sm:$0xff]
      %v1305 = vld [vmem:[#allocation3 + $0x8] sm:$0xff]
      %v1306 = vld [vmem:[#allocation4] sm:$0xff]
      %v1307 = vld [vmem:[#allocation4 + $0x8] sm:$0xff]
      %v1308 = vld [vmem:[#allocation5] sm:$0xff]
      %v1309 = vld [vmem:[#allocation5 + $0x8] sm:$0xff]
      %v1310 = vld [vmem:[#allocation2] sm:$0xff]
      %v1311 = vld [vmem:[#allocation2 + $0x8] sm:$0xff]
      %v1312 = vpack.c.bf16 %v1305, %v1304
      %v1313 = vld [vmem:[#allocation11] sm:$0xf]
      %v1314 = vld [vmem:[#allocation11 + $0x4] sm:$0xf]
      %v1315 = vld [vmem:[#allocation11 + $0x8] sm:$0xf]
      %v1316 = vld [vmem:[#allocation11 + $0xc] sm:$0xf]
      %v1317 = vld [vmem:[#allocation11 + $0x10] sm:$0xf]
      %v1318 = vld [vmem:[#allocation11 + $0x14] sm:$0xf]
      %v1319 = vld [vmem:[#allocation11 + $0x18] sm:$0xf]
      %v1320 = vld [vmem:[#allocation11 + $0x1c] sm:$0xf]
      %v1321 = vld [vmem:[#allocation11 + $0x20] sm:$0xf]
      %v1322 = vld [vmem:[#allocation11 + $0x24] sm:$0xf]
      %v1323 = vld [vmem:[#allocation11 + $0x28] sm:$0xf]
      %v1324 = vld [vmem:[#allocation11 + $0x2c] sm:$0xf]
      %v1325 = vld [vmem:[#allocation11 + $0x30] sm:$0xf]
      %v1326 = vld [vmem:[#allocation11 + $0x34] sm:$0xf]
      %v1327 = vld [vmem:[#allocation11 + $0x38] sm:$0xf]
      %v1328 = vld [vmem:[#allocation11 + $0x3c] sm:$0xf]
      %v1345 = vunpack.c.l.b16 %v1313
      %v1346 = vunpack.c.l.b16 %v1314
      %v1347 = vunpack.c.l.b16 %v1315
      %v1348 = vunpack.c.l.b16 %v1316
      %v1349 = vunpack.c.l.b16 %v1317
      %v1350 = vunpack.c.l.b16 %v1318
      %v1351 = vunpack.c.l.b16 %v1319
      %v1352 = vunpack.c.l.b16 %v1320
      %v1353 = vunpack.c.l.b16 %v1321
      %v1354 = vunpack.c.l.b16 %v1322
      %v1355 = vunpack.c.l.b16 %v1323
      %v1356 = vunpack.c.l.b16 %v1324
      %v1357 = vunpack.c.l.b16 %v1325
      %v1358 = vunpack.c.l.b16 %v1326
      %v1359 = vunpack.c.l.b16 %v1327
      %v1360 = vunpack.c.l.b16 %v1328
      %v1361 = vpack.c.b16 %v1346, %v1345
      %v1362 = vpack.c.b16 %v1348, %v1347
      %v1363 = vpack.c.b16 %v1350, %v1349
      %v1364 = vpack.c.b16 %v1352, %v1351
      %v1365 = vpack.c.b16 %v1354, %v1353
      %v1366 = vpack.c.b16 %v1356, %v1355
      %v1367 = vpack.c.b16 %v1358, %v1357
      %v1368 = vpack.c.b16 %v1360, %v1359
      %1377 = vmatpush.bf16.msra.mxu0 %v1368
      %1378 = vmatpush.bf16.msra.mxu0 %v1367
      %1379 = vmatpush.bf16.msra.mxu0 %v1366
      %1380 = vmatpush.bf16.msra.mxu0 %v1365
      %1381 = vmatpush.bf16.msra.mxu0 %v1364
      %1382 = vmatpush.bf16.msra.mxu0 %v1363
      %1383 = vmatpush.bf16.msra.mxu0 %v1362
      %1384 = vmatpush.bf16.msra.mxu0 %v1361
      %1385 = vmatmul.bf16.gmra.mxu0 %v1312
      %v1386 = vpop.f32.mrf.mxu0
      %v1387 = vadd.f32 0.0, %v1386
      %v1388 = vpop.f32.mrf.mxu0
      %v1389 = vadd.f32 0.0, %v1388
      %1390 = vdwg.mxu0
      %v1391 = vadd.f32 %v1310, %v1387
      %v1392 = vadd.f32 %v1311, %v1389
      %v1393 = vtanh.pop %v1391
      %v1394 = vtanh.pop %v1392
      %v1395 = vpack.c.bf16 %v1308, %v1308
      %v1396 = vpack.c.bf16 %v1309, %v1309
      %v1397 = vpack.c.bf16 %v1306, %v1306
      %v1398 = vpack.c.bf16 %v1307, %v1307
      %v1401 = vunpack.c.l.b16 %v1395
      %v1402 = vunpack.c.l.b16 %v1396
      %v1403 = vpack.c.b16 %v1402, %v1401
      %v1407 = vunpack.c.l.b16 %v1397
      %v1408 = vunpack.c.l.b16 %v1398
      %v1409 = vpack.c.b16 %v1408, %v1407
      %v1411 = vld [vmem:[#allocation12] sm:$0xf]
      %v1412 = vld [vmem:[#allocation12 + $0x4] sm:$0xf]
      %v1413 = vld [vmem:[#allocation12 + $0x8] sm:$0xf]
      %v1414 = vld [vmem:[#allocation12 + $0xc] sm:$0xf]
      %v1415 = vld [vmem:[#allocation12 + $0x10] sm:$0xf]
      %v1416 = vld [vmem:[#allocation12 + $0x14] sm:$0xf]
      %v1417 = vld [vmem:[#allocation12 + $0x18] sm:$0xf]
      %v1418 = vld [vmem:[#allocation12 + $0x1c] sm:$0xf]
      %v1419 = vld [vmem:[#allocation12 + $0x20] sm:$0xf]
      %v1420 = vld [vmem:[#allocation12 + $0x24] sm:$0xf]
      %v1421 = vld [vmem:[#allocation12 + $0x28] sm:$0xf]
      %v1422 = vld [vmem:[#allocation12 + $0x2c] sm:$0xf]
      %v1423 = vld [vmem:[#allocation12 + $0x30] sm:$0xf]
      %v1424 = vld [vmem:[#allocation12 + $0x34] sm:$0xf]
      %v1425 = vld [vmem:[#allocation12 + $0x38] sm:$0xf]
      %v1426 = vld [vmem:[#allocation12 + $0x3c] sm:$0xf]
      %v1427 = vld [vmem:[#allocation12 + $0x40] sm:$0xf]
      %v1428 = vld [vmem:[#allocation12 + $0x44] sm:$0xf]
      %v1429 = vld [vmem:[#allocation12 + $0x48] sm:$0xf]
      %v1430 = vld [vmem:[#allocation12 + $0x4c] sm:$0xf]
      %v1431 = vld [vmem:[#allocation12 + $0x50] sm:$0xf]
      %v1432 = vld [vmem:[#allocation12 + $0x54] sm:$0xf]
      %v1433 = vld [vmem:[#allocation12 + $0x58] sm:$0xf]
      %v1434 = vld [vmem:[#allocation12 + $0x5c] sm:$0xf]
      %v1435 = vld [vmem:[#allocation12 + $0x60] sm:$0xf]
      %v1436 = vld [vmem:[#allocation12 + $0x64] sm:$0xf]
      %v1437 = vld [vmem:[#allocation12 + $0x68] sm:$0xf]
      %v1438 = vld [vmem:[#allocation12 + $0x6c] sm:$0xf]
      %v1439 = vld [vmem:[#allocation12 + $0x70] sm:$0xf]
      %v1440 = vld [vmem:[#allocation12 + $0x74] sm:$0xf]
      %v1441 = vld [vmem:[#allocation12 + $0x78] sm:$0xf]
      %v1442 = vld [vmem:[#allocation12 + $0x7c] sm:$0xf]
      %v1443 = vld [vmem:[%s5] sm:$0x1]
      %v1445 = vperm.slane %v1443, 0
      %v1479 = vunpack.c.l.b16 %v1411
      %v1480 = vunpack.c.l.b16 %v1412
      %v1481 = vunpack.c.l.b16 %v1413
      %v1482 = vunpack.c.l.b16 %v1414
      %v1483 = vunpack.c.l.b16 %v1415
      %v1484 = vunpack.c.l.b16 %v1416
      %v1485 = vunpack.c.l.b16 %v1417
      %v1486 = vunpack.c.l.b16 %v1418
      %v1487 = vunpack.c.l.b16 %v1419
      %v1488 = vunpack.c.l.b16 %v1420
      %v1489 = vunpack.c.l.b16 %v1421
      %v1490 = vunpack.c.l.b16 %v1422
      %v1491 = vunpack.c.l.b16 %v1423
      %v1492 = vunpack.c.l.b16 %v1424
      %v1493 = vunpack.c.l.b16 %v1425
      %v1494 = vunpack.c.l.b16 %v1426
      %v1495 = vunpack.c.l.b16 %v1427
      %v1496 = vunpack.c.l.b16 %v1428
      %v1497 = vunpack.c.l.b16 %v1429
      %v1498 = vunpack.c.l.b16 %v1430
      %v1499 = vunpack.c.l.b16 %v1431
      %v1500 = vunpack.c.l.b16 %v1432
      %v1501 = vunpack.c.l.b16 %v1433
      %v1502 = vunpack.c.l.b16 %v1434
      %v1503 = vunpack.c.l.b16 %v1435
      %v1504 = vunpack.c.l.b16 %v1436
      %v1505 = vunpack.c.l.b16 %v1437
      %v1506 = vunpack.c.l.b16 %v1438
      %v1507 = vunpack.c.l.b16 %v1439
      %v1508 = vunpack.c.l.b16 %v1440
      %v1509 = vunpack.c.l.b16 %v1441
      %v1510 = vunpack.c.l.b16 %v1442
      %v1511 = vpack.c.b16 %v1480, %v1479
      %v1512 = vpack.c.b16 %v1482, %v1481
      %v1513 = vpack.c.b16 %v1484, %v1483
      %v1514 = vpack.c.b16 %v1486, %v1485
      %v1515 = vpack.c.b16 %v1488, %v1487
      %v1516 = vpack.c.b16 %v1490, %v1489
      %v1517 = vpack.c.b16 %v1492, %v1491
      %v1518 = vpack.c.b16 %v1494, %v1493
      %v1519 = vpack.c.b16 %v1496, %v1495
      %v1520 = vpack.c.b16 %v1498, %v1497
      %v1521 = vpack.c.b16 %v1500, %v1499
      %v1522 = vpack.c.b16 %v1502, %v1501
      %v1523 = vpack.c.b16 %v1504, %v1503
      %v1524 = vpack.c.b16 %v1506, %v1505
      %v1525 = vpack.c.b16 %v1508, %v1507
      %v1526 = vpack.c.b16 %v1510, %v1509
      %1543 = vmatpush.bf16.msra.mxu0 %v1518
      %1544 = vmatpush.bf16.msra.mxu0 %v1517
      %1545 = vmatpush.bf16.msra.mxu0 %v1516
      %1546 = vmatpush.bf16.msra.mxu0 %v1515
      %1547 = vmatpush.bf16.msra.mxu0 %v1514
      %1548 = vmatpush.bf16.msra.mxu0 %v1513
      %1549 = vmatpush.bf16.msra.mxu0 %v1512
      %1550 = vmatpush.bf16.msra.mxu0 %v1511
      %1551 = vmatmul.bf16.gmra.mxu0 %v1403
      %v1552 = vpop.f32.mrf.mxu0
      %v1553 = vadd.f32 %v1445, %v1552
      %v1554 = vpop.f32.mrf.mxu0
      %v1555 = vadd.f32 %v1445, %v1554
      %1556 = vdwg.mxu0
      %1557 = vmatpush.bf16.msra.mxu0 %v1526
      %1558 = vmatpush.bf16.msra.mxu0 %v1525
      %1559 = vmatpush.bf16.msra.mxu0 %v1524
      %1560 = vmatpush.bf16.msra.mxu0 %v1523
      %1561 = vmatpush.bf16.msra.mxu0 %v1522
      %1562 = vmatpush.bf16.msra.mxu0 %v1521
      %1563 = vmatpush.bf16.msra.mxu0 %v1520
      %1564 = vmatpush.bf16.msra.mxu0 %v1519
      %1565 = vmatmul.bf16.gmra.mxu0 %v1409
      %v1566 = vpop.f32.mrf.mxu0
      %v1567 = vadd.f32 %v1553, %v1566
      %v1568 = vpop.f32.mrf.mxu0
      %v1569 = vadd.f32 %v1555, %v1568
      %1570 = vdwg.mxu0
      %v1571 = vtanh.pop %v1567
      %v1572 = vtanh.pop %v1569
      %s1573 = scalar_lea.vmem [#allocation2], 16
      %v1574 = vld [vmem:[%s1573] sm:$0xff]
      %v1575 = vld [vmem:[%s1573 + $0x8] sm:$0xff]
      %v1576 = vpack.c.bf16 %v1393, %v1393
      %v1577 = vpack.c.bf16 %v1394, %v1394
      %v1580 = vunpack.c.l.b16 %v1576
      %v1581 = vunpack.c.l.b16 %v1577
      %v1582 = vpack.c.b16 %v1581, %v1580
      %1584 = vmatpush.bf16.msra.mxu0 %v1368
      %1585 = vmatpush.bf16.msra.mxu0 %v1367
      %1586 = vmatpush.bf16.msra.mxu0 %v1366
      %1587 = vmatpush.bf16.msra.mxu0 %v1365
      %1588 = vmatpush.bf16.msra.mxu0 %v1364
      %1589 = vmatpush.bf16.msra.mxu0 %v1363
      %1590 = vmatpush.bf16.msra.mxu0 %v1362
      %1591 = vmatpush.bf16.msra.mxu0 %v1361
      %1592 = vmatmul.bf16.gmra.mxu0 %v1582
      %v1593 = vpop.f32.mrf.mxu0
      %v1594 = vadd.f32 0.0, %v1593
      %v1595 = vpop.f32.mrf.mxu0
      %v1596 = vadd.f32 0.0, %v1595
      %1597 = vdwg.mxu0
      %v1598 = vadd.f32 %v1574, %v1594
      %v1599 = vadd.f32 %v1575, %v1596
      %v1600 = vtanh.pop %v1598
      %v1601 = vtanh.pop %v1599
      %v1602 = vpack.c.bf16 %v1571, %v1571
      %v1603 = vpack.c.bf16 %v1572, %v1572
      %v1606 = vunpack.c.l.b16 %v1602
      %v1607 = vunpack.c.l.b16 %v1603
      %v1608 = vpack.c.b16 %v1607, %v1606
      %1610 = vmatpush.bf16.msra.mxu0 %v1518
      %1611 = vmatpush.bf16.msra.mxu0 %v1517
      %1612 = vmatpush.bf16.msra.mxu0 %v1516
      %1613 = vmatpush.bf16.msra.mxu0 %v1515
      %1614 = vmatpush.bf16.msra.mxu0 %v1514
      %1615 = vmatpush.bf16.msra.mxu0 %v1513
      %1616 = vmatpush.bf16.msra.mxu0 %v1512
      %1617 = vmatpush.bf16.msra.mxu0 %v1511
      %1618 = vmatmul.bf16.gmra.mxu0 %v1582
      %v1619 = vpop.f32.mrf.mxu0
      %v1620 = vadd.f32 %v1445, %v1619
      %v1621 = vpop.f32.mrf.mxu0
      %v1622 = vadd.f32 %v1445, %v1621
      %1623 = vdwg.mxu0
      %1624 = vmatpush.bf16.msra.mxu0 %v1526
      %1625 = vmatpush.bf16.msra.mxu0 %v1525
      %1626 = vmatpush.bf16.msra.mxu0 %v1524
      %1627 = vmatpush.bf16.msra.mxu0 %v1523
      %1628 = vmatpush.bf16.msra.mxu0 %v1522
      %1629 = vmatpush.bf16.msra.mxu0 %v1521
      %1630 = vmatpush.bf16.msra.mxu0 %v1520
      %1631 = vmatpush.bf16.msra.mxu0 %v1519
      %1632 = vmatmul.bf16.gmra.mxu0 %v1608
      %v1633 = vpop.f32.mrf.mxu0
      %v1634 = vadd.f32 %v1620, %v1633
      %v1635 = vpop.f32.mrf.mxu0
      %v1636 = vadd.f32 %v1622, %v1635
      %1637 = vdwg.mxu0
      %v1638 = vtanh.pop %v1634
      %v1639 = vtanh.pop %v1636
      %s1640 = scalar_lea.vmem [#allocation2], 32
      %v1641 = vld [vmem:[%s1640] sm:$0xff]
      %v1642 = vld [vmem:[%s1640 + $0x8] sm:$0xff]
      %v1643 = vpack.c.bf16 %v1600, %v1600
      %v1644 = vpack.c.bf16 %v1601, %v1601
      %v1647 = vunpack.c.l.b16 %v1643
      %v1648 = vunpack.c.l.b16 %v1644
      %v1649 = vpack.c.b16 %v1648, %v1647
      %1651 = vmatpush.bf16.msra.mxu0 %v1368
      %1652 = vmatpush.bf16.msra.mxu0 %v1367
      %1653 = vmatpush.bf16.msra.mxu0 %v1366
      %1654 = vmatpush.bf16.msra.mxu0 %v1365
      %1655 = vmatpush.bf16.msra.mxu0 %v1364
      %1656 = vmatpush.bf16.msra.mxu0 %v1363
      %1657 = vmatpush.bf16.msra.mxu0 %v1362
      %1658 = vmatpush.bf16.msra.mxu0 %v1361
      %1659 = vmatmul.bf16.gmra.mxu0 %v1649
      %v1660 = vpop.f32.mrf.mxu0
      %v1661 = vadd.f32 0.0, %v1660
      %v1662 = vpop.f32.mrf.mxu0
      %v1663 = vadd.f32 0.0, %v1662
      %1664 = vdwg.mxu0
      %v1665 = vadd.f32 %v1641, %v1661
      %v1666 = vadd.f32 %v1642, %v1663
      %v1667 = vtanh.pop %v1665
      %v1668 = vtanh.pop %v1666
      %v1669 = vpack.c.bf16 %v1638, %v1638
      %v1670 = vpack.c.bf16 %v1639, %v1639
      %v1673 = vunpack.c.l.b16 %v1669
      %v1674 = vunpack.c.l.b16 %v1670
      %v1675 = vpack.c.b16 %v1674, %v1673
      %1677 = vmatpush.bf16.msra.mxu0 %v1518
      %1678 = vmatpush.bf16.msra.mxu0 %v1517
      %1679 = vmatpush.bf16.msra.mxu0 %v1516
      %1680 = vmatpush.bf16.msra.mxu0 %v1515
      %1681 = vmatpush.bf16.msra.mxu0 %v1514
      %1682 = vmatpush.bf16.msra.mxu0 %v1513
      %1683 = vmatpush.bf16.msra.mxu0 %v1512
      %1684 = vmatpush.bf16.msra.mxu0 %v1511
      %1685 = vmatmul.bf16.gmra.mxu0 %v1649
      %v1686 = vpop.f32.mrf.mxu0
      %v1687 = vadd.f32 %v1445, %v1686
      %v1688 = vpop.f32.mrf.mxu0
      %v1689 = vadd.f32 %v1445, %v1688
      %1690 = vdwg.mxu0
      %1691 = vmatpush.bf16.msra.mxu0 %v1526
      %1692 = vmatpush.bf16.msra.mxu0 %v1525
      %1693 = vmatpush.bf16.msra.mxu0 %v1524
      %1694 = vmatpush.bf16.msra.mxu0 %v1523
      %1695 = vmatpush.bf16.msra.mxu0 %v1522
      %1696 = vmatpush.bf16.msra.mxu0 %v1521
      %1697 = vmatpush.bf16.msra.mxu0 %v1520
      %1698 = vmatpush.bf16.msra.mxu0 %v1519
      %1699 = vmatmul.bf16.gmra.mxu0 %v1675
      %v1700 = vpop.f32.mrf.mxu0
      %v1701 = vadd.f32 %v1687, %v1700
      %v1702 = vpop.f32.mrf.mxu0
      %v1703 = vadd.f32 %v1689, %v1702
      %1704 = vdwg.mxu0
      %v1705 = vtanh.pop %v1701
      %v1706 = vtanh.pop %v1703
      %s1707 = scalar_lea.vmem [#allocation2], 48
      %v1708 = vld [vmem:[%s1707] sm:$0xff]
      %v1709 = vld [vmem:[%s1707 + $0x8] sm:$0xff]
      %v1710 = vpack.c.bf16 %v1667, %v1667
      %v1711 = vpack.c.bf16 %v1668, %v1668
      %v1714 = vunpack.c.l.b16 %v1710
      %v1715 = vunpack.c.l.b16 %v1711
      %v1716 = vpack.c.b16 %v1715, %v1714
      %1718 = vmatpush.bf16.msra.mxu0 %v1368
      %1719 = vmatpush.bf16.msra.mxu0 %v1367
      %1720 = vmatpush.bf16.msra.mxu0 %v1366
      %1721 = vmatpush.bf16.msra.mxu0 %v1365
      %1722 = vmatpush.bf16.msra.mxu0 %v1364
      %1723 = vmatpush.bf16.msra.mxu0 %v1363
      %1724 = vmatpush.bf16.msra.mxu0 %v1362
      %1725 = vmatpush.bf16.msra.mxu0 %v1361
      %1726 = vmatmul.bf16.gmra.mxu0 %v1716
      %v1727 = vpop.f32.mrf.mxu0
      %v1728 = vadd.f32 0.0, %v1727
      %v1729 = vpop.f32.mrf.mxu0
      %v1730 = vadd.f32 0.0, %v1729
      %1731 = vdwg.mxu0
      %v1732 = vadd.f32 %v1708, %v1728
      %v1733 = vadd.f32 %v1709, %v1730
      %v1734 = vtanh.pop %v1732
      %v1735 = vtanh.pop %v1733
      %v1736 = vpack.c.bf16 %v1705, %v1705
      %v1737 = vpack.c.bf16 %v1706, %v1706
      %v1740 = vunpack.c.l.b16 %v1736
      %v1741 = vunpack.c.l.b16 %v1737
      %v1742 = vpack.c.b16 %v1741, %v1740
      %1744 = vmatpush.bf16.msra.mxu0 %v1518
      %1745 = vmatpush.bf16.msra.mxu0 %v1517
      %1746 = vmatpush.bf16.msra.mxu0 %v1516
      %1747 = vmatpush.bf16.msra.mxu0 %v1515
      %1748 = vmatpush.bf16.msra.mxu0 %v1514
      %1749 = vmatpush.bf16.msra.mxu0 %v1513
      %1750 = vmatpush.bf16.msra.mxu0 %v1512
      %1751 = vmatpush.bf16.msra.mxu0 %v1511
      %1752 = vmatmul.bf16.gmra.mxu0 %v1716
      %v1753 = vpop.f32.mrf.mxu0
      %v1754 = vadd.f32 %v1445, %v1753
      %v1755 = vpop.f32.mrf.mxu0
      %v1756 = vadd.f32 %v1445, %v1755
      %1757 = vdwg.mxu0
      %1758 = vmatpush.bf16.msra.mxu0 %v1526
      %1759 = vmatpush.bf16.msra.mxu0 %v1525
      %1760 = vmatpush.bf16.msra.mxu0 %v1524
      %1761 = vmatpush.bf16.msra.mxu0 %v1523
      %1762 = vmatpush.bf16.msra.mxu0 %v1522
      %1763 = vmatpush.bf16.msra.mxu0 %v1521
      %1764 = vmatpush.bf16.msra.mxu0 %v1520
      %1765 = vmatpush.bf16.msra.mxu0 %v1519
      %1766 = vmatmul.bf16.gmra.mxu0 %v1742
      %v1767 = vpop.f32.mrf.mxu0
      %v1768 = vadd.f32 %v1754, %v1767
      %v1769 = vpop.f32.mrf.mxu0
      %v1770 = vadd.f32 %v1756, %v1769
      %1771 = vdwg.mxu0
      %v1772 = vtanh.pop %v1768
      %v1773 = vtanh.pop %v1770
      %s1774 = scalar_lea.vmem [#allocation2], 64
      %v1775 = vld [vmem:[%s1774] sm:$0xff]
      %v1776 = vld [vmem:[%s1774 + $0x8] sm:$0xff]
      %v1777 = vpack.c.bf16 %v1734, %v1734
      %v1778 = vpack.c.bf16 %v1735, %v1735
      %v1781 = vunpack.c.l.b16 %v1777
      %v1782 = vunpack.c.l.b16 %v1778
      %v1783 = vpack.c.b16 %v1782, %v1781
      %1785 = vmatpush.bf16.msra.mxu0 %v1368
      %1786 = vmatpush.bf16.msra.mxu0 %v1367
      %1787 = vmatpush.bf16.msra.mxu0 %v1366
      %1788 = vmatpush.bf16.msra.mxu0 %v1365
      %1789 = vmatpush.bf16.msra.mxu0 %v1364
      %1790 = vmatpush.bf16.msra.mxu0 %v1363
      %1791 = vmatpush.bf16.msra.mxu0 %v1362
      %1792 = vmatpush.bf16.msra.mxu0 %v1361
      %1793 = vmatmul.bf16.gmra.mxu0 %v1783
      %v1794 = vpop.f32.mrf.mxu0
      %v1795 = vadd.f32 0.0, %v1794
      %v1796 = vpop.f32.mrf.mxu0
      %v1797 = vadd.f32 0.0, %v1796
      %1798 = vdwg.mxu0
      %v1799 = vadd.f32 %v1775, %v1795
      %v1800 = vadd.f32 %v1776, %v1797
      %v1801 = vtanh.pop %v1799
      %v1802 = vtanh.pop %v1800
      %v1803 = vpack.c.bf16 %v1772, %v1772
      %v1804 = vpack.c.bf16 %v1773, %v1773
      %v1807 = vunpack.c.l.b16 %v1803
      %v1808 = vunpack.c.l.b16 %v1804
      %v1809 = vpack.c.b16 %v1808, %v1807
      %1811 = vmatpush.bf16.msra.mxu0 %v1518
      %1812 = vmatpush.bf16.msra.mxu0 %v1517
      %1813 = vmatpush.bf16.msra.mxu0 %v1516
      %1814 = vmatpush.bf16.msra.mxu0 %v1515
      %1815 = vmatpush.bf16.msra.mxu0 %v1514
      %1816 = vmatpush.bf16.msra.mxu0 %v1513
      %1817 = vmatpush.bf16.msra.mxu0 %v1512
      %1818 = vmatpush.bf16.msra.mxu0 %v1511
      %1819 = vmatmul.bf16.gmra.mxu0 %v1783
      %v1820 = vpop.f32.mrf.mxu0
      %v1821 = vadd.f32 %v1445, %v1820
      %v1822 = vpop.f32.mrf.mxu0
      %v1823 = vadd.f32 %v1445, %v1822
      %1824 = vdwg.mxu0
      %1825 = vmatpush.bf16.msra.mxu0 %v1526
      %1826 = vmatpush.bf16.msra.mxu0 %v1525
      %1827 = vmatpush.bf16.msra.mxu0 %v1524
      %1828 = vmatpush.bf16.msra.mxu0 %v1523
      %1829 = vmatpush.bf16.msra.mxu0 %v1522
      %1830 = vmatpush.bf16.msra.mxu0 %v1521
      %1831 = vmatpush.bf16.msra.mxu0 %v1520
      %1832 = vmatpush.bf16.msra.mxu0 %v1519
      %1833 = vmatmul.bf16.gmra.mxu0 %v1809
      %v1834 = vpop.f32.mrf.mxu0
      %v1835 = vadd.f32 %v1821, %v1834
      %v1836 = vpop.f32.mrf.mxu0
      %v1837 = vadd.f32 %v1823, %v1836
      %1838 = vdwg.mxu0
      %v1839 = vtanh.pop %v1835
      %v1840 = vtanh.pop %v1837
      %s1841 = scalar_lea.vmem [#allocation2], 80
      %v1842 = vld [vmem:[%s1841] sm:$0xff]
      %v1843 = vld [vmem:[%s1841 + $0x8] sm:$0xff]
      %v1844 = vpack.c.bf16 %v1801, %v1801
      %v1845 = vpack.c.bf16 %v1802, %v1802
      %v1848 = vunpack.c.l.b16 %v1844
      %v1849 = vunpack.c.l.b16 %v1845
      %v1850 = vpack.c.b16 %v1849, %v1848
      %1852 = vmatpush.bf16.msra.mxu0 %v1368
      %1853 = vmatpush.bf16.msra.mxu0 %v1367
      %1854 = vmatpush.bf16.msra.mxu0 %v1366
      %1855 = vmatpush.bf16.msra.mxu0 %v1365
      %1856 = vmatpush.bf16.msra.mxu0 %v1364
      %1857 = vmatpush.bf16.msra.mxu0 %v1363
      %1858 = vmatpush.bf16.msra.mxu0 %v1362
      %1859 = vmatpush.bf16.msra.mxu0 %v1361
      %1860 = vmatmul.bf16.gmra.mxu0 %v1850
      %v1861 = vpop.f32.mrf.mxu0
      %v1862 = vadd.f32 0.0, %v1861
      %v1863 = vpop.f32.mrf.mxu0
      %v1864 = vadd.f32 0.0, %v1863
      %1865 = vdwg.mxu0
      %v1866 = vadd.f32 %v1842, %v1862
      %v1867 = vadd.f32 %v1843, %v1864
      %v1868 = vtanh.pop %v1866
      %v1869 = vtanh.pop %v1867
      %v1870 = vpack.c.bf16 %v1839, %v1839
      %v1871 = vpack.c.bf16 %v1840, %v1840
      %v1874 = vunpack.c.l.b16 %v1870
      %v1875 = vunpack.c.l.b16 %v1871
      %v1876 = vpack.c.b16 %v1875, %v1874
      %1878 = vmatpush.bf16.msra.mxu0 %v1518
      %1879 = vmatpush.bf16.msra.mxu0 %v1517
      %1880 = vmatpush.bf16.msra.mxu0 %v1516
      %1881 = vmatpush.bf16.msra.mxu0 %v1515
      %1882 = vmatpush.bf16.msra.mxu0 %v1514
      %1883 = vmatpush.bf16.msra.mxu0 %v1513
      %1884 = vmatpush.bf16.msra.mxu0 %v1512
      %1885 = vmatpush.bf16.msra.mxu0 %v1511
      %1886 = vmatmul.bf16.gmra.mxu0 %v1850
      %v1887 = vpop.f32.mrf.mxu0
      %v1888 = vadd.f32 %v1445, %v1887
      %v1889 = vpop.f32.mrf.mxu0
      %v1890 = vadd.f32 %v1445, %v1889
      %1891 = vdwg.mxu0
      %1892 = vmatpush.bf16.msra.mxu0 %v1526
      %1893 = vmatpush.bf16.msra.mxu0 %v1525
      %1894 = vmatpush.bf16.msra.mxu0 %v1524
      %1895 = vmatpush.bf16.msra.mxu0 %v1523
      %1896 = vmatpush.bf16.msra.mxu0 %v1522
      %1897 = vmatpush.bf16.msra.mxu0 %v1521
      %1898 = vmatpush.bf16.msra.mxu0 %v1520
      %1899 = vmatpush.bf16.msra.mxu0 %v1519
      %1900 = vmatmul.bf16.gmra.mxu0 %v1876
      %v1901 = vpop.f32.mrf.mxu0
      %v1902 = vadd.f32 %v1888, %v1901
      %v1903 = vpop.f32.mrf.mxu0
      %v1904 = vadd.f32 %v1890, %v1903
      %1905 = vdwg.mxu0
      %v1906 = vtanh.pop %v1902
      %v1907 = vtanh.pop %v1904
      %s1908 = scalar_lea.vmem [#allocation2], 96
      %v1909 = vld [vmem:[%s1908] sm:$0xff]
      %v1910 = vld [vmem:[%s1908 + $0x8] sm:$0xff]
      %v1911 = vpack.c.bf16 %v1868, %v1868
      %v1912 = vpack.c.bf16 %v1869, %v1869
      %v1915 = vunpack.c.l.b16 %v1911
      %v1916 = vunpack.c.l.b16 %v1912
      %v1917 = vpack.c.b16 %v1916, %v1915
      %1919 = vmatpush.bf16.msra.mxu0 %v1368
      %1920 = vmatpush.bf16.msra.mxu0 %v1367
      %1921 = vmatpush.bf16.msra.mxu0 %v1366
      %1922 = vmatpush.bf16.msra.mxu0 %v1365
      %1923 = vmatpush.bf16.msra.mxu0 %v1364
      %1924 = vmatpush.bf16.msra.mxu0 %v1363
      %1925 = vmatpush.bf16.msra.mxu0 %v1362
      %1926 = vmatpush.bf16.msra.mxu0 %v1361
      %1927 = vmatmul.bf16.gmra.mxu0 %v1917
      %v1928 = vpop.f32.mrf.mxu0
      %v1929 = vadd.f32 0.0, %v1928
      %v1930 = vpop.f32.mrf.mxu0
      %v1931 = vadd.f32 0.0, %v1930
      %1932 = vdwg.mxu0
      %v1933 = vadd.f32 %v1909, %v1929
      %v1934 = vadd.f32 %v1910, %v1931
      %v1935 = vtanh.pop %v1933
      %v1936 = vtanh.pop %v1934
      %v1937 = vpack.c.bf16 %v1906, %v1906
      %v1938 = vpack.c.bf16 %v1907, %v1907
      %v1941 = vunpack.c.l.b16 %v1937
      %v1942 = vunpack.c.l.b16 %v1938
      %v1943 = vpack.c.b16 %v1942, %v1941
      %1945 = vmatpush.bf16.msra.mxu0 %v1518
      %1946 = vmatpush.bf16.msra.mxu0 %v1517
      %1947 = vmatpush.bf16.msra.mxu0 %v1516
      %1948 = vmatpush.bf16.msra.mxu0 %v1515
      %1949 = vmatpush.bf16.msra.mxu0 %v1514
      %1950 = vmatpush.bf16.msra.mxu0 %v1513
      %1951 = vmatpush.bf16.msra.mxu0 %v1512
      %1952 = vmatpush.bf16.msra.mxu0 %v1511
      %1953 = vmatmul.bf16.gmra.mxu0 %v1917
      %v1954 = vpop.f32.mrf.mxu0
      %v1955 = vadd.f32 %v1445, %v1954
      %v1956 = vpop.f32.mrf.mxu0
      %v1957 = vadd.f32 %v1445, %v1956
      %1958 = vdwg.mxu0
      %1959 = vmatpush.bf16.msra.mxu0 %v1526
      %1960 = vmatpush.bf16.msra.mxu0 %v1525
      %1961 = vmatpush.bf16.msra.mxu0 %v1524
      %1962 = vmatpush.bf16.msra.mxu0 %v1523
      %1963 = vmatpush.bf16.msra.mxu0 %v1522
      %1964 = vmatpush.bf16.msra.mxu0 %v1521
      %1965 = vmatpush.bf16.msra.mxu0 %v1520
      %1966 = vmatpush.bf16.msra.mxu0 %v1519
      %1967 = vmatmul.bf16.gmra.mxu0 %v1943
      %v1968 = vpop.f32.mrf.mxu0
      %v1969 = vadd.f32 %v1955, %v1968
      %v1970 = vpop.f32.mrf.mxu0
      %v1971 = vadd.f32 %v1957, %v1970
      %1972 = vdwg.mxu0
      %v1973 = vtanh.pop %v1969
      %v1974 = vtanh.pop %v1971
      %s1975 = scalar_lea.vmem [#allocation2], 112
      %v1976 = vld [vmem:[%s1975] sm:$0xff]
      %v1977 = vld [vmem:[%s1975 + $0x8] sm:$0xff]
      %v1978 = vpack.c.bf16 %v1935, %v1935
      %v1979 = vpack.c.bf16 %v1936, %v1936
      %v1982 = vunpack.c.l.b16 %v1978
      %v1983 = vunpack.c.l.b16 %v1979
      %v1984 = vpack.c.b16 %v1983, %v1982
      %1986 = vmatpush.bf16.msra.mxu0 %v1368
      %1987 = vmatpush.bf16.msra.mxu0 %v1367
      %1988 = vmatpush.bf16.msra.mxu0 %v1366
      %1989 = vmatpush.bf16.msra.mxu0 %v1365
      %1990 = vmatpush.bf16.msra.mxu0 %v1364
      %1991 = vmatpush.bf16.msra.mxu0 %v1363
      %1992 = vmatpush.bf16.msra.mxu0 %v1362
      %1993 = vmatpush.bf16.msra.mxu0 %v1361
      %1994 = vmatmul.bf16.gmra.mxu0 %v1984
      %v1995 = vpop.f32.mrf.mxu0
      %v1996 = vadd.f32 0.0, %v1995
      %v1997 = vpop.f32.mrf.mxu0
      %v1998 = vadd.f32 0.0, %v1997
      %1999 = vdwg.mxu0
      %v2000 = vadd.f32 %v1976, %v1996
      %v2001 = vadd.f32 %v1977, %v1998
      %v2002 = vtanh.pop %v2000
      %v2003 = vtanh.pop %v2001
      %v2004 = vpack.c.bf16 %v1973, %v1973
      %v2005 = vpack.c.bf16 %v1974, %v1974
      %v2008 = vunpack.c.l.b16 %v2004
      %v2009 = vunpack.c.l.b16 %v2005
      %v2010 = vpack.c.b16 %v2009, %v2008
      %2012 = vmatpush.bf16.msra.mxu0 %v1518
      %2013 = vmatpush.bf16.msra.mxu0 %v1517
      %2014 = vmatpush.bf16.msra.mxu0 %v1516
      %2015 = vmatpush.bf16.msra.mxu0 %v1515
      %2016 = vmatpush.bf16.msra.mxu0 %v1514
      %2017 = vmatpush.bf16.msra.mxu0 %v1513
      %2018 = vmatpush.bf16.msra.mxu0 %v1512
      %2019 = vmatpush.bf16.msra.mxu0 %v1511
      %2020 = vmatmul.bf16.gmra.mxu0 %v1984
      %v2021 = vpop.f32.mrf.mxu0
      %v2022 = vadd.f32 %v1445, %v2021
      %v2023 = vpop.f32.mrf.mxu0
      %v2024 = vadd.f32 %v1445, %v2023
      %2025 = vdwg.mxu0
      %2026 = vmatpush.bf16.msra.mxu0 %v1526
      %2027 = vmatpush.bf16.msra.mxu0 %v1525
      %2028 = vmatpush.bf16.msra.mxu0 %v1524
      %2029 = vmatpush.bf16.msra.mxu0 %v1523
      %2030 = vmatpush.bf16.msra.mxu0 %v1522
      %2031 = vmatpush.bf16.msra.mxu0 %v1521
      %2032 = vmatpush.bf16.msra.mxu0 %v1520
      %2033 = vmatpush.bf16.msra.mxu0 %v1519
      %2034 = vmatmul.bf16.gmra.mxu0 %v2010
      %v2035 = vpop.f32.mrf.mxu0
      %v2036 = vadd.f32 %v2022, %v2035
      %v2037 = vpop.f32.mrf.mxu0
      %v2038 = vadd.f32 %v2024, %v2037
      %2039 = vdwg.mxu0
      %v2040 = vtanh.pop %v2036
      %v2041 = vtanh.pop %v2038
      %s2042 = scalar_lea.vmem [#allocation2], 128
      %v2043 = vld [vmem:[%s2042] sm:$0xff]
      %v2044 = vld [vmem:[%s2042 + $0x8] sm:$0xff]
      %v2045 = vpack.c.bf16 %v2002, %v2002
      %v2046 = vpack.c.bf16 %v2003, %v2003
      %v2049 = vunpack.c.l.b16 %v2045
      %v2050 = vunpack.c.l.b16 %v2046
      %v2051 = vpack.c.b16 %v2050, %v2049
      %2053 = vmatpush.bf16.msra.mxu0 %v1368
      %2054 = vmatpush.bf16.msra.mxu0 %v1367
      %2055 = vmatpush.bf16.msra.mxu0 %v1366
      %2056 = vmatpush.bf16.msra.mxu0 %v1365
      %2057 = vmatpush.bf16.msra.mxu0 %v1364
      %2058 = vmatpush.bf16.msra.mxu0 %v1363
      %2059 = vmatpush.bf16.msra.mxu0 %v1362
      %2060 = vmatpush.bf16.msra.mxu0 %v1361
      %2061 = vmatmul.bf16.gmra.mxu0 %v2051
      %v2062 = vpop.f32.mrf.mxu0
      %v2063 = vadd.f32 0.0, %v2062
      %v2064 = vpop.f32.mrf.mxu0
      %v2065 = vadd.f32 0.0, %v2064
      %2066 = vdwg.mxu0
      %v2067 = vadd.f32 %v2043, %v2063
      %v2068 = vadd.f32 %v2044, %v2065
      %v2069 = vtanh.pop %v2067
      %v2070 = vtanh.pop %v2068
      %v2071 = vpack.c.bf16 %v2040, %v2040
      %v2072 = vpack.c.bf16 %v2041, %v2041
      %v2075 = vunpack.c.l.b16 %v2071
      %v2076 = vunpack.c.l.b16 %v2072
      %v2077 = vpack.c.b16 %v2076, %v2075
      %2079 = vmatpush.bf16.msra.mxu0 %v1518
      %2080 = vmatpush.bf16.msra.mxu0 %v1517
      %2081 = vmatpush.bf16.msra.mxu0 %v1516
      %2082 = vmatpush.bf16.msra.mxu0 %v1515
      %2083 = vmatpush.bf16.msra.mxu0 %v1514
      %2084 = vmatpush.bf16.msra.mxu0 %v1513
      %2085 = vmatpush.bf16.msra.mxu0 %v1512
      %2086 = vmatpush.bf16.msra.mxu0 %v1511
      %2087 = vmatmul.bf16.gmra.mxu0 %v2051
      %v2088 = vpop.f32.mrf.mxu0
      %v2089 = vadd.f32 %v1445, %v2088
      %v2090 = vpop.f32.mrf.mxu0
      %v2091 = vadd.f32 %v1445, %v2090
      %2092 = vdwg.mxu0
      %2093 = vmatpush.bf16.msra.mxu0 %v1526
      %2094 = vmatpush.bf16.msra.mxu0 %v1525
      %2095 = vmatpush.bf16.msra.mxu0 %v1524
      %2096 = vmatpush.bf16.msra.mxu0 %v1523
      %2097 = vmatpush.bf16.msra.mxu0 %v1522
      %2098 = vmatpush.bf16.msra.mxu0 %v1521
      %2099 = vmatpush.bf16.msra.mxu0 %v1520
      %2100 = vmatpush.bf16.msra.mxu0 %v1519
      %2101 = vmatmul.bf16.gmra.mxu0 %v2077
      %v2102 = vpop.f32.mrf.mxu0
      %v2103 = vadd.f32 %v2089, %v2102
      %v2104 = vpop.f32.mrf.mxu0
      %v2105 = vadd.f32 %v2091, %v2104
      %2106 = vdwg.mxu0
      %v2107 = vtanh.pop %v2103
      %v2108 = vtanh.pop %v2105
      %2109 = vst [vmem:[#allocation3] sm:$0xff] %v2069
      %2110 = vst [vmem:[#allocation3 + $0x8] sm:$0xff] %v2070
      %2111 = vst [vmem:[#allocation4] sm:$0xff] %v2107
      %2112 = vst [vmem:[#allocation4 + $0x8] sm:$0xff] %v2108
      %2113 = vst [vmem:[#allocation5] sm:$0xff] %v2069
      %2114 = vst [vmem:[#allocation5 + $0x8] sm:$0xff] %v2070
    $region65: #{tpu_custom_call.1} parent=1 // pred_fallthru
      _
    // Predicated region
    $region66: #{tpu_custom_call.1} parent=1 // pred_check
      %p2115 = pneg %p108
    $region67: #{tpu_custom_call.1} parent=1 // pred_check_branch
      %2117 = sbr.rel (%p2115) target = $region69
    $region68: #{tpu_custom_call.1} parent=1 // pred_region
      %v2118 = vld [vmem:[#allocation4] sm:$0xff]
      %v2119 = vld [vmem:[#allocation4 + $0x8] sm:$0xff]
      %v2120 = vpack.c.bf16 %v2119, %v2118
      %v2121 = vld [vmem:[#allocation14] sm:$0xf]
      %v2122 = vld [vmem:[#allocation14 + $0x4] sm:$0xf]
      %v2123 = vld [vmem:[#allocation14 + $0x8] sm:$0xf]
      %v2124 = vld [vmem:[#allocation14 + $0xc] sm:$0xf]
      %v2125 = vld [vmem:[#allocation14 + $0x10] sm:$0xf]
      %v2126 = vld [vmem:[#allocation14 + $0x14] sm:$0xf]
      %v2127 = vld [vmem:[#allocation14 + $0x18] sm:$0xf]
      %v2128 = vld [vmem:[#allocation14 + $0x1c] sm:$0xf]
      %v2129 = vld [vmem:[#allocation14 + $0x20] sm:$0xf]
      %v2130 = vld [vmem:[#allocation14 + $0x24] sm:$0xf]
      %v2131 = vld [vmem:[#allocation14 + $0x28] sm:$0xf]
      %v2132 = vld [vmem:[#allocation14 + $0x2c] sm:$0xf]
      %v2133 = vld [vmem:[#allocation14 + $0x30] sm:$0xf]
      %v2134 = vld [vmem:[#allocation14 + $0x34] sm:$0xf]
      %v2135 = vld [vmem:[#allocation14 + $0x38] sm:$0xf]
      %v2136 = vld [vmem:[#allocation14 + $0x3c] sm:$0xf]
      %v2137 = vld [vmem:[%s7] sm:$0x1]
      %v2139 = vperm.slane %v2137, 0
      %v2157 = vunpack.c.l.b16 %v2121
      %v2158 = vunpack.c.l.b16 %v2122
      %v2159 = vunpack.c.l.b16 %v2123
      %v2160 = vunpack.c.l.b16 %v2124
      %v2161 = vunpack.c.l.b16 %v2125
      %v2162 = vunpack.c.l.b16 %v2126
      %v2163 = vunpack.c.l.b16 %v2127
      %v2164 = vunpack.c.l.b16 %v2128
      %v2165 = vunpack.c.l.b16 %v2129
      %v2166 = vunpack.c.l.b16 %v2130
      %v2167 = vunpack.c.l.b16 %v2131
      %v2168 = vunpack.c.l.b16 %v2132
      %v2169 = vunpack.c.l.b16 %v2133
      %v2170 = vunpack.c.l.b16 %v2134
      %v2171 = vunpack.c.l.b16 %v2135
      %v2172 = vunpack.c.l.b16 %v2136
      %v2173 = vpack.c.b16 %v2158, %v2157
      %v2174 = vpack.c.b16 %v2160, %v2159
      %v2175 = vpack.c.b16 %v2162, %v2161
      %v2176 = vpack.c.b16 %v2164, %v2163
      %v2177 = vpack.c.b16 %v2166, %v2165
      %v2178 = vpack.c.b16 %v2168, %v2167
      %v2179 = vpack.c.b16 %v2170, %v2169
      %v2180 = vpack.c.b16 %v2172, %v2171
      %2189 = vmatpush.bf16.msra.mxu0 %v2180
      %2190 = vmatpush.bf16.msra.mxu0 %v2179
      %2191 = vmatpush.bf16.msra.mxu0 %v2178
      %2192 = vmatpush.bf16.msra.mxu0 %v2177
      %2193 = vmatpush.bf16.msra.mxu0 %v2176
      %2194 = vmatpush.bf16.msra.mxu0 %v2175
      %2195 = vmatpush.bf16.msra.mxu0 %v2174
      %2196 = vmatpush.bf16.msra.mxu0 %v2173
      %2197 = vmatmul.bf16.gmra.mxu0 %v2120
      %v2198 = vpop.f32.mrf.mxu0
      %v2199 = vadd.f32 %v2139, %v2198
      %v2200 = vpop.f32.mrf.mxu0
      %v2201 = vadd.f32 %v2139, %v2200
      %2202 = vdwg.mxu0
      %2203 = vst [vmem:[#allocation15] sm:$0xff] %v2199
      %2204 = vst [vmem:[#allocation15 + $0x8] sm:$0xff] %v2201
    $region69: #{tpu_custom_call.1} parent=1 // pred_fallthru
      _
    // Predicated region
    $region70: #{tpu_custom_call.1} parent=1 // pred_check
      _
    $region71: #{tpu_custom_call.1} parent=1 // pred_check_branch
      %2206 = sbr.rel (0) target = $region73
    $region72: #{tpu_custom_call.1} parent=1 // pred_region
      %2208 = vsyncadd [#allocation8], 0
      %s2209 = sshll.u32 [#allocation15], 4
      %s2210 = int_to_ptr.vmem [resolvable:$true] %s2209
      %s2211 = sshll.u32 %s8, 4
      %s2212 = int_to_ptr.hbm [resolvable:$true] %s2211
      %2217 = dma.vmem_to_hbm [thread:$0]  %s2210, 256, %s2212, [#allocation8], 128, 128, 8
    $region73: #{tpu_custom_call.1} parent=1 // pred_fallthru
      _
    // Predicated region
    $region74: #{tpu_custom_call.1} parent=1 // pred_check
      _
    $region75: #{tpu_custom_call.1} parent=1 // pred_check_branch
      %2219 = sbr.rel (0) target = $region77
    $region76: #{tpu_custom_call.1} parent=1 // pred_region
      %2221 = dma.done [#allocation8], 256
    $region77: #{tpu_custom_call.1} parent=1 // pred_fallthru
      _
    %2222 = vsyncpa [#allocation7], 1
    %2223 = vsyncpa [#allocation10], 1
    %2224 = vsyncpa [#allocation13], 1
    %2225 = vsyncpa [#allocation8], 1

</llo_original>
